<compile_context>
chip_gen: v7x
topology: tpu7x:2x2x1
jax: 0.10.0
libtpu: 0.0.40
codegen_flags: <defaults>
</compile_context>

<pallas_src>
import functools

import numpy as np
import jax
import jax.numpy as jnp
from jax.experimental import pallas as pl
from jax.experimental.pallas import tpu as pltpu


# ---------------------------------------------------------------------------
# Pallas kernels (grid = (B, T); each step produces one (H, W*Cout) slice)
# ---------------------------------------------------------------------------
def _conv1_gate_kernel(xm_ref, x0_ref, xp_ref, w1_ref, wg_ref, b1_ref, bg_ref,
                       c1_ref, g_ref, *, slope):
    """conv1 (3x3x3) + LeakyReLU -> bf16, and 1x1 gate logits -> bf16.

    xm/x0/xp: (H+2, W*Cin) bf16 halo slices at t-1 / t / t+1 (T,H zero-padded).
    w1:       (9, W*Cin, W*Cout) banded weights (kw shift folded into weight).
    wg:       (W*Cin, W*Cout) block-diagonal 1x1 gate weight.
    """
    H = c1_ref.shape[0]
    acc = jnp.zeros(c1_ref.shape, jnp.float32)
    for it, xref in enumerate((xm_ref, x0_ref, xp_ref)):          # kt = 0,1,2
        for dh in range(3):                                        # kh = 0,1,2
            a = xref[dh:dh + H, :]                                 # static sublane slice
            acc = acc + jnp.dot(a, w1_ref[it * 3 + dh],
                                preferred_element_type=jnp.float32)
    acc = acc + b1_ref[...]
    c1_ref[...] = jnp.where(acc >= 0.0, acc, slope * acc).astype(c1_ref.dtype)

    # 1x1x1 gate conv reuses the already-resident center slice of x.
    g = jnp.dot(x0_ref[1:1 + H, :], wg_ref[...],
                preferred_element_type=jnp.float32) + bg_ref[...]
    g_ref[...] = g.astype(g_ref.dtype)


def _conv2_gated_residual_kernel(cm_ref, c0_ref, cp_ref, w2_ref, b2_ref,
                                 g_ref, r_ref, o_ref):
    """out = sigmoid(gate) * (conv2(c1) + b2) + residual  (residual in f32)."""
    H = o_ref.shape[0]
    acc = jnp.zeros(o_ref.shape, jnp.float32)
    for it, cref in enumerate((cm_ref, c0_ref, cp_ref)):
        for dh in range(3):
            acc = acc + jnp.dot(cref[dh:dh + H, :], w2_ref[it * 3 + dh],
                                preferred_element_type=jnp.float32)
    acc = acc + b2_ref[...]
    # numerically-stable sigmoid via tanh (EUP slot)
    gate = 0.5 * (jnp.tanh(0.5 * g_ref[...].astype(jnp.float32)) + 1.0)
    o_ref[...] = gate * acc + r_ref[...]


# ---------------------------------------------------------------------------
# Weight packing: fold the kw taps (and W zero-padding) into banded matrices
# operating on the fused (W*C) lane axis.
# ---------------------------------------------------------------------------
def _banded_weight(w, W):
    """(Cout, Cin, 3,3,3) -> (9, W*Cin, W*Cout) block-tridiagonal matrices.

    Entry [(kt*3+kh), w_in*Cin+c, w_out*Cout+n] = w[n, c, kt, kh, dw] where
    w_in = w_out + dw - 1 (taps falling outside [0, W) are absent -> zero pad).
    TODO(synk): weight size scales O(W^2 * Cin * Cout); for large W tile the
    W axis into lane blocks instead of one banded matrix.
    """
    Cout, Cin = w.shape[0], w.shape[1]
    taps = jnp.transpose(w, (2, 3, 4, 1, 0))                     # (3,3,3,Cin,Cout)
    wi = np.arange(W)[:, None]
    wo = np.arange(W)[None, :]
    sel = np.stack([(wi - wo + 1 == dw) for dw in range(3)], 0).astype(np.float32)
    banded = jnp.einsum('wij,thwcn->thicjn', jnp.asarray(sel), taps)
    return banded.reshape(9, W * Cin, W * Cout)


def _blockdiag_weight(wg, W):
    """(Cout, Cin, 1,1,1) 1x1 conv -> (W*Cin, W*Cout) block-diagonal matrix."""
    Cout, Cin = wg.shape[0], wg.shape[1]
    eye = jnp.eye(W, dtype=jnp.float32)
    return jnp.einsum('ij,cn->icjn', eye, wg.reshape(Cout, Cin).T
                      ).reshape(W * Cin, W * Cout)


# ---------------------------------------------------------------------------
# Gated3DConvBlock forward
# ---------------------------------------------------------------------------
def gated3d_block_forward(params, x):
    """x: (B, C, T, H, W) NCDHW, in_ch == out_ch (residual)."""
    w1, b1 = params['c1']['w'], params['c1']['b']
    w2, b2 = params['c2']['w'], params['c2']['b']
    wg, bg = params['g']['w'], params['g']['b']

    B, C, T, H, W = x.shape
    Cout = w1.shape[0]
    assert C == Cout, "residual `+ x` requires in_ch == out_ch"
    WC, WN = W * C, W * Cout

    # Channels-last with (W, C) fused into the lane axis -> lane-dense HBM
    # layout (WC = 128 here). One transpose pass over x; residual stays f32.
    x_f = jnp.transpose(x, (0, 2, 3, 4, 1)).reshape(B, T, H, WC)
    # Halo zero-pad only along T and H (one cheap pass over bf16 x);
    # W boundary handling is folded into the banded weights.
    xp = jnp.pad(x_f.astype(jnp.bfloat16), ((0, 0), (1, 1), (1, 1), (0, 0)))

    bw1 = _banded_weight(w1, W).astype(jnp.bfloat16)
    bdg = _blockdiag_weight(wg, W).astype(jnp.bfloat16)
    bw2 = _banded_weight(w2, W).astype(jnp.bfloat16)
    b1t = jnp.tile(b1, W)[None, :].astype(jnp.float32)
    bgt = jnp.tile(bg, W)[None, :].astype(jnp.float32)
    b2t = jnp.tile(b2, W)[None, :].astype(jnp.float32)

    par2 = pltpu.CompilerParams(dimension_semantics=("parallel", "parallel"))

    # --- kernel 1: conv1(3x3x3)+LeakyReLU (bf16) and gate logits (bf16) -----
    c1_f, g_f = pl.pallas_call(
        functools.partial(_conv1_gate_kernel, slope=0.1),
        out_shape=(jax.ShapeDtypeStruct((B, T, H, WN), jnp.bfloat16),
                   jax.ShapeDtypeStruct((B, T, H, WN), jnp.bfloat16)),
        grid=(B, T),
        in_specs=[
            pl.BlockSpec((None, None, H + 2, WC), lambda b, t: (b, t, 0, 0)),
            pl.BlockSpec((None, None, H + 2, WC), lambda b, t: (b, t + 1, 0, 0)),
            pl.BlockSpec((None, None, H + 2, WC), lambda b, t: (b, t + 2, 0, 0)),
            pl.BlockSpec((9, WC, WN), lambda b, t: (0, 0, 0)),
            pl.BlockSpec((WC, WN), lambda b, t: (0, 0)),
            pl.BlockSpec((1, WN), lambda b, t: (0, 0)),
            pl.BlockSpec((1, WN), lambda b, t: (0, 0)),
        ],
        out_specs=(pl.BlockSpec((None, None, H, WN), lambda b, t: (b, t, 0, 0)),
                   pl.BlockSpec((None, None, H, WN), lambda b, t: (b, t, 0, 0))),
        compiler_params=par2,
    )(xp, xp, xp, bw1, bdg, b1t, bgt)

    # --- kernel 2: conv2(3x3x3) with fused sigmoid(gate)*conv2 + x ----------
    c1p = jnp.pad(c1_f, ((0, 0), (1, 1), (1, 1), (0, 0)))   # T,H halo for conv2
    out_f = pl.pallas_call(
        _conv2_gated_residual_kernel,
        out_shape=jax.ShapeDtypeStruct((B, T, H, WN), jnp.float32),
        grid=(B, T),
        in_specs=[
            pl.BlockSpec((None, None, H + 2, WN), lambda b, t: (b, t, 0, 0)),
            pl.BlockSpec((None, None, H + 2, WN), lambda b, t: (b, t + 1, 0, 0)),
            pl.BlockSpec((None, None, H + 2, WN), lambda b, t: (b, t + 2, 0, 0)),
            pl.BlockSpec((9, WN, WN), lambda b, t: (0, 0, 0)),
            pl.BlockSpec((1, WN), lambda b, t: (0, 0)),
            pl.BlockSpec((None, None, H, WN), lambda b, t: (b, t, 0, 0)),   # gate
            pl.BlockSpec((None, None, H, WC), lambda b, t: (b, t, 0, 0)),   # residual (f32)
        ],
        out_specs=pl.BlockSpec((None, None, H, WN), lambda b, t: (b, t, 0, 0)),
        compiler_params=par2,
    )(c1p, c1p, c1p, bw2, b2t, g_f, x_f)

    # TODO(synk): if the surrounding model consumes channels-last activations,
    # return out_f directly and drop this layout pass.
    return out_f.reshape(B, T, H, W, Cout).transpose(0, 4, 1, 2, 3)


# ---------------------------------------------------------------------------
# Parameters (PyTorch-default Conv3d init scale) and f32 reference
# ---------------------------------------------------------------------------
def conv_init(key, cout, cin, *k):
    fan_in = cin * int(np.prod(k))
    bound = 1.0 / float(np.sqrt(fan_in))
    kw, kb = jax.random.split(key)
    w = jax.random.uniform(kw, (cout, cin) + tuple(k), jnp.float32, -bound, bound)
    b = jax.random.uniform(kb, (cout,), jnp.float32, -bound, bound)
    return {'w': w, 'b': b}


def make_gated_params(seed, in_ch, out_ch):
    k1, k2, k3 = jax.random.split(jax.random.PRNGKey(seed), 3)
    return {'c1': conv_init(k1, out_ch, in_ch, 3, 3, 3),
            'c2': conv_init(k2, out_ch, out_ch, 3, 3, 3),
            'g': conv_init(k3, out_ch, in_ch, 1, 1, 1)}


def reference_forward(params, x):
    dn = ('NCDHW', 'OIDHW', 'NCDHW')

    def conv(v, w, pad):
        return jax.lax.conv_general_dilated(
            v, w, (1, 1, 1), [(pad, pad)] * 3, dimension_numbers=dn,
            precision=jax.lax.Precision.HIGHEST)

    c = conv(x, params['c1']['w'], 1) + params['c1']['b'].reshape(1, -1, 1, 1, 1)
    c = jnp.where(c >= 0, c, 0.1 * c)
    c = conv(c, params['c2']['w'], 1) + params['c2']['b'].reshape(1, -1, 1, 1, 1)
    g = conv(x, params['g']['w'], 0) + params['g']['b'].reshape(1, -1, 1, 1, 1)
    return jax.nn.sigmoid(g) * c + x


# ---------------------------------------------------------------------------
if __name__ == "__main__":
    B, C, T, H, W = 2, 8, 4, 16, 16          # W*C == 128 -> perfectly lane-dense
    params = make_gated_params(seed=0, in_ch=C, out_ch=C)
    x = jax.random.normal(jax.random.PRNGKey(0), (B, C, T, H, W), jnp.float32)

    fwd = jax.jit(gated3d_block_forward)
    out = jax.block_until_ready(fwd(params, x))

    assert out.shape == (B, C, T, H, W), out.shape
    assert bool(jnp.isfinite(out).all())

    ref = reference_forward(params, x)
    err = float(jnp.max(jnp.abs(out - ref)))
    assert err < 5e-2, f"max abs err vs f32 reference: {err}"

    print("KERNEL_OK")
</pallas_src>

<mosaic_0001>
module attributes {stable_mosaic.version = 11 : i64} {
  func.func @_conv1_gate_kernel(%arg0: i32, %arg1: i32, %arg2: memref<1x1x18x128xbf16, #tpu.memory_space<vmem>>, %arg3: memref<1x1x18x128xbf16, #tpu.memory_space<vmem>>, %arg4: memref<1x1x18x128xbf16, #tpu.memory_space<vmem>>, %arg5: memref<9x128x128xbf16, #tpu.memory_space<vmem>>, %arg6: memref<128x128xbf16, #tpu.memory_space<vmem>>, %arg7: memref<1x128xf32, #tpu.memory_space<vmem>>, %arg8: memref<1x128xf32, #tpu.memory_space<vmem>>, %arg9: memref<1x1x16x128xbf16, #tpu.memory_space<vmem>>, %arg10: memref<1x1x16x128xbf16, #tpu.memory_space<vmem>>) attributes {dimension_semantics = [#tpu.dimension_semantics<parallel>, #tpu.dimension_semantics<parallel>], iteration_bounds = array<i64: 2, 4>, scalar_prefetch = 0 : i64, scratch_operands = 0 : i64, tpu.core_type = #tpu.core_type<tc>, window_params = [{transform_indices = @transform_0, window_bounds = array<i64: 1, 1, 18, 128>}, {transform_indices = @transform_1, window_bounds = array<i64: 1, 1, 18, 128>}, {transform_indices = @transform_2, window_bounds = array<i64: 1, 1, 18, 128>}, {pipeline_mode = #tpu.pipeline_mode<synchronous>, transform_indices = @transform_3, window_bounds = array<i64: 9, 128, 128>}, {pipeline_mode = #tpu.pipeline_mode<synchronous>, transform_indices = @transform_4, window_bounds = array<i64: 128, 128>}, {pipeline_mode = #tpu.pipeline_mode<synchronous>, transform_indices = @transform_5, window_bounds = array<i64: 1, 128>}, {pipeline_mode = #tpu.pipeline_mode<synchronous>, transform_indices = @transform_6, window_bounds = array<i64: 1, 128>}, {transform_indices = @transform_7, window_bounds = array<i64: 1, 1, 16, 128>}, {transform_indices = @transform_8, window_bounds = array<i64: 1, 1, 16, 128>}]} {
    %cst = arith.constant 0.000000e+00 : f32
    %0 = vector.broadcast %cst : f32 to vector<16x128xf32>
    %c0 = arith.constant 0 : index
    %c0_0 = arith.constant 0 : index
    %c0_1 = arith.constant 0 : index
    %c0_2 = arith.constant 0 : index
    %1 = vector.load %arg2[%c0, %c0_0, %c0_1, %c0_2] : memref<1x1x18x128xbf16, #tpu.memory_space<vmem>>, vector<1x1x16x128xbf16>
    %2 = vector.shape_cast %1 : vector<1x1x16x128xbf16> to vector<16x128xbf16>
    %c0_3 = arith.constant 0 : index
    %c0_4 = arith.constant 0 : index
    %c0_5 = arith.constant 0 : index
    %3 = vector.load %arg5[%c0_3, %c0_4, %c0_5] : memref<9x128x128xbf16, #tpu.memory_space<vmem>>, vector<1x128x128xbf16>
    %4 = vector.shape_cast %3 : vector<1x128x128xbf16> to vector<128x128xbf16>
    %cst_6 = arith.constant dense<0.000000e+00> : vector<16x128xf32>
    %5 = tpu.matmul %2, %4, %cst_6 {dimension_numbers = #tpu.dot_dimension_numbers<[1], [0], [0], [1], [0, 0, 1, 1], [], []>} : vector<16x128xbf16>, vector<128x128xbf16>, vector<16x128xf32> -> vector<16x128xf32>
    %6 = arith.addf %0, %5 : vector<16x128xf32>
    %c0_7 = arith.constant 0 : index
    %c0_8 = arith.constant 0 : index
    %c1 = arith.constant 1 : index
    %c0_9 = arith.constant 0 : index
    %7 = vector.load %arg2[%c0_7, %c0_8, %c1, %c0_9] : memref<1x1x18x128xbf16, #tpu.memory_space<vmem>>, vector<1x1x16x128xbf16>
    %8 = vector.shape_cast %7 : vector<1x1x16x128xbf16> to vector<16x128xbf16>
    %c1_10 = arith.constant 1 : index
    %c0_11 = arith.constant 0 : index
    %c0_12 = arith.constant 0 : index
    %9 = vector.load %arg5[%c1_10, %c0_11, %c0_12] : memref<9x128x128xbf16, #tpu.memory_space<vmem>>, vector<1x128x128xbf16>
    %10 = vector.shape_cast %9 : vector<1x128x128xbf16> to vector<128x128xbf16>
    %cst_13 = arith.constant dense<0.000000e+00> : vector<16x128xf32>
    %11 = tpu.matmul %8, %10, %cst_13 {dimension_numbers = #tpu.dot_dimension_numbers<[1], [0], [0], [1], [0, 0, 1, 1], [], []>} : vector<16x128xbf16>, vector<128x128xbf16>, vector<16x128xf32> -> vector<16x128xf32>
    %12 = arith.addf %6, %11 : vector<16x128xf32>
    %c0_14 = arith.constant 0 : index
    %c0_15 = arith.constant 0 : index
    %c2 = arith.constant 2 : index
    %c0_16 = arith.constant 0 : index
    %13 = vector.load %arg2[%c0_14, %c0_15, %c2, %c0_16] : memref<1x1x18x128xbf16, #tpu.memory_space<vmem>>, vector<1x1x16x128xbf16>
    %14 = vector.shape_cast %13 : vector<1x1x16x128xbf16> to vector<16x128xbf16>
    %c2_17 = arith.constant 2 : index
    %c0_18 = arith.constant 0 : index
    %c0_19 = arith.constant 0 : index
    %15 = vector.load %arg5[%c2_17, %c0_18, %c0_19] : memref<9x128x128xbf16, #tpu.memory_space<vmem>>, vector<1x128x128xbf16>
    %16 = vector.shape_cast %15 : vector<1x128x128xbf16> to vector<128x128xbf16>
    %cst_20 = arith.constant dense<0.000000e+00> : vector<16x128xf32>
    %17 = tpu.matmul %14, %16, %cst_20 {dimension_numbers = #tpu.dot_dimension_numbers<[1], [0], [0], [1], [0, 0, 1, 1], [], []>} : vector<16x128xbf16>, vector<128x128xbf16>, vector<16x128xf32> -> vector<16x128xf32>
    %18 = arith.addf %12, %17 : vector<16x128xf32>
    %c0_21 = arith.constant 0 : index
    %c0_22 = arith.constant 0 : index
    %c0_23 = arith.constant 0 : index
    %c0_24 = arith.constant 0 : index
    %19 = vector.load %arg3[%c0_21, %c0_22, %c0_23, %c0_24] : memref<1x1x18x128xbf16, #tpu.memory_space<vmem>>, vector<1x1x16x128xbf16>
    %20 = vector.shape_cast %19 : vector<1x1x16x128xbf16> to vector<16x128xbf16>
    %c3 = arith.constant 3 : index
    %c0_25 = arith.constant 0 : index
    %c0_26 = arith.constant 0 : index
    %21 = vector.load %arg5[%c3, %c0_25, %c0_26] : memref<9x128x128xbf16, #tpu.memory_space<vmem>>, vector<1x128x128xbf16>
    %22 = vector.shape_cast %21 : vector<1x128x128xbf16> to vector<128x128xbf16>
    %cst_27 = arith.constant dense<0.000000e+00> : vector<16x128xf32>
    %23 = tpu.matmul %20, %22, %cst_27 {dimension_numbers = #tpu.dot_dimension_numbers<[1], [0], [0], [1], [0, 0, 1, 1], [], []>} : vector<16x128xbf16>, vector<128x128xbf16>, vector<16x128xf32> -> vector<16x128xf32>
    %24 = arith.addf %18, %23 : vector<16x128xf32>
    %c0_28 = arith.constant 0 : index
    %c0_29 = arith.constant 0 : index
    %c1_30 = arith.constant 1 : index
    %c0_31 = arith.constant 0 : index
    %25 = vector.load %arg3[%c0_28, %c0_29, %c1_30, %c0_31] : memref<1x1x18x128xbf16, #tpu.memory_space<vmem>>, vector<1x1x16x128xbf16>
    %26 = vector.shape_cast %25 : vector<1x1x16x128xbf16> to vector<16x128xbf16>
    %c4 = arith.constant 4 : index
    %c0_32 = arith.constant 0 : index
    %c0_33 = arith.constant 0 : index
    %27 = vector.load %arg5[%c4, %c0_32, %c0_33] : memref<9x128x128xbf16, #tpu.memory_space<vmem>>, vector<1x128x128xbf16>
    %28 = vector.shape_cast %27 : vector<1x128x128xbf16> to vector<128x128xbf16>
    %cst_34 = arith.constant dense<0.000000e+00> : vector<16x128xf32>
    %29 = tpu.matmul %26, %28, %cst_34 {dimension_numbers = #tpu.dot_dimension_numbers<[1], [0], [0], [1], [0, 0, 1, 1], [], []>} : vector<16x128xbf16>, vector<128x128xbf16>, vector<16x128xf32> -> vector<16x128xf32>
    %30 = arith.addf %24, %29 : vector<16x128xf32>
    %c0_35 = arith.constant 0 : index
    %c0_36 = arith.constant 0 : index
    %c2_37 = arith.constant 2 : index
    %c0_38 = arith.constant 0 : index
    %31 = vector.load %arg3[%c0_35, %c0_36, %c2_37, %c0_38] : memref<1x1x18x128xbf16, #tpu.memory_space<vmem>>, vector<1x1x16x128xbf16>
    %32 = vector.shape_cast %31 : vector<1x1x16x128xbf16> to vector<16x128xbf16>
    %c5 = arith.constant 5 : index
    %c0_39 = arith.constant 0 : index
    %c0_40 = arith.constant 0 : index
    %33 = vector.load %arg5[%c5, %c0_39, %c0_40] : memref<9x128x128xbf16, #tpu.memory_space<vmem>>, vector<1x128x128xbf16>
    %34 = vector.shape_cast %33 : vector<1x128x128xbf16> to vector<128x128xbf16>
    %cst_41 = arith.constant dense<0.000000e+00> : vector<16x128xf32>
    %35 = tpu.matmul %32, %34, %cst_41 {dimension_numbers = #tpu.dot_dimension_numbers<[1], [0], [0], [1], [0, 0, 1, 1], [], []>} : vector<16x128xbf16>, vector<128x128xbf16>, vector<16x128xf32> -> vector<16x128xf32>
    %36 = arith.addf %30, %35 : vector<16x128xf32>
    %c0_42 = arith.constant 0 : index
    %c0_43 = arith.constant 0 : index
    %c0_44 = arith.constant 0 : index
    %c0_45 = arith.constant 0 : index
    %37 = vector.load %arg4[%c0_42, %c0_43, %c0_44, %c0_45] : memref<1x1x18x128xbf16, #tpu.memory_space<vmem>>, vector<1x1x16x128xbf16>
    %38 = vector.shape_cast %37 : vector<1x1x16x128xbf16> to vector<16x128xbf16>
    %c6 = arith.constant 6 : index
    %c0_46 = arith.constant 0 : index
    %c0_47 = arith.constant 0 : index
    %39 = vector.load %arg5[%c6, %c0_46, %c0_47] : memref<9x128x128xbf16, #tpu.memory_space<vmem>>, vector<1x128x128xbf16>
    %40 = vector.shape_cast %39 : vector<1x128x128xbf16> to vector<128x128xbf16>
    %cst_48 = arith.constant dense<0.000000e+00> : vector<16x128xf32>
    %41 = tpu.matmul %38, %40, %cst_48 {dimension_numbers = #tpu.dot_dimension_numbers<[1], [0], [0], [1], [0, 0, 1, 1], [], []>} : vector<16x128xbf16>, vector<128x128xbf16>, vector<16x128xf32> -> vector<16x128xf32>
    %42 = arith.addf %36, %41 : vector<16x128xf32>
    %c0_49 = arith.constant 0 : index
    %c0_50 = arith.constant 0 : index
    %c1_51 = arith.constant 1 : index
    %c0_52 = arith.constant 0 : index
    %43 = vector.load %arg4[%c0_49, %c0_50, %c1_51, %c0_52] : memref<1x1x18x128xbf16, #tpu.memory_space<vmem>>, vector<1x1x16x128xbf16>
    %44 = vector.shape_cast %43 : vector<1x1x16x128xbf16> to vector<16x128xbf16>
    %c7 = arith.constant 7 : index
    %c0_53 = arith.constant 0 : index
    %c0_54 = arith.constant 0 : index
    %45 = vector.load %arg5[%c7, %c0_53, %c0_54] : memref<9x128x128xbf16, #tpu.memory_space<vmem>>, vector<1x128x128xbf16>
    %46 = vector.shape_cast %45 : vector<1x128x128xbf16> to vector<128x128xbf16>
    %cst_55 = arith.constant dense<0.000000e+00> : vector<16x128xf32>
    %47 = tpu.matmul %44, %46, %cst_55 {dimension_numbers = #tpu.dot_dimension_numbers<[1], [0], [0], [1], [0, 0, 1, 1], [], []>} : vector<16x128xbf16>, vector<128x128xbf16>, vector<16x128xf32> -> vector<16x128xf32>
    %48 = arith.addf %42, %47 : vector<16x128xf32>
    %c0_56 = arith.constant 0 : index
    %c0_57 = arith.constant 0 : index
    %c2_58 = arith.constant 2 : index
    %c0_59 = arith.constant 0 : index
    %49 = vector.load %arg4[%c0_56, %c0_57, %c2_58, %c0_59] : memref<1x1x18x128xbf16, #tpu.memory_space<vmem>>, vector<1x1x16x128xbf16>
    %50 = vector.shape_cast %49 : vector<1x1x16x128xbf16> to vector<16x128xbf16>
    %c8 = arith.constant 8 : index
    %c0_60 = arith.constant 0 : index
    %c0_61 = arith.constant 0 : index
    %51 = vector.load %arg5[%c8, %c0_60, %c0_61] : memref<9x128x128xbf16, #tpu.memory_space<vmem>>, vector<1x128x128xbf16>
    %52 = vector.shape_cast %51 : vector<1x128x128xbf16> to vector<128x128xbf16>
    %cst_62 = arith.constant dense<0.000000e+00> : vector<16x128xf32>
    %53 = tpu.matmul %50, %52, %cst_62 {dimension_numbers = #tpu.dot_dimension_numbers<[1], [0], [0], [1], [0, 0, 1, 1], [], []>} : vector<16x128xbf16>, vector<128x128xbf16>, vector<16x128xf32> -> vector<16x128xf32>
    %54 = arith.addf %48, %53 : vector<16x128xf32>
    %c0_63 = arith.constant 0 : index
    %c0_64 = arith.constant 0 : index
    %55 = vector.load %arg7[%c0_63, %c0_64] : memref<1x128xf32, #tpu.memory_space<vmem>>, vector<1x128xf32>
    %56 = vector.broadcast %55 : vector<1x128xf32> to vector<16x128xf32>
    %57 = arith.addf %54, %56 : vector<16x128xf32>
    %cst_65 = arith.constant 0.000000e+00 : f32
    %58 = vector.broadcast %cst_65 : f32 to vector<16x128xf32>
    %59 = arith.cmpf oge, %57, %58 : vector<16x128xf32>
    %cst_66 = arith.constant 1.000000e-01 : f32
    %60 = vector.broadcast %cst_66 : f32 to vector<16x128xf32>
    %61 = arith.mulf %60, %57 : vector<16x128xf32>
    %62 = arith.select %59, %57, %61 : vector<16x128xi1>, vector<16x128xf32>
    %63 = arith.truncf %62 : vector<16x128xf32> to vector<16x128xbf16>
    %c0_67 = arith.constant 0 : index
    %c0_68 = arith.constant 0 : index
    %c0_69 = arith.constant 0 : index
    %c0_70 = arith.constant 0 : index
    %64 = vector.load %arg9[%c0_67, %c0_68, %c0_69, %c0_70] : memref<1x1x16x128xbf16, #tpu.memory_space<vmem>>, vector<1x1x16x128xbf16>
    %65 = vector.shape_cast %64 : vector<1x1x16x128xbf16> to vector<16x128xbf16>
    %66 = vector.shape_cast %63 : vector<16x128xbf16> to vector<1x1x16x128xbf16>
    tpu.vector_store %arg9[%c0_67, %c0_68, %c0_69, %c0_70], %66 {strides = array<i32>} : memref<1x1x16x128xbf16, #tpu.memory_space<vmem>>, vector<1x1x16x128xbf16>,
    %c0_71 = arith.constant 0 : index
    %c0_72 = arith.constant 0 : index
    %c1_73 = arith.constant 1 : index
    %c0_74 = arith.constant 0 : index
    %67 = vector.load %arg3[%c0_71, %c0_72, %c1_73, %c0_74] : memref<1x1x18x128xbf16, #tpu.memory_space<vmem>>, vector<1x1x16x128xbf16>
    %68 = vector.shape_cast %67 : vector<1x1x16x128xbf16> to vector<16x128xbf16>
    %c0_75 = arith.constant 0 : index
    %c0_76 = arith.constant 0 : index
    %69 = vector.load %arg6[%c0_75, %c0_76] : memref<128x128xbf16, #tpu.memory_space<vmem>>, vector<128x128xbf16>
    %cst_77 = arith.constant dense<0.000000e+00> : vector<16x128xf32>
    %70 = tpu.matmul %68, %69, %cst_77 {dimension_numbers = #tpu.dot_dimension_numbers<[1], [0], [0], [1], [0, 0, 1, 1], [], []>} : vector<16x128xbf16>, vector<128x128xbf16>, vector<16x128xf32> -> vector<16x128xf32>
    %c0_78 = arith.constant 0 : index
    %c0_79 = arith.constant 0 : index
    %71 = vector.load %arg8[%c0_78, %c0_79] : memref<1x128xf32, #tpu.memory_space<vmem>>, vector<1x128xf32>
    %72 = vector.broadcast %71 : vector<1x128xf32> to vector<16x128xf32>
    %73 = arith.addf %70, %72 : vector<16x128xf32>
    %74 = arith.truncf %73 : vector<16x128xf32> to vector<16x128xbf16>
    %c0_80 = arith.constant 0 : index
    %c0_81 = arith.constant 0 : index
    %c0_82 = arith.constant 0 : index
    %c0_83 = arith.constant 0 : index
    %75 = vector.load %arg10[%c0_80, %c0_81, %c0_82, %c0_83] : memref<1x1x16x128xbf16, #tpu.memory_space<vmem>>, vector<1x1x16x128xbf16>
    %76 = vector.shape_cast %75 : vector<1x1x16x128xbf16> to vector<16x128xbf16>
    %77 = vector.shape_cast %74 : vector<16x128xbf16> to vector<1x1x16x128xbf16>
    tpu.vector_store %arg10[%c0_80, %c0_81, %c0_82, %c0_83], %77 {strides = array<i32>} : memref<1x1x16x128xbf16, #tpu.memory_space<vmem>>, vector<1x1x16x128xbf16>,
    return
  }
  func.func @transform_0(%arg0: i32, %arg1: i32) -> (i32, i32, i32, i32) {
    %c0_i32 = arith.constant 0 : i32
    %c0_i32_0 = arith.constant 0 : i32
    %c0_i32_1 = arith.constant 0 : i32
    return %arg0, %arg1, %c0_i32, %c0_i32_0 : i32, i32, i32, i32
  }
  func.func @transform_1(%arg0: i32, %arg1: i32) -> (i32, i32, i32, i32) {
    %c1_i32 = arith.constant 1 : i32
    %0 = arith.addi %arg1, %c1_i32 : i32
    %c0_i32 = arith.constant 0 : i32
    %c0_i32_0 = arith.constant 0 : i32
    %c0_i32_1 = arith.constant 0 : i32
    return %arg0, %0, %c0_i32, %c0_i32_0 : i32, i32, i32, i32
  }
  func.func @transform_2(%arg0: i32, %arg1: i32) -> (i32, i32, i32, i32) {
    %c2_i32 = arith.constant 2 : i32
    %0 = arith.addi %arg1, %c2_i32 : i32
    %c0_i32 = arith.constant 0 : i32
    %c0_i32_0 = arith.constant 0 : i32
    %c0_i32_1 = arith.constant 0 : i32
    return %arg0, %0, %c0_i32, %c0_i32_0 : i32, i32, i32, i32
  }
  func.func @transform_3(%arg0: i32, %arg1: i32) -> (i32, i32, i32) {
    %c0_i32 = arith.constant 0 : i32
    %c0_i32_0 = arith.constant 0 : i32
    %c0_i32_1 = arith.constant 0 : i32
    %c0_i32_2 = arith.constant 0 : i32
    return %c0_i32, %c0_i32_0, %c0_i32_1 : i32, i32, i32
  }
  func.func @transform_4(%arg0: i32, %arg1: i32) -> (i32, i32) {
    %c0_i32 = arith.constant 0 : i32
    %c0_i32_0 = arith.constant 0 : i32
    %c0_i32_1 = arith.constant 0 : i32
    return %c0_i32, %c0_i32_0 : i32, i32
  }
  func.func @transform_5(%arg0: i32, %arg1: i32) -> (i32, i32) {
    %c0_i32 = arith.constant 0 : i32
    %c0_i32_0 = arith.constant 0 : i32
    %c0_i32_1 = arith.constant 0 : i32
    return %c0_i32, %c0_i32_0 : i32, i32
  }
  func.func @transform_6(%arg0: i32, %arg1: i32) -> (i32, i32) {
    %c0_i32 = arith.constant 0 : i32
    %c0_i32_0 = arith.constant 0 : i32
    %c0_i32_1 = arith.constant 0 : i32
    return %c0_i32, %c0_i32_0 : i32, i32
  }
  func.func @transform_7(%arg0: i32, %arg1: i32) -> (i32, i32, i32, i32) {
    %c0_i32 = arith.constant 0 : i32
    %c0_i32_0 = arith.constant 0 : i32
    %c0_i32_1 = arith.constant 0 : i32
    return %arg0, %arg1, %c0_i32, %c0_i32_0 : i32, i32, i32, i32
  }
  func.func @transform_8(%arg0: i32, %arg1: i32) -> (i32, i32, i32, i32) {
    %c0_i32 = arith.constant 0 : i32
    %c0_i32_0 = arith.constant 0 : i32
    %c0_i32_1 = arith.constant 0 : i32
    return %arg0, %arg1, %c0_i32, %c0_i32_0 : i32, i32, i32, i32
  }
}

module attributes {stable_mosaic.version = 11 : i64} {
  func.func @_conv2_gated_residual_kernel(%arg0: i32, %arg1: i32, %arg2: memref<1x1x18x128xbf16, #tpu.memory_space<vmem>>, %arg3: memref<1x1x18x128xbf16, #tpu.memory_space<vmem>>, %arg4: memref<1x1x18x128xbf16, #tpu.memory_space<vmem>>, %arg5: memref<9x128x128xbf16, #tpu.memory_space<vmem>>, %arg6: memref<1x128xf32, #tpu.memory_space<vmem>>, %arg7: memref<1x1x16x128xbf16, #tpu.memory_space<vmem>>, %arg8: memref<1x1x16x128xf32, #tpu.memory_space<vmem>>, %arg9: memref<1x1x16x128xf32, #tpu.memory_space<vmem>>) attributes {dimension_semantics = [#tpu.dimension_semantics<parallel>, #tpu.dimension_semantics<parallel>], iteration_bounds = array<i64: 2, 4>, scalar_prefetch = 0 : i64, scratch_operands = 0 : i64, tpu.core_type = #tpu.core_type<tc>, window_params = [{transform_indices = @transform_0, window_bounds = array<i64: 1, 1, 18, 128>}, {transform_indices = @transform_1, window_bounds = array<i64: 1, 1, 18, 128>}, {transform_indices = @transform_2, window_bounds = array<i64: 1, 1, 18, 128>}, {pipeline_mode = #tpu.pipeline_mode<synchronous>, transform_indices = @transform_3, window_bounds = array<i64: 9, 128, 128>}, {pipeline_mode = #tpu.pipeline_mode<synchronous>, transform_indices = @transform_4, window_bounds = array<i64: 1, 128>}, {transform_indices = @transform_5, window_bounds = array<i64: 1, 1, 16, 128>}, {transform_indices = @transform_6, window_bounds = array<i64: 1, 1, 16, 128>}, {transform_indices = @transform_7, window_bounds = array<i64: 1, 1, 16, 128>}]} {
    %cst = arith.constant 0.000000e+00 : f32
    %0 = vector.broadcast %cst : f32 to vector<16x128xf32>
    %c0 = arith.constant 0 : index
    %c0_0 = arith.constant 0 : index
    %c0_1 = arith.constant 0 : index
    %c0_2 = arith.constant 0 : index
    %1 = vector.load %arg2[%c0, %c0_0, %c0_1, %c0_2] : memref<1x1x18x128xbf16, #tpu.memory_space<vmem>>, vector<1x1x16x128xbf16>
    %2 = vector.shape_cast %1 : vector<1x1x16x128xbf16> to vector<16x128xbf16>
    %c0_3 = arith.constant 0 : index
    %c0_4 = arith.constant 0 : index
    %c0_5 = arith.constant 0 : index
    %3 = vector.load %arg5[%c0_3, %c0_4, %c0_5] : memref<9x128x128xbf16, #tpu.memory_space<vmem>>, vector<1x128x128xbf16>
    %4 = vector.shape_cast %3 : vector<1x128x128xbf16> to vector<128x128xbf16>
    %cst_6 = arith.constant dense<0.000000e+00> : vector<16x128xf32>
    %5 = tpu.matmul %2, %4, %cst_6 {dimension_numbers = #tpu.dot_dimension_numbers<[1], [0], [0], [1], [0, 0, 1, 1], [], []>} : vector<16x128xbf16>, vector<128x128xbf16>, vector<16x128xf32> -> vector<16x128xf32>
    %6 = arith.addf %0, %5 : vector<16x128xf32>
    %c0_7 = arith.constant 0 : index
    %c0_8 = arith.constant 0 : index
    %c1 = arith.constant 1 : index
    %c0_9 = arith.constant 0 : index
    %7 = vector.load %arg2[%c0_7, %c0_8, %c1, %c0_9] : memref<1x1x18x128xbf16, #tpu.memory_space<vmem>>, vector<1x1x16x128xbf16>
    %8 = vector.shape_cast %7 : vector<1x1x16x128xbf16> to vector<16x128xbf16>
    %c1_10 = arith.constant 1 : index
    %c0_11 = arith.constant 0 : index
    %c0_12 = arith.constant 0 : index
    %9 = vector.load %arg5[%c1_10, %c0_11, %c0_12] : memref<9x128x128xbf16, #tpu.memory_space<vmem>>, vector<1x128x128xbf16>
    %10 = vector.shape_cast %9 : vector<1x128x128xbf16> to vector<128x128xbf16>
    %cst_13 = arith.constant dense<0.000000e+00> : vector<16x128xf32>
    %11 = tpu.matmul %8, %10, %cst_13 {dimension_numbers = #tpu.dot_dimension_numbers<[1], [0], [0], [1], [0, 0, 1, 1], [], []>} : vector<16x128xbf16>, vector<128x128xbf16>, vector<16x128xf32> -> vector<16x128xf32>
    %12 = arith.addf %6, %11 : vector<16x128xf32>
    %c0_14 = arith.constant 0 : index
    %c0_15 = arith.constant 0 : index
    %c2 = arith.constant 2 : index
    %c0_16 = arith.constant 0 : index
    %13 = vector.load %arg2[%c0_14, %c0_15, %c2, %c0_16] : memref<1x1x18x128xbf16, #tpu.memory_space<vmem>>, vector<1x1x16x128xbf16>
    %14 = vector.shape_cast %13 : vector<1x1x16x128xbf16> to vector<16x128xbf16>
    %c2_17 = arith.constant 2 : index
    %c0_18 = arith.constant 0 : index
    %c0_19 = arith.constant 0 : index
    %15 = vector.load %arg5[%c2_17, %c0_18, %c0_19] : memref<9x128x128xbf16, #tpu.memory_space<vmem>>, vector<1x128x128xbf16>
    %16 = vector.shape_cast %15 : vector<1x128x128xbf16> to vector<128x128xbf16>
    %cst_20 = arith.constant dense<0.000000e+00> : vector<16x128xf32>
    %17 = tpu.matmul %14, %16, %cst_20 {dimension_numbers = #tpu.dot_dimension_numbers<[1], [0], [0], [1], [0, 0, 1, 1], [], []>} : vector<16x128xbf16>, vector<128x128xbf16>, vector<16x128xf32> -> vector<16x128xf32>
    %18 = arith.addf %12, %17 : vector<16x128xf32>
    %c0_21 = arith.constant 0 : index
    %c0_22 = arith.constant 0 : index
    %c0_23 = arith.constant 0 : index
    %c0_24 = arith.constant 0 : index
    %19 = vector.load %arg3[%c0_21, %c0_22, %c0_23, %c0_24] : memref<1x1x18x128xbf16, #tpu.memory_space<vmem>>, vector<1x1x16x128xbf16>
    %20 = vector.shape_cast %19 : vector<1x1x16x128xbf16> to vector<16x128xbf16>
    %c3 = arith.constant 3 : index
    %c0_25 = arith.constant 0 : index
    %c0_26 = arith.constant 0 : index
    %21 = vector.load %arg5[%c3, %c0_25, %c0_26] : memref<9x128x128xbf16, #tpu.memory_space<vmem>>, vector<1x128x128xbf16>
    %22 = vector.shape_cast %21 : vector<1x128x128xbf16> to vector<128x128xbf16>
    %cst_27 = arith.constant dense<0.000000e+00> : vector<16x128xf32>
    %23 = tpu.matmul %20, %22, %cst_27 {dimension_numbers = #tpu.dot_dimension_numbers<[1], [0], [0], [1], [0, 0, 1, 1], [], []>} : vector<16x128xbf16>, vector<128x128xbf16>, vector<16x128xf32> -> vector<16x128xf32>
    %24 = arith.addf %18, %23 : vector<16x128xf32>
    %c0_28 = arith.constant 0 : index
    %c0_29 = arith.constant 0 : index
    %c1_30 = arith.constant 1 : index
    %c0_31 = arith.constant 0 : index
    %25 = vector.load %arg3[%c0_28, %c0_29, %c1_30, %c0_31] : memref<1x1x18x128xbf16, #tpu.memory_space<vmem>>, vector<1x1x16x128xbf16>
    %26 = vector.shape_cast %25 : vector<1x1x16x128xbf16> to vector<16x128xbf16>
    %c4 = arith.constant 4 : index
    %c0_32 = arith.constant 0 : index
    %c0_33 = arith.constant 0 : index
    %27 = vector.load %arg5[%c4, %c0_32, %c0_33] : memref<9x128x128xbf16, #tpu.memory_space<vmem>>, vector<1x128x128xbf16>
    %28 = vector.shape_cast %27 : vector<1x128x128xbf16> to vector<128x128xbf16>
    %cst_34 = arith.constant dense<0.000000e+00> : vector<16x128xf32>
    %29 = tpu.matmul %26, %28, %cst_34 {dimension_numbers = #tpu.dot_dimension_numbers<[1], [0], [0], [1], [0, 0, 1, 1], [], []>} : vector<16x128xbf16>, vector<128x128xbf16>, vector<16x128xf32> -> vector<16x128xf32>
    %30 = arith.addf %24, %29 : vector<16x128xf32>
    %c0_35 = arith.constant 0 : index
    %c0_36 = arith.constant 0 : index
    %c2_37 = arith.constant 2 : index
    %c0_38 = arith.constant 0 : index
    %31 = vector.load %arg3[%c0_35, %c0_36, %c2_37, %c0_38] : memref<1x1x18x128xbf16, #tpu.memory_space<vmem>>, vector<1x1x16x128xbf16>
    %32 = vector.shape_cast %31 : vector<1x1x16x128xbf16> to vector<16x128xbf16>
    %c5 = arith.constant 5 : index
    %c0_39 = arith.constant 0 : index
    %c0_40 = arith.constant 0 : index
    %33 = vector.load %arg5[%c5, %c0_39, %c0_40] : memref<9x128x128xbf16, #tpu.memory_space<vmem>>, vector<1x128x128xbf16>
    %34 = vector.shape_cast %33 : vector<1x128x128xbf16> to vector<128x128xbf16>
    %cst_41 = arith.constant dense<0.000000e+00> : vector<16x128xf32>
    %35 = tpu.matmul %32, %34, %cst_41 {dimension_numbers = #tpu.dot_dimension_numbers<[1], [0], [0], [1], [0, 0, 1, 1], [], []>} : vector<16x128xbf16>, vector<128x128xbf16>, vector<16x128xf32> -> vector<16x128xf32>
    %36 = arith.addf %30, %35 : vector<16x128xf32>
    %c0_42 = arith.constant 0 : index
    %c0_43 = arith.constant 0 : index
    %c0_44 = arith.constant 0 : index
    %c0_45 = arith.constant 0 : index
    %37 = vector.load %arg4[%c0_42, %c0_43, %c0_44, %c0_45] : memref<1x1x18x128xbf16, #tpu.memory_space<vmem>>, vector<1x1x16x128xbf16>
    %38 = vector.shape_cast %37 : vector<1x1x16x128xbf16> to vector<16x128xbf16>
    %c6 = arith.constant 6 : index
    %c0_46 = arith.constant 0 : index
    %c0_47 = arith.constant 0 : index
    %39 = vector.load %arg5[%c6, %c0_46, %c0_47] : memref<9x128x128xbf16, #tpu.memory_space<vmem>>, vector<1x128x128xbf16>
    %40 = vector.shape_cast %39 : vector<1x128x128xbf16> to vector<128x128xbf16>
    %cst_48 = arith.constant dense<0.000000e+00> : vector<16x128xf32>
    %41 = tpu.matmul %38, %40, %cst_48 {dimension_numbers = #tpu.dot_dimension_numbers<[1], [0], [0], [1], [0, 0, 1, 1], [], []>} : vector<16x128xbf16>, vector<128x128xbf16>, vector<16x128xf32> -> vector<16x128xf32>
    %42 = arith.addf %36, %41 : vector<16x128xf32>
    %c0_49 = arith.constant 0 : index
    %c0_50 = arith.constant 0 : index
    %c1_51 = arith.constant 1 : index
    %c0_52 = arith.constant 0 : index
    %43 = vector.load %arg4[%c0_49, %c0_50, %c1_51, %c0_52] : memref<1x1x18x128xbf16, #tpu.memory_space<vmem>>, vector<1x1x16x128xbf16>
    %44 = vector.shape_cast %43 : vector<1x1x16x128xbf16> to vector<16x128xbf16>
    %c7 = arith.constant 7 : index
    %c0_53 = arith.constant 0 : index
    %c0_54 = arith.constant 0 : index
    %45 = vector.load %arg5[%c7, %c0_53, %c0_54] : memref<9x128x128xbf16, #tpu.memory_space<vmem>>, vector<1x128x128xbf16>
    %46 = vector.shape_cast %45 : vector<1x128x128xbf16> to vector<128x128xbf16>
    %cst_55 = arith.constant dense<0.000000e+00> : vector<16x128xf32>
    %47 = tpu.matmul %44, %46, %cst_55 {dimension_numbers = #tpu.dot_dimension_numbers<[1], [0], [0], [1], [0, 0, 1, 1], [], []>} : vector<16x128xbf16>, vector<128x128xbf16>, vector<16x128xf32> -> vector<16x128xf32>
    %48 = arith.addf %42, %47 : vector<16x128xf32>
    %c0_56 = arith.constant 0 : index
    %c0_57 = arith.constant 0 : index
    %c2_58 = arith.constant 2 : index
    %c0_59 = arith.constant 0 : index
    %49 = vector.load %arg4[%c0_56, %c0_57, %c2_58, %c0_59] : memref<1x1x18x128xbf16, #tpu.memory_space<vmem>>, vector<1x1x16x128xbf16>
    %50 = vector.shape_cast %49 : vector<1x1x16x128xbf16> to vector<16x128xbf16>
    %c8 = arith.constant 8 : index
    %c0_60 = arith.constant 0 : index
    %c0_61 = arith.constant 0 : index
    %51 = vector.load %arg5[%c8, %c0_60, %c0_61] : memref<9x128x128xbf16, #tpu.memory_space<vmem>>, vector<1x128x128xbf16>
    %52 = vector.shape_cast %51 : vector<1x128x128xbf16> to vector<128x128xbf16>
    %cst_62 = arith.constant dense<0.000000e+00> : vector<16x128xf32>
    %53 = tpu.matmul %50, %52, %cst_62 {dimension_numbers = #tpu.dot_dimension_numbers<[1], [0], [0], [1], [0, 0, 1, 1], [], []>} : vector<16x128xbf16>, vector<128x128xbf16>, vector<16x128xf32> -> vector<16x128xf32>
    %54 = arith.addf %48, %53 : vector<16x128xf32>
    %c0_63 = arith.constant 0 : index
    %c0_64 = arith.constant 0 : index
    %55 = vector.load %arg6[%c0_63, %c0_64] : memref<1x128xf32, #tpu.memory_space<vmem>>, vector<1x128xf32>
    %56 = vector.broadcast %55 : vector<1x128xf32> to vector<16x128xf32>
    %57 = arith.addf %54, %56 : vector<16x128xf32>
    %c0_65 = arith.constant 0 : index
    %c0_66 = arith.constant 0 : index
    %c0_67 = arith.constant 0 : index
    %c0_68 = arith.constant 0 : index
    %58 = vector.load %arg7[%c0_65, %c0_66, %c0_67, %c0_68] : memref<1x1x16x128xbf16, #tpu.memory_space<vmem>>, vector<1x1x16x128xbf16>
    %59 = vector.shape_cast %58 : vector<1x1x16x128xbf16> to vector<16x128xbf16>
    %60 = arith.extf %59 : vector<16x128xbf16> to vector<16x128xf32>
    %cst_69 = arith.constant 5.000000e-01 : f32
    %61 = vector.broadcast %cst_69 : f32 to vector<16x128xf32>
    %62 = arith.mulf %61, %60 : vector<16x128xf32>
    %63 = math.tanh %62 : vector<16x128xf32>
    %cst_70 = arith.constant 1.000000e+00 : f32
    %64 = vector.broadcast %cst_70 : f32 to vector<16x128xf32>
    %65 = arith.addf %63, %64 : vector<16x128xf32>
    %cst_71 = arith.constant 5.000000e-01 : f32
    %66 = vector.broadcast %cst_71 : f32 to vector<16x128xf32>
    %67 = arith.mulf %66, %65 : vector<16x128xf32>
    %68 = arith.mulf %67, %57 : vector<16x128xf32>
    %c0_72 = arith.constant 0 : index
    %c0_73 = arith.constant 0 : index
    %c0_74 = arith.constant 0 : index
    %c0_75 = arith.constant 0 : index
    %69 = vector.load %arg8[%c0_72, %c0_73, %c0_74, %c0_75] : memref<1x1x16x128xf32, #tpu.memory_space<vmem>>, vector<1x1x16x128xf32>
    %70 = vector.shape_cast %69 : vector<1x1x16x128xf32> to vector<16x128xf32>
    %71 = arith.addf %68, %70 : vector<16x128xf32>
    %c0_76 = arith.constant 0 : index
    %c0_77 = arith.constant 0 : index
    %c0_78 = arith.constant 0 : index
    %c0_79 = arith.constant 0 : index
    %72 = vector.load %arg9[%c0_76, %c0_77, %c0_78, %c0_79] : memref<1x1x16x128xf32, #tpu.memory_space<vmem>>, vector<1x1x16x128xf32>
    %73 = vector.shape_cast %72 : vector<1x1x16x128xf32> to vector<16x128xf32>
    %74 = vector.shape_cast %71 : vector<16x128xf32> to vector<1x1x16x128xf32>
    tpu.vector_store %arg9[%c0_76, %c0_77, %c0_78, %c0_79], %74 {strides = array<i32>} : memref<1x1x16x128xf32, #tpu.memory_space<vmem>>, vector<1x1x16x128xf32>,
    return
  }
  func.func @transform_0(%arg0: i32, %arg1: i32) -> (i32, i32, i32, i32) {
    %c0_i32 = arith.constant 0 : i32
    %c0_i32_0 = arith.constant 0 : i32
    %c0_i32_1 = arith.constant 0 : i32
    return %arg0, %arg1, %c0_i32, %c0_i32_0 : i32, i32, i32, i32
  }
  func.func @transform_1(%arg0: i32, %arg1: i32) -> (i32, i32, i32, i32) {
    %c1_i32 = arith.constant 1 : i32
    %0 = arith.addi %arg1, %c1_i32 : i32
    %c0_i32 = arith.constant 0 : i32
    %c0_i32_0 = arith.constant 0 : i32
    %c0_i32_1 = arith.constant 0 : i32
    return %arg0, %0, %c0_i32, %c0_i32_0 : i32, i32, i32, i32
  }
  func.func @transform_2(%arg0: i32, %arg1: i32) -> (i32, i32, i32, i32) {
    %c2_i32 = arith.constant 2 : i32
    %0 = arith.addi %arg1, %c2_i32 : i32
    %c0_i32 = arith.constant 0 : i32
    %c0_i32_0 = arith.constant 0 : i32
    %c0_i32_1 = arith.constant 0 : i32
    return %arg0, %0, %c0_i32, %c0_i32_0 : i32, i32, i32, i32
  }
  func.func @transform_3(%arg0: i32, %arg1: i32) -> (i32, i32, i32) {
    %c0_i32 = arith.constant 0 : i32
    %c0_i32_0 = arith.constant 0 : i32
    %c0_i32_1 = arith.constant 0 : i32
    %c0_i32_2 = arith.constant 0 : i32
    return %c0_i32, %c0_i32_0, %c0_i32_1 : i32, i32, i32
  }
  func.func @transform_4(%arg0: i32, %arg1: i32) -> (i32, i32) {
    %c0_i32 = arith.constant 0 : i32
    %c0_i32_0 = arith.constant 0 : i32
    %c0_i32_1 = arith.constant 0 : i32
    return %c0_i32, %c0_i32_0 : i32, i32
  }
  func.func @transform_5(%arg0: i32, %arg1: i32) -> (i32, i32, i32, i32) {
    %c0_i32 = arith.constant 0 : i32
    %c0_i32_0 = arith.constant 0 : i32
    %c0_i32_1 = arith.constant 0 : i32
    return %arg0, %arg1, %c0_i32, %c0_i32_0 : i32, i32, i32, i32
  }
  func.func @transform_6(%arg0: i32, %arg1: i32) -> (i32, i32, i32, i32) {
    %c0_i32 = arith.constant 0 : i32
    %c0_i32_0 = arith.constant 0 : i32
    %c0_i32_1 = arith.constant 0 : i32
    return %arg0, %arg1, %c0_i32, %c0_i32_0 : i32, i32, i32, i32
  }
  func.func @transform_7(%arg0: i32, %arg1: i32) -> (i32, i32, i32, i32) {
    %c0_i32 = arith.constant 0 : i32
    %c0_i32_0 = arith.constant 0 : i32
    %c0_i32_1 = arith.constant 0 : i32
    return %arg0, %arg1, %c0_i32, %c0_i32_0 : i32, i32, i32, i32
  }
}

</mosaic_0001>

<llo_original>
// kernel: tile.18
$region0: #{tile.18}
  #allocation0 [shape = 's32[1]{0}', space=sflag, size = 0x4, scoped, tag = 'scoped memory for tile.18']
  %s0 = inlined_call_operand.vmem [shape: f32[8], index: 0, kind: input, shape index: {}]
  %s1 = inlined_call_operand.vmem [shape: f32[16,8], index: 1, kind: output, shape index: {}]
  // Predicated region
  $region2: #{tile.18} parent=0 // pred_check
    _
  $region3: #{tile.18} parent=0 // pred_check_branch
    %3 = sbr.rel (0) target = $region5
  $region4: #{tile.18} parent=0 // pred_region
    _
  $region5: #{tile.18} parent=0 // pred_fallthru
    _
  %v4 = vld [vmem:[%s0] ss:$0 sm:$0xff]
  %5 = vst [vmem:[%s1] sm:$0xff] %v4
  %s6 = scalar_lea.vmem %s1, 8
  %7 = vst [vmem:[%s6] sm:$0xff] %v4

// kernel: tile.19
$region0: #{tile.19}
  %s0 = inlined_call_operand.vmem [shape: f32[16,8], index: 0, kind: input, shape index: {}]
  %s1 = inlined_call_operand.vmem [shape: f32[1,128], index: 1, kind: output, shape index: {}]
  $region1: #{tile.19} parent=0
    #allocation0 [shape = 'u8[4096]{0}', space=vmem, size = 0x1000, scoped, tag = 'scoped mem for output reshape']
    %v2 = vld [vmem:[%s0] sm:$0x1]
    %vm3 = vcmask 64512
    %4 = vst.msk [vmem:[#allocation0] sm:$0x1] %vm3, %v2
    %s5 = scalar_lea.vmem %s0, 15
    %v6 = vld [vmem:[%s5] sm:$0x1]
    %7 = vrot.lane.b32.xlu0 %v6, 120
    %v8 = vpop.permute.xlu0 %7
    %vm9 = vcmask 1048512
    %10 = vst.msk [vmem:[#allocation0] sm:$0x1] %vm9, %v8
    %s11 = scalar_lea.vmem %s0, 14
    %v12 = vld [vmem:[%s11] sm:$0x1]
    %13 = vrot.lane.b32.xlu0 %v12, 112
    %v14 = vpop.permute.xlu0 %13
    %vm15 = vcmask 982912
    %16 = vst.msk [vmem:[#allocation0] sm:$0x1] %vm15, %v14
    %s17 = scalar_lea.vmem %s0, 13
    %v18 = vld [vmem:[%s17] sm:$0x1]
    %19 = vrot.lane.b32.xlu0 %v18, 104
    %v20 = vpop.permute.xlu0 %19
    %vm21 = vcmask 917312
    %22 = vst.msk [vmem:[#allocation0] sm:$0x1] %vm21, %v20
    %s23 = scalar_lea.vmem %s0, 12
    %v24 = vld [vmem:[%s23] sm:$0x1]
    %25 = vrot.lane.b32.xlu0 %v24, 96
    %v26 = vpop.permute.xlu0 %25
    %vm27 = vcmask 851712
    %28 = vst.msk [vmem:[#allocation0] sm:$0x1] %vm27, %v26
    %s29 = scalar_lea.vmem %s0, 11
    %v30 = vld [vmem:[%s29] sm:$0x1]
    %31 = vrot.lane.b32.xlu0 %v30, 88
    %v32 = vpop.permute.xlu0 %31
    %vm33 = vcmask 786112
    %34 = vst.msk [vmem:[#allocation0] sm:$0x1] %vm33, %v32
    %s35 = scalar_lea.vmem %s0, 10
    %v36 = vld [vmem:[%s35] sm:$0x1]
    %37 = vrot.lane.b32.xlu0 %v36, 80
    %v38 = vpop.permute.xlu0 %37
    %vm39 = vcmask 720512
    %40 = vst.msk [vmem:[#allocation0] sm:$0x1] %vm39, %v38
    %s41 = scalar_lea.vmem %s0, 9
    %v42 = vld [vmem:[%s41] sm:$0x1]
    %43 = vrot.lane.b32.xlu0 %v42, 72
    %v44 = vpop.permute.xlu0 %43
    %vm45 = vcmask 654912
    %46 = vst.msk [vmem:[#allocation0] sm:$0x1] %vm45, %v44
    %s47 = scalar_lea.vmem %s0, 8
    %v48 = vld [vmem:[%s47] sm:$0x1]
    %49 = vrot.lane.b32.xlu0 %v48, 64
    %v50 = vpop.permute.xlu0 %49
    %vm51 = vcmask 589312
    %52 = vst.msk [vmem:[#allocation0] sm:$0x1] %vm51, %v50
    %s53 = scalar_lea.vmem %s0, 7
    %v54 = vld [vmem:[%s53] sm:$0x1]
    %55 = vrot.lane.b32.xlu0 %v54, 56
    %v56 = vpop.permute.xlu0 %55
    %vm57 = vcmask 523712
    %58 = vst.msk [vmem:[#allocation0] sm:$0x1] %vm57, %v56
    %s59 = scalar_lea.vmem %s0, 6
    %v60 = vld [vmem:[%s59] sm:$0x1]
    %61 = vrot.lane.b32.xlu0 %v60, 48
    %v62 = vpop.permute.xlu0 %61
    %vm63 = vcmask 458112
    %64 = vst.msk [vmem:[#allocation0] sm:$0x1] %vm63, %v62
    %s65 = scalar_lea.vmem %s0, 5
    %v66 = vld [vmem:[%s65] sm:$0x1]
    %67 = vrot.lane.b32.xlu0 %v66, 40
    %v68 = vpop.permute.xlu0 %67
    %vm69 = vcmask 392512
    %70 = vst.msk [vmem:[#allocation0] sm:$0x1] %vm69, %v68
    %s71 = scalar_lea.vmem %s0, 4
    %v72 = vld [vmem:[%s71] sm:$0x1]
    %73 = vrot.lane.b32.xlu0 %v72, 32
    %v74 = vpop.permute.xlu0 %73
    %vm75 = vcmask 326912
    %76 = vst.msk [vmem:[#allocation0] sm:$0x1] %vm75, %v74
    %s77 = scalar_lea.vmem %s0, 3
    %v78 = vld [vmem:[%s77] sm:$0x1]
    %79 = vrot.lane.b32.xlu0 %v78, 24
    %v80 = vpop.permute.xlu0 %79
    %vm81 = vcmask 261312
    %82 = vst.msk [vmem:[#allocation0] sm:$0x1] %vm81, %v80
    %s83 = scalar_lea.vmem %s0, 2
    %v84 = vld [vmem:[%s83] sm:$0x1]
    %85 = vrot.lane.b32.xlu0 %v84, 16
    %v86 = vpop.permute.xlu0 %85
    %vm87 = vcmask 195712
    %88 = vst.msk [vmem:[#allocation0] sm:$0x1] %vm87, %v86
    %s89 = scalar_lea.vmem %s0, 1
    %v90 = vld [vmem:[%s89] sm:$0x1]
    %91 = vrot.lane.b32.xlu0 %v90, 8
    %v92 = vpop.permute.xlu0 %91
    %vm93 = vcmask 130112
    %94 = vst.msk [vmem:[#allocation0] sm:$0x1] %vm93, %v92
    %s96 = sshllo.u32 0, 1
    %v98 = vld [vmem:[#allocation0] sm:%s96]
    %s99 = sshllo.u32 0, 1
    %100 = vst [vmem:[%s1] sm:%s99] %v98

// kernel: gated3d_block_forward.2
$region0: #{gated3d_block_forward.2}
  #allocation0 [shape = 'u32[]', space=smem, size = 0x4, offset = 0x4, fixed_abs, tag = 'smem constant byte address 0x4 - core index']
  #allocation1 [shape = 'u32[144,128]{1,0:T(1,128)}', space=vmem, size = 0x12000, scoped, tag = 'internal scratch']
  %s0 = inlined_call_operand.vmem [shape: bf16[2,6,18,128], index: 0, kind: input, shape index: {}, may-alias: {0,1,2}]
  %s1 = inlined_call_operand.vmem [shape: bf16[2,6,18,128], index: 1, kind: input, shape index: {}, may-alias: {0,1,2}]
  %s2 = inlined_call_operand.vmem [shape: bf16[2,6,18,128], index: 2, kind: input, shape index: {}, may-alias: {0,1,2}]
  %s3 = inlined_call_operand.vmem [shape: bf16[9,128,128], index: 3, kind: input, shape index: {}]
  %s4 = inlined_call_operand.vmem [shape: bf16[128,128], index: 4, kind: input, shape index: {}]
  %s5 = inlined_call_operand.vmem [shape: f32[1,128], index: 5, kind: input, shape index: {}]
  %s6 = inlined_call_operand.vmem [shape: f32[1,128], index: 6, kind: input, shape index: {}]
  %s7 = inlined_call_operand.vmem [shape: bf16[2,4,16,128], index: 7, kind: output, shape index: {0}]
  %s8 = inlined_call_operand.vmem [shape: bf16[2,4,16,128], index: 8, kind: output, shape index: {1}]
  %9 = xla_tuple %s7, %s8
  %s10 = sld [smem:[#allocation0]]
  $region69: #{gated3d_block_forward.2} parent=0
    _
  %s12 = ssub.s32 1, %s10
  %s13 = scalar_select 0, %s12, %s10
  loop: start=0, step=1, limit=10
  $region2: #{gated3d_block_forward.2} parent=0 // loop_pre_header
    _
  $region3: #{gated3d_block_forward.2} parent=0 // loop_header
    %s15 = sphi 0, %s19
    %p16 = scmp.ge.s32.totalorder %s15, 10
    %s22 = sphi 0, %s34
    %s23 = sphi 0, %s30
    %s24 = sphi 0, %s22
    %s25 = sphi 0, %s23
    %s26 = sphi 0, %s24
    %s27 = sphi 0, %s25
    %s39 = sphi 0, %s41
    %s42 = sphi 0, %s39
    %s43 = sphi 0, %s42
    %s59 = sphi 0, %s43
    %s69 = sphi 0, %s71
    %s72 = sphi 0, %s69
    %s73 = sphi 0, %s72
    %s89 = sphi 0, %s73
    %s99 = sphi 0, %s101
    %s102 = sphi 0, %s99
    %s103 = sphi 0, %s102
    %s119 = sphi 0, %s103
    %s123 = sphi 0, %s123
    %s125 = sphi 0, %s123
    %s126 = sphi 0, %s125
    %s140 = sphi 0, %s126
    %s144 = sphi 0, %s144
    %s146 = sphi 0, %s144
    %s147 = sphi 0, %s146
    %s161 = sphi 0, %s147
    %s165 = sphi 0, %s165
    %s167 = sphi 0, %s165
    %s168 = sphi 0, %s167
    %s182 = sphi 0, %s168
    %s186 = sphi 0, %s186
    %s188 = sphi 0, %s186
    %s189 = sphi 0, %s188
    %s203 = sphi 0, %s189
    %s211 = sphi 0, %s213
    %s214 = sphi 0, %s211
    %s215 = sphi 0, %s214
    %s231 = sphi 0, %s215
    %s239 = sphi 0, %s241
    %s242 = sphi 0, %s239
    %s243 = sphi 0, %s242
    %s259 = sphi 0, %s243
  $region4: #{gated3d_block_forward.2} parent=0 // loop_header_branch
    %18 = sbr.rel (%p16) target = $region8
  $region5: #{gated3d_block_forward.2} parent=0 // loop_body
    %s20 = ssub.s32 %s15, 1
    %s21 = ssub.s32 %s15, 2
    %s28 = sadd.s32 1, %s23
    %p29 = scmp.ge.s32.totalorder %s28, 4
    %s30 = scalar_select %p29, 0, %s28
    %s31 = sadd.s32 1, %s22
    %s32 = scalar_select %p29, %s31, %s22
    %p33 = scmp.ge.s32.totalorder %s32, 2
    %s34 = scalar_select %p33, 0, %s32
    %s35 = ssub.s32 %s22, %s34
    %s36 = ssub.s32 %s23, %s30
    %s37 = sor.u32 %s35, %s36
    %p38 = scmp.eq.s32.totalorder %s37, 0
    %s40 = sadd.s32 %s39, 1
    %s41 = scalar_select %p38, %s39, %s40
    %p44 = pneg %p38
    %p45 = scmp.eq.s32.totalorder %s15, 7
    %p46 = por %p44, %p45
    %p47 = scmp.ne.s32.totalorder %s39, %s42
    %p48 = scmp.eq.s32.totalorder %s15, 0
    %p49 = por %p47, %p48
    %p50 = scmp.ne.s32.totalorder %s39, %s42
    %p51 = scmp.eq.s32.totalorder %s20, 7
    %p52 = por %p50, %p51
    %p53 = scmp.ne.s32.totalorder %s42, %s43
    %p54 = scmp.eq.s32.totalorder %s20, 0
    %p55 = por %p53, %p54
    %p56 = scmp.ne.s32.totalorder %s42, %s43
    %p57 = scmp.eq.s32.totalorder %s21, 7
    %p58 = por %p56, %p57
    %p60 = scmp.ne.s32.totalorder %s43, %s59
    %p61 = scmp.eq.s32.totalorder %s21, 0
    %p62 = por %p60, %p61
    %s63 = sadd.s32 %s23, 1
    %s64 = sadd.s32 %s30, 1
    %s65 = ssub.s32 %s22, %s34
    %s66 = ssub.s32 %s63, %s64
    %s67 = sor.u32 %s65, %s66
    %p68 = scmp.eq.s32.totalorder %s67, 0
    %s70 = sadd.s32 %s69, 1
    %s71 = scalar_select %p68, %s69, %s70
    %p74 = pneg %p68
    %p75 = scmp.eq.s32.totalorder %s15, 7
    %p76 = por %p74, %p75
    %p77 = scmp.ne.s32.totalorder %s69, %s72
    %p78 = scmp.eq.s32.totalorder %s15, 0
    %p79 = por %p77, %p78
    %p80 = scmp.ne.s32.totalorder %s69, %s72
    %p81 = scmp.eq.s32.totalorder %s20, 7
    %p82 = por %p80, %p81
    %p83 = scmp.ne.s32.totalorder %s72, %s73
    %p84 = scmp.eq.s32.totalorder %s20, 0
    %p85 = por %p83, %p84
    %p86 = scmp.ne.s32.totalorder %s72, %s73
    %p87 = scmp.eq.s32.totalorder %s21, 7
    %p88 = por %p86, %p87
    %p90 = scmp.ne.s32.totalorder %s73, %s89
    %p91 = scmp.eq.s32.totalorder %s21, 0
    %p92 = por %p90, %p91
    %s93 = sadd.s32 %s23, 2
    %s94 = sadd.s32 %s30, 2
    %s95 = ssub.s32 %s22, %s34
    %s96 = ssub.s32 %s93, %s94
    %s97 = sor.u32 %s95, %s96
    %p98 = scmp.eq.s32.totalorder %s97, 0
    %s100 = sadd.s32 %s99, 1
    %s101 = scalar_select %p98, %s99, %s100
    %p104 = pneg %p98
    %p105 = scmp.eq.s32.totalorder %s15, 7
    %p106 = por %p104, %p105
    %p107 = scmp.ne.s32.totalorder %s99, %s102
    %p108 = scmp.eq.s32.totalorder %s15, 0
    %p109 = por %p107, %p108
    %p110 = scmp.ne.s32.totalorder %s99, %s102
    %p111 = scmp.eq.s32.totalorder %s20, 7
    %p112 = por %p110, %p111
    %p113 = scmp.ne.s32.totalorder %s102, %s103
    %p114 = scmp.eq.s32.totalorder %s20, 0
    %p115 = por %p113, %p114
    %p116 = scmp.ne.s32.totalorder %s102, %s103
    %p117 = scmp.eq.s32.totalorder %s21, 7
    %p118 = por %p116, %p117
    %p120 = scmp.ne.s32.totalorder %s103, %s119
    %p121 = scmp.eq.s32.totalorder %s21, 0
    %p122 = por %p120, %p121
    %s124 = sadd.s32 %s123, 1
    %p127 = scmp.eq.s32.totalorder %s15, 7
    %p128 = scmp.ne.s32.totalorder %s123, %s125
    %p129 = scmp.eq.s32.totalorder %s15, 0
    %p130 = por %p128, %p129
    %p131 = scmp.ne.s32.totalorder %s123, %s125
    %p132 = scmp.eq.s32.totalorder %s20, 7
    %p133 = por %p131, %p132
    %p134 = scmp.ne.s32.totalorder %s125, %s126
    %p135 = scmp.eq.s32.totalorder %s20, 0
    %p136 = por %p134, %p135
    %p137 = scmp.ne.s32.totalorder %s125, %s126
    %p138 = scmp.eq.s32.totalorder %s21, 7
    %p139 = por %p137, %p138
    %p141 = scmp.ne.s32.totalorder %s126, %s140
    %p142 = scmp.eq.s32.totalorder %s21, 0
    %p143 = por %p141, %p142
    %s145 = sadd.s32 %s144, 1
    %p148 = scmp.eq.s32.totalorder %s15, 7
    %p149 = scmp.ne.s32.totalorder %s144, %s146
    %p150 = scmp.eq.s32.totalorder %s15, 0
    %p151 = por %p149, %p150
    %p152 = scmp.ne.s32.totalorder %s144, %s146
    %p153 = scmp.eq.s32.totalorder %s20, 7
    %p154 = por %p152, %p153
    %p155 = scmp.ne.s32.totalorder %s146, %s147
    %p156 = scmp.eq.s32.totalorder %s20, 0
    %p157 = por %p155, %p156
    %p158 = scmp.ne.s32.totalorder %s146, %s147
    %p159 = scmp.eq.s32.totalorder %s21, 7
    %p160 = por %p158, %p159
    %p162 = scmp.ne.s32.totalorder %s147, %s161
    %p163 = scmp.eq.s32.totalorder %s21, 0
    %p164 = por %p162, %p163
    %s166 = sadd.s32 %s165, 1
    %p169 = scmp.eq.s32.totalorder %s15, 7
    %p170 = scmp.ne.s32.totalorder %s165, %s167
    %p171 = scmp.eq.s32.totalorder %s15, 0
    %p172 = por %p170, %p171
    %p173 = scmp.ne.s32.totalorder %s165, %s167
    %p174 = scmp.eq.s32.totalorder %s20, 7
    %p175 = por %p173, %p174
    %p176 = scmp.ne.s32.totalorder %s167, %s168
    %p177 = scmp.eq.s32.totalorder %s20, 0
    %p178 = por %p176, %p177
    %p179 = scmp.ne.s32.totalorder %s167, %s168
    %p180 = scmp.eq.s32.totalorder %s21, 7
    %p181 = por %p179, %p180
    %p183 = scmp.ne.s32.totalorder %s168, %s182
    %p184 = scmp.eq.s32.totalorder %s21, 0
    %p185 = por %p183, %p184
    %s187 = sadd.s32 %s186, 1
    %p190 = scmp.eq.s32.totalorder %s15, 7
    %p191 = scmp.ne.s32.totalorder %s186, %s188
    %p192 = scmp.eq.s32.totalorder %s15, 0
    %p193 = por %p191, %p192
    %p194 = scmp.ne.s32.totalorder %s186, %s188
    %p195 = scmp.eq.s32.totalorder %s20, 7
    %p196 = por %p194, %p195
    %p197 = scmp.ne.s32.totalorder %s188, %s189
    %p198 = scmp.eq.s32.totalorder %s20, 0
    %p199 = por %p197, %p198
    %p200 = scmp.ne.s32.totalorder %s188, %s189
    %p201 = scmp.eq.s32.totalorder %s21, 7
    %p202 = por %p200, %p201
    %p204 = scmp.ne.s32.totalorder %s189, %s203
    %p205 = scmp.eq.s32.totalorder %s21, 0
    %p206 = por %p204, %p205
    %s207 = ssub.s32 %s22, %s34
    %s208 = ssub.s32 %s23, %s30
    %s209 = sor.u32 %s207, %s208
    %p210 = scmp.eq.s32.totalorder %s209, 0
    %s212 = sadd.s32 %s211, 1
    %s213 = scalar_select %p210, %s211, %s212
    %p216 = pneg %p210
    %p217 = scmp.eq.s32.totalorder %s15, 7
    %p218 = por %p216, %p217
    %p219 = scmp.ne.s32.totalorder %s211, %s214
    %p220 = scmp.eq.s32.totalorder %s15, 0
    %p221 = por %p219, %p220
    %p222 = scmp.ne.s32.totalorder %s211, %s214
    %p223 = scmp.eq.s32.totalorder %s20, 7
    %p224 = por %p222, %p223
    %p225 = scmp.ne.s32.totalorder %s214, %s215
    %p226 = scmp.eq.s32.totalorder %s20, 0
    %p227 = por %p225, %p226
    %p228 = scmp.ne.s32.totalorder %s214, %s215
    %p229 = scmp.eq.s32.totalorder %s21, 7
    %p230 = por %p228, %p229
    %p232 = scmp.ne.s32.totalorder %s215, %s231
    %p233 = scmp.eq.s32.totalorder %s21, 0
    %p234 = por %p232, %p233
    %s235 = ssub.s32 %s22, %s34
    %s236 = ssub.s32 %s23, %s30
    %s237 = sor.u32 %s235, %s236
    %p238 = scmp.eq.s32.totalorder %s237, 0
    %s240 = sadd.s32 %s239, 1
    %s241 = scalar_select %p238, %s239, %s240
    %p244 = pneg %p238
    %p245 = scmp.eq.s32.totalorder %s15, 7
    %p246 = por %p244, %p245
    %p247 = scmp.ne.s32.totalorder %s239, %s242
    %p248 = scmp.eq.s32.totalorder %s15, 0
    %p249 = por %p247, %p248
    %p250 = scmp.ne.s32.totalorder %s239, %s242
    %p251 = scmp.eq.s32.totalorder %s20, 7
    %p252 = por %p250, %p251
    %p253 = scmp.ne.s32.totalorder %s242, %s243
    %p254 = scmp.eq.s32.totalorder %s20, 0
    %p255 = por %p253, %p254
    %p256 = scmp.ne.s32.totalorder %s242, %s243
    %p257 = scmp.eq.s32.totalorder %s21, 7
    %p258 = por %p256, %p257
    %p260 = scmp.ne.s32.totalorder %s243, %s259
    %p261 = scmp.eq.s32.totalorder %s21, 0
    %p262 = por %p260, %p261
    %p263 = scmp.le.s32.totalorder 1, %s15
    %p264 = scmp.lt.s32.totalorder %s15, 9
    %p265 = pnand %p263, %p264
    %p266 = pneg %p265
    // Predicated region
    $region9: #{gated3d_block_forward.2} parent=5 // pred_check
      _
    $region10: #{gated3d_block_forward.2} parent=5 // pred_check_branch
      %268 = sbr.rel (%p265) target = $region12
    $region11: #{gated3d_block_forward.2} parent=5 // pred_region
      %s269 = ssub.s32 %s15, 1
      // Predicated region
      $region13: #{gated3d_block_forward.2} parent=11 // pred_check
        %p270 = pneg %p136
      $region14: #{gated3d_block_forward.2} parent=11 // pred_check_branch
        %272 = sbr.rel (%p270) target = $region16
      $region15: #{gated3d_block_forward.2} parent=11 // pred_region
        _
      $region16: #{gated3d_block_forward.2} parent=11 // pred_fallthru
        _
      // Predicated region
      $region17: #{gated3d_block_forward.2} parent=11 // pred_check
        %p273 = pneg %p157
      $region18: #{gated3d_block_forward.2} parent=11 // pred_check_branch
        %275 = sbr.rel (%p273) target = $region20
      $region19: #{gated3d_block_forward.2} parent=11 // pred_region
        _
      $region20: #{gated3d_block_forward.2} parent=11 // pred_fallthru
        _
      // Predicated region
      $region21: #{gated3d_block_forward.2} parent=11 // pred_check
        %p276 = pneg %p178
      $region22: #{gated3d_block_forward.2} parent=11 // pred_check_branch
        %278 = sbr.rel (%p276) target = $region24
      $region23: #{gated3d_block_forward.2} parent=11 // pred_region
        _
      $region24: #{gated3d_block_forward.2} parent=11 // pred_fallthru
        _
      // Predicated region
      $region25: #{gated3d_block_forward.2} parent=11 // pred_check
        %p279 = pneg %p199
      $region26: #{gated3d_block_forward.2} parent=11 // pred_check_branch
        %281 = sbr.rel (%p279) target = $region28
      $region27: #{gated3d_block_forward.2} parent=11 // pred_region
        _
      $region28: #{gated3d_block_forward.2} parent=11 // pred_fallthru
        _
    $region12: #{gated3d_block_forward.2} parent=5 // pred_fallthru
      _
    %p282 = scmp.lt.s32.totalorder %s15, 8
    // Predicated region
    $region29: #{gated3d_block_forward.2} parent=5 // pred_check
      %p283 = pneg %p282
    $region30: #{gated3d_block_forward.2} parent=5 // pred_check_branch
      %285 = sbr.rel (%p283) target = $region32
    $region31: #{gated3d_block_forward.2} parent=5 // pred_region
      // Predicated region
      $region33: #{gated3d_block_forward.2} parent=31 // pred_check
        %p286 = pneg %p49
      $region34: #{gated3d_block_forward.2} parent=31 // pred_check_branch
        %288 = sbr.rel (%p286) target = $region36
      $region35: #{gated3d_block_forward.2} parent=31 // pred_region
        %p289 = scmp.lt.s32.totalorder %s22, 1
        %s290 = scalar_select %p289, %s22, 1
        %p291 = scmp.lt.s32.totalorder %s23, 5
        %s292 = scalar_select %p291, %s23, 5
        %s293 = smul.addr %s292, 3
        %s294 = smul.addr %s290, 18
        %s295 = sadd.s32 %s293, %s294
        %s296 = smul.addr %s295, 4
        %s297 = scalar_lea.vmem %s0, %s296
      $region36: #{gated3d_block_forward.2} parent=31 // pred_fallthru
        _
      // Predicated region
      $region37: #{gated3d_block_forward.2} parent=31 // pred_check
        %p298 = pneg %p79
      $region38: #{gated3d_block_forward.2} parent=31 // pred_check_branch
        %300 = sbr.rel (%p298) target = $region40
      $region39: #{gated3d_block_forward.2} parent=31 // pred_region
        %s301 = sadd.s32 %s23, 1
        %p302 = scmp.lt.s32.totalorder %s22, 1
        %s303 = scalar_select %p302, %s22, 1
        %p304 = scmp.lt.s32.totalorder %s301, 5
        %s305 = scalar_select %p304, %s301, 5
        %s306 = smul.addr %s305, 3
        %s307 = smul.addr %s303, 18
        %s308 = sadd.s32 %s306, %s307
        %s309 = smul.addr %s308, 4
        %s310 = scalar_lea.vmem %s1, %s309
        %s311 = sadd.s32 %s23, 1
      $region40: #{gated3d_block_forward.2} parent=31 // pred_fallthru
        _
      // Predicated region
      $region41: #{gated3d_block_forward.2} parent=31 // pred_check
        %p312 = pneg %p109
      $region42: #{gated3d_block_forward.2} parent=31 // pred_check_branch
        %314 = sbr.rel (%p312) target = $region44
      $region43: #{gated3d_block_forward.2} parent=31 // pred_region
        %s315 = sadd.s32 %s23, 2
        %p316 = scmp.lt.s32.totalorder %s22, 1
        %s317 = scalar_select %p316, %s22, 1
        %p318 = scmp.lt.s32.totalorder %s315, 5
        %s319 = scalar_select %p318, %s315, 5
        %s320 = smul.addr %s319, 3
        %s321 = smul.addr %s317, 18
        %s322 = sadd.s32 %s320, %s321
        %s323 = smul.addr %s322, 4
        %s324 = scalar_lea.vmem %s2, %s323
        %s325 = sadd.s32 %s23, 2
      $region44: #{gated3d_block_forward.2} parent=31 // pred_fallthru
        _
    $region32: #{gated3d_block_forward.2} parent=5 // pred_fallthru
      _
    %p326 = scmp.le.s32.totalorder 1, %s15
    %p327 = scmp.lt.s32.totalorder %s15, 9
    %p328 = pnand %p326, %p327
    %p329 = pneg %p328
    // Predicated region
    $region45: #{gated3d_block_forward.2} parent=5 // pred_check
      _
    $region46: #{gated3d_block_forward.2} parent=5 // pred_check_branch
      %331 = sbr.rel (%p328) target = $region48
    $region47: #{gated3d_block_forward.2} parent=5 // pred_region
      %s332 = ssub.s32 %s15, 1
      %p333 = scmp.lt.s32.totalorder %s24, 1
      %s334 = scalar_select %p333, %s24, 1
      %p335 = scmp.lt.s32.totalorder %s25, 5
      %s336 = scalar_select %p335, %s25, 5
      %s337 = smul.addr %s336, 3
      %s338 = smul.addr %s334, 18
      %s339 = sadd.s32 %s337, %s338
      %s340 = smul.addr %s339, 4
      %s341 = scalar_lea.vmem %s0, %s340
      %p342 = pneg %p55
      %p343 = pneg %p52
      %s344 = sadd.s32 %s25, 1
      %p345 = scmp.lt.s32.totalorder %s24, 1
      %s346 = scalar_select %p345, %s24, 1
      %p347 = scmp.lt.s32.totalorder %s344, 5
      %s348 = scalar_select %p347, %s344, 5
      %s349 = smul.addr %s348, 3
      %s350 = smul.addr %s346, 18
      %s351 = sadd.s32 %s349, %s350
      %s352 = smul.addr %s351, 4
      %s353 = scalar_lea.vmem %s1, %s352
      %p354 = pneg %p85
      %p355 = pneg %p82
      %s356 = sadd.s32 %s25, 2
      %p357 = scmp.lt.s32.totalorder %s24, 1
      %s358 = scalar_select %p357, %s24, 1
      %p359 = scmp.lt.s32.totalorder %s356, 5
      %s360 = scalar_select %p359, %s356, 5
      %s361 = smul.addr %s360, 3
      %s362 = smul.addr %s358, 18
      %s363 = sadd.s32 %s361, %s362
      %s364 = smul.addr %s363, 4
      %s365 = scalar_lea.vmem %s2, %s364
      %p366 = pneg %p115
      %p367 = pneg %p112
      %p368 = pneg %p136
      %p369 = pneg %p133
      %p370 = pneg %p157
      %p371 = pneg %p154
      %p372 = pneg %p178
      %p373 = pneg %p175
      %p374 = pneg %p199
      %p375 = pneg %p196
      %p376 = pneg %p227
      %p377 = pneg %p224
      %p378 = scmp.lt.s32.totalorder %s24, 1
      %s379 = scalar_select %p378, %s24, 1
      %p380 = scmp.lt.s32.totalorder %s25, 3
      %s381 = scalar_select %p380, %s25, 3
      %s382 = smul.addr %s381, 2
      %s383 = smul.addr %s379, 8
      %s384 = sadd.s32 %s382, %s383
      %s385 = smul.addr %s384, 4
      %s386 = scalar_lea.vmem %s7, %s385
      %p387 = pneg %p255
      %p388 = pneg %p252
      %p389 = scmp.lt.s32.totalorder %s24, 1
      %s390 = scalar_select %p389, %s24, 1
      %p391 = scmp.lt.s32.totalorder %s25, 3
      %s392 = scalar_select %p391, %s25, 3
      %s393 = smul.addr %s392, 2
      %s394 = smul.addr %s390, 8
      %s395 = sadd.s32 %s393, %s394
      %s396 = smul.addr %s395, 4
      %s397 = scalar_lea.vmem %s8, %s396
      %p398 = scmp.lt.s32.totalorder %s24, 1
      %s399 = scalar_select %p398, %s24, 1
      %p400 = scmp.lt.s32.totalorder %s25, 5
      %s401 = scalar_select %p400, %s25, 5
      %s402 = smul.addr %s401, 3
      %s403 = smul.addr %s399, 18
      %s404 = sadd.s32 %s402, %s403
      %s405 = smul.addr %s404, 4
      %s406 = scalar_lea.vmem %s0, %s405
      %s407 = sadd.s32 %s25, 1
      %p408 = scmp.lt.s32.totalorder %s24, 1
      %s409 = scalar_select %p408, %s24, 1
      %p410 = scmp.lt.s32.totalorder %s407, 5
      %s411 = scalar_select %p410, %s407, 5
      %s412 = smul.addr %s411, 3
      %s413 = smul.addr %s409, 18
      %s414 = sadd.s32 %s412, %s413
      %s415 = smul.addr %s414, 4
      %s416 = scalar_lea.vmem %s1, %s415
      %s417 = sadd.s32 %s25, 1
      %s418 = sadd.s32 %s25, 2
      %p419 = scmp.lt.s32.totalorder %s24, 1
      %s420 = scalar_select %p419, %s24, 1
      %p421 = scmp.lt.s32.totalorder %s418, 5
      %s422 = scalar_select %p421, %s418, 5
      %s423 = smul.addr %s422, 3
      %s424 = smul.addr %s420, 18
      %s425 = sadd.s32 %s423, %s424
      %s426 = smul.addr %s425, 4
      %s427 = scalar_lea.vmem %s2, %s426
      %s428 = sadd.s32 %s25, 2
      %p429 = scmp.lt.s32.totalorder %s24, 1
      %s430 = scalar_select %p429, %s24, 1
      %p431 = scmp.lt.s32.totalorder %s25, 3
      %s432 = scalar_select %p431, %s25, 3
      %s433 = smul.addr %s432, 2
      %s434 = smul.addr %s430, 8
      %s435 = sadd.s32 %s433, %s434
      %s436 = smul.addr %s435, 4
      %s437 = scalar_lea.vmem %s7, %s436
      %p438 = scmp.lt.s32.totalorder %s24, 1
      %s439 = scalar_select %p438, %s24, 1
      %p440 = scmp.lt.s32.totalorder %s25, 3
      %s441 = scalar_select %p440, %s25, 3
      %s442 = smul.addr %s441, 2
      %s443 = smul.addr %s439, 8
      %s444 = sadd.s32 %s442, %s443
      %s445 = smul.addr %s444, 4
      %s446 = scalar_lea.vmem %s8, %s445
      %v448 = vld [vmem:[%s406] sm:$0xf]
      %v449 = vld [vmem:[%s406 + $0x4] sm:$0xf]
      %v450 = vld [vmem:[%s3] sm:$0xf]
      %v451 = vld [vmem:[%s3 + $0x4] sm:$0xf]
      %v452 = vld [vmem:[%s3 + $0x8] sm:$0xf]
      %v453 = vld [vmem:[%s3 + $0xc] sm:$0xf]
      %v454 = vld [vmem:[%s3 + $0x10] sm:$0xf]
      %v455 = vld [vmem:[%s3 + $0x14] sm:$0xf]
      %v456 = vld [vmem:[%s3 + $0x18] sm:$0xf]
      %v457 = vld [vmem:[%s3 + $0x1c] sm:$0xf]
      %v458 = vld [vmem:[%s3 + $0x20] sm:$0xf]
      %v459 = vld [vmem:[%s3 + $0x24] sm:$0xf]
      %v460 = vld [vmem:[%s3 + $0x28] sm:$0xf]
      %v461 = vld [vmem:[%s3 + $0x2c] sm:$0xf]
      %v462 = vld [vmem:[%s3 + $0x30] sm:$0xf]
      %v463 = vld [vmem:[%s3 + $0x34] sm:$0xf]
      %v464 = vld [vmem:[%s3 + $0x38] sm:$0xf]
      %v465 = vld [vmem:[%s3 + $0x3c] sm:$0xf]
      %v466 = vld [vmem:[%s406 + $0x8] sm:$0x1]
      %s467 = scalar_lea.vmem %s3, 64
      %v468 = vld [vmem:[%s467] sm:$0xf]
      %v469 = vld [vmem:[%s467 + $0x4] sm:$0xf]
      %v470 = vld [vmem:[%s467 + $0x8] sm:$0xf]
      %v471 = vld [vmem:[%s467 + $0xc] sm:$0xf]
      %v472 = vld [vmem:[%s467 + $0x10] sm:$0xf]
      %v473 = vld [vmem:[%s467 + $0x14] sm:$0xf]
      %v474 = vld [vmem:[%s467 + $0x18] sm:$0xf]
      %v475 = vld [vmem:[%s467 + $0x1c] sm:$0xf]
      %v476 = vld [vmem:[%s467 + $0x20] sm:$0xf]
      %v477 = vld [vmem:[%s467 + $0x24] sm:$0xf]
      %v478 = vld [vmem:[%s467 + $0x28] sm:$0xf]
      %v479 = vld [vmem:[%s467 + $0x2c] sm:$0xf]
      %v480 = vld [vmem:[%s467 + $0x30] sm:$0xf]
      %v481 = vld [vmem:[%s467 + $0x34] sm:$0xf]
      %v482 = vld [vmem:[%s467 + $0x38] sm:$0xf]
      %v483 = vld [vmem:[%s467 + $0x3c] sm:$0xf]
      %v487 = vunpack.c.l.b16 %v448
      %v488 = vunpack.c.l.b16 %v449
      %v489 = vunpack.c.l.b16 %v466
      %v490 = vpack.c.b16 %v488, %v487
      %v491 = vpack.c.b16 %v489, %v489
      %vm492 = vsmask.f32 7424
      %v494 = vshrl.u32 %v490, 16
      %v496 = vshll.u32 %v490, 16
      %v498 = vrot.slane %v496, 1
      %v499 = vor.u32 %v494, %v498
      %v501 = vshll.u32 %v491, 16
      %v503 = vrot.slane %v501, 1
      %v504 = vsel %vm492, %v499, %v503
      %v522 = vunpack.c.l.b16 %v468
      %v523 = vunpack.c.l.b16 %v469
      %v524 = vunpack.c.l.b16 %v470
      %v525 = vunpack.c.l.b16 %v471
      %v526 = vunpack.c.l.b16 %v472
      %v527 = vunpack.c.l.b16 %v473
      %v528 = vunpack.c.l.b16 %v474
      %v529 = vunpack.c.l.b16 %v475
      %v530 = vunpack.c.l.b16 %v476
      %v531 = vunpack.c.l.b16 %v477
      %v532 = vunpack.c.l.b16 %v478
      %v533 = vunpack.c.l.b16 %v479
      %v534 = vunpack.c.l.b16 %v480
      %v535 = vunpack.c.l.b16 %v481
      %v536 = vunpack.c.l.b16 %v482
      %v537 = vunpack.c.l.b16 %v483
      %v538 = vpack.c.b16 %v523, %v522
      %v539 = vpack.c.b16 %v525, %v524
      %v540 = vpack.c.b16 %v527, %v526
      %v541 = vpack.c.b16 %v529, %v528
      %v542 = vpack.c.b16 %v531, %v530
      %v543 = vpack.c.b16 %v533, %v532
      %v544 = vpack.c.b16 %v535, %v534
      %v545 = vpack.c.b16 %v537, %v536
      %554 = vmatprep.subr.bf16.mxu0 0
      %555 = vmatpush1.bf16.msra.mxu0 %v538
      %556 = vmatprep.subr.bf16.mxu0 0
      %557 = vmatpush1.bf16.msra.mxu0 %v539
      %558 = vmatprep.subr.bf16.mxu0 0
      %559 = vmatpush1.bf16.msra.mxu0 %v540
      %560 = vmatprep.subr.bf16.mxu0 0
      %561 = vmatpush1.bf16.msra.mxu0 %v541
      %562 = vmatprep.subr.bf16.mxu0 0
      %563 = vmatpush1.bf16.msra.mxu0 %v542
      %564 = vmatprep.subr.bf16.mxu0 0
      %565 = vmatpush1.bf16.msra.mxu0 %v543
      %566 = vmatprep.subr.bf16.mxu0 0
      %567 = vmatpush1.bf16.msra.mxu0 %v544
      %568 = vmatprep.subr.bf16.mxu0 0
      %569 = vmatpush1.bf16.msra.mxu0 %v545
      %570 = vmatprep.subr.bf16.mxu0 0
      %571 = vmatpush1.bf16.msra.mxu0 0
      %572 = vmatprep.subr.bf16.mxu0 0
      %573 = vmatpush1.bf16.msra.mxu0 0
      %574 = vmatprep.subr.bf16.mxu0 0
      %575 = vmatpush1.bf16.msra.mxu0 0
      %576 = vmatprep.subr.bf16.mxu0 0
      %577 = vmatpush1.bf16.msra.mxu0 0
      %578 = vmatprep.subr.bf16.mxu0 0
      %579 = vmatpush1.bf16.msra.mxu0 0
      %580 = vmatprep.subr.bf16.mxu0 0
      %581 = vmatpush1.bf16.msra.mxu0 0
      %582 = vmatprep.subr.bf16.mxu0 0
      %583 = vmatpush1.bf16.msra.mxu0 0
      %584 = vmatprep.subr.bf16.mxu0 0
      %585 = vmatpush1.bf16.msra.mxu0 0
      %586 = vmatprep.mubr.bf16.mxu0 0
      %587 = vmatmul.mubr.bf16.gmra.mrb[0].mxu0 %v504
      %v588 = vpop.f32.mrb[0].mxu0
      %v589 = vadd.f32 0.0, %v588
      %v590 = vpop.f32.mrb[0].mxu0
      %v591 = vpop.f32.mrb[0].mxu0
      %v592 = vadd.f32 0.0, %v591
      %v593 = vpop.f32.mrb[0].mxu0
      %594 = vdwg.mxu0
      %v612 = vunpack.c.l.b16 %v450
      %v613 = vunpack.c.l.b16 %v451
      %v614 = vunpack.c.l.b16 %v452
      %v615 = vunpack.c.l.b16 %v453
      %v616 = vunpack.c.l.b16 %v454
      %v617 = vunpack.c.l.b16 %v455
      %v618 = vunpack.c.l.b16 %v456
      %v619 = vunpack.c.l.b16 %v457
      %v620 = vunpack.c.l.b16 %v458
      %v621 = vunpack.c.l.b16 %v459
      %v622 = vunpack.c.l.b16 %v460
      %v623 = vunpack.c.l.b16 %v461
      %v624 = vunpack.c.l.b16 %v462
      %v625 = vunpack.c.l.b16 %v463
      %v626 = vunpack.c.l.b16 %v464
      %v627 = vunpack.c.l.b16 %v465
      %v628 = vpack.c.b16 %v613, %v612
      %v629 = vpack.c.b16 %v615, %v614
      %v630 = vpack.c.b16 %v617, %v616
      %v631 = vpack.c.b16 %v619, %v618
      %v632 = vpack.c.b16 %v621, %v620
      %v633 = vpack.c.b16 %v623, %v622
      %v634 = vpack.c.b16 %v625, %v624
      %v635 = vpack.c.b16 %v627, %v626
      %644 = vmatprep.subr.bf16.mxu0 0
      %645 = vmatpush1.bf16.msra.mxu0 %v628
      %646 = vmatprep.subr.bf16.mxu0 0
      %647 = vmatpush1.bf16.msra.mxu0 %v629
      %648 = vmatprep.subr.bf16.mxu0 0
      %649 = vmatpush1.bf16.msra.mxu0 %v630
      %650 = vmatprep.subr.bf16.mxu0 0
      %651 = vmatpush1.bf16.msra.mxu0 %v631
      %652 = vmatprep.subr.bf16.mxu0 0
      %653 = vmatpush1.bf16.msra.mxu0 %v632
      %654 = vmatprep.subr.bf16.mxu0 0
      %655 = vmatpush1.bf16.msra.mxu0 %v633
      %656 = vmatprep.subr.bf16.mxu0 0
      %657 = vmatpush1.bf16.msra.mxu0 %v634
      %658 = vmatprep.subr.bf16.mxu0 0
      %659 = vmatpush1.bf16.msra.mxu0 %v635
      %660 = vmatprep.subr.bf16.mxu0 0
      %661 = vmatpush1.bf16.msra.mxu0 0
      %662 = vmatprep.subr.bf16.mxu0 0
      %663 = vmatpush1.bf16.msra.mxu0 0
      %664 = vmatprep.subr.bf16.mxu0 0
      %665 = vmatpush1.bf16.msra.mxu0 0
      %666 = vmatprep.subr.bf16.mxu0 0
      %667 = vmatpush1.bf16.msra.mxu0 0
      %668 = vmatprep.subr.bf16.mxu0 0
      %669 = vmatpush1.bf16.msra.mxu0 0
      %670 = vmatprep.subr.bf16.mxu0 0
      %671 = vmatpush1.bf16.msra.mxu0 0
      %672 = vmatprep.subr.bf16.mxu0 0
      %673 = vmatpush1.bf16.msra.mxu0 0
      %674 = vmatprep.subr.bf16.mxu0 0
      %675 = vmatpush1.bf16.msra.mxu0 0
      %676 = vmatprep.mubr.bf16.mxu0 0
      %677 = vmatmul.mubr.bf16.gmra.mrb[0].mxu0 %v490
      %v678 = vpop.f32.mrb[0].mxu0
      %v679 = vadd.f32 %v589, %v678
      %v680 = vpop.f32.mrb[0].mxu0
      %v681 = vpop.f32.mrb[0].mxu0
      %v682 = vadd.f32 %v592, %v681
      %v683 = vpop.f32.mrb[0].mxu0
      %684 = vdwg.mxu0
      %v685 = vld [vmem:[%s406] sm:$0xe]
      %s686 = scalar_lea.vmem %s3, 128
      %v687 = vld [vmem:[%s686] sm:$0xf]
      %v688 = vld [vmem:[%s686 + $0x4] sm:$0xf]
      %v689 = vld [vmem:[%s686 + $0x8] sm:$0xf]
      %v690 = vld [vmem:[%s686 + $0xc] sm:$0xf]
      %v691 = vld [vmem:[%s686 + $0x10] sm:$0xf]
      %v692 = vld [vmem:[%s686 + $0x14] sm:$0xf]
      %v693 = vld [vmem:[%s686 + $0x18] sm:$0xf]
      %v694 = vld [vmem:[%s686 + $0x1c] sm:$0xf]
      %v695 = vld [vmem:[%s686 + $0x20] sm:$0xf]
      %v696 = vld [vmem:[%s686 + $0x24] sm:$0xf]
      %v697 = vld [vmem:[%s686 + $0x28] sm:$0xf]
      %v698 = vld [vmem:[%s686 + $0x2c] sm:$0xf]
      %v699 = vld [vmem:[%s686 + $0x30] sm:$0xf]
      %v700 = vld [vmem:[%s686 + $0x34] sm:$0xf]
      %v701 = vld [vmem:[%s686 + $0x38] sm:$0xf]
      %v702 = vld [vmem:[%s686 + $0x3c] sm:$0xf]
      %v704 = vunpack.c.l.b16 %v685
      %v705 = vpack.c.b16 %v488, %v704
      %vm706 = vcmask 1046528
      %v707 = vrot.slane %v705, 1
      %v708 = vrot.slane %v491, 1
      %v709 = vsel %vm706, %v707, %v708
      %v727 = vunpack.c.l.b16 %v687
      %v728 = vunpack.c.l.b16 %v688
      %v729 = vunpack.c.l.b16 %v689
      %v730 = vunpack.c.l.b16 %v690
      %v731 = vunpack.c.l.b16 %v691
      %v732 = vunpack.c.l.b16 %v692
      %v733 = vunpack.c.l.b16 %v693
      %v734 = vunpack.c.l.b16 %v694
      %v735 = vunpack.c.l.b16 %v695
      %v736 = vunpack.c.l.b16 %v696
      %v737 = vunpack.c.l.b16 %v697
      %v738 = vunpack.c.l.b16 %v698
      %v739 = vunpack.c.l.b16 %v699
      %v740 = vunpack.c.l.b16 %v700
      %v741 = vunpack.c.l.b16 %v701
      %v742 = vunpack.c.l.b16 %v702
      %v743 = vpack.c.b16 %v728, %v727
      %v744 = vpack.c.b16 %v730, %v729
      %v745 = vpack.c.b16 %v732, %v731
      %v746 = vpack.c.b16 %v734, %v733
      %v747 = vpack.c.b16 %v736, %v735
      %v748 = vpack.c.b16 %v738, %v737
      %v749 = vpack.c.b16 %v740, %v739
      %v750 = vpack.c.b16 %v742, %v741
      %759 = vmatprep.subr.bf16.mxu0 0
      %760 = vmatpush1.bf16.msra.mxu0 %v743
      %761 = vmatprep.subr.bf16.mxu0 0
      %762 = vmatpush1.bf16.msra.mxu0 %v744
      %763 = vmatprep.subr.bf16.mxu0 0
      %764 = vmatpush1.bf16.msra.mxu0 %v745
      %765 = vmatprep.subr.bf16.mxu0 0
      %766 = vmatpush1.bf16.msra.mxu0 %v746
      %767 = vmatprep.subr.bf16.mxu0 0
      %768 = vmatpush1.bf16.msra.mxu0 %v747
      %769 = vmatprep.subr.bf16.mxu0 0
      %770 = vmatpush1.bf16.msra.mxu0 %v748
      %771 = vmatprep.subr.bf16.mxu0 0
      %772 = vmatpush1.bf16.msra.mxu0 %v749
      %773 = vmatprep.subr.bf16.mxu0 0
      %774 = vmatpush1.bf16.msra.mxu0 %v750
      %775 = vmatprep.subr.bf16.mxu0 0
      %776 = vmatpush1.bf16.msra.mxu0 0
      %777 = vmatprep.subr.bf16.mxu0 0
      %778 = vmatpush1.bf16.msra.mxu0 0
      %779 = vmatprep.subr.bf16.mxu0 0
      %780 = vmatpush1.bf16.msra.mxu0 0
      %781 = vmatprep.subr.bf16.mxu0 0
      %782 = vmatpush1.bf16.msra.mxu0 0
      %783 = vmatprep.subr.bf16.mxu0 0
      %784 = vmatpush1.bf16.msra.mxu0 0
      %785 = vmatprep.subr.bf16.mxu0 0
      %786 = vmatpush1.bf16.msra.mxu0 0
      %787 = vmatprep.subr.bf16.mxu0 0
      %788 = vmatpush1.bf16.msra.mxu0 0
      %789 = vmatprep.subr.bf16.mxu0 0
      %790 = vmatpush1.bf16.msra.mxu0 0
      %791 = vmatprep.mubr.bf16.mxu0 0
      %792 = vmatmul.mubr.bf16.gmra.mrb[0].mxu0 %v709
      %v793 = vpop.f32.mrb[0].mxu0
      %v794 = vadd.f32 0.0, %v793
      %v795 = vpop.f32.mrb[0].mxu0
      %v796 = vpop.f32.mrb[0].mxu0
      %v797 = vadd.f32 0.0, %v796
      %v798 = vpop.f32.mrb[0].mxu0
      %799 = vdwg.mxu0
      %v800 = vadd.f32 %v679, %v794
      %v801 = vadd.f32 %v682, %v797
      %v802 = vld [vmem:[%s416] sm:$0xf]
      %v803 = vld [vmem:[%s416 + $0x4] sm:$0xf]
      %s804 = scalar_lea.vmem %s3, 192
      %v805 = vld [vmem:[%s804] sm:$0xf]
      %v806 = vld [vmem:[%s804 + $0x4] sm:$0xf]
      %v807 = vld [vmem:[%s804 + $0x8] sm:$0xf]
      %v808 = vld [vmem:[%s804 + $0xc] sm:$0xf]
      %v809 = vld [vmem:[%s804 + $0x10] sm:$0xf]
      %v810 = vld [vmem:[%s804 + $0x14] sm:$0xf]
      %v811 = vld [vmem:[%s804 + $0x18] sm:$0xf]
      %v812 = vld [vmem:[%s804 + $0x1c] sm:$0xf]
      %v813 = vld [vmem:[%s804 + $0x20] sm:$0xf]
      %v814 = vld [vmem:[%s804 + $0x24] sm:$0xf]
      %v815 = vld [vmem:[%s804 + $0x28] sm:$0xf]
      %v816 = vld [vmem:[%s804 + $0x2c] sm:$0xf]
      %v817 = vld [vmem:[%s804 + $0x30] sm:$0xf]
      %v818 = vld [vmem:[%s804 + $0x34] sm:$0xf]
      %v819 = vld [vmem:[%s804 + $0x38] sm:$0xf]
      %v820 = vld [vmem:[%s804 + $0x3c] sm:$0xf]
      %v823 = vunpack.c.l.b16 %v802
      %v824 = vunpack.c.l.b16 %v803
      %v825 = vpack.c.b16 %v824, %v823
      %v843 = vunpack.c.l.b16 %v805
      %v844 = vunpack.c.l.b16 %v806
      %v845 = vunpack.c.l.b16 %v807
      %v846 = vunpack.c.l.b16 %v808
      %v847 = vunpack.c.l.b16 %v809
      %v848 = vunpack.c.l.b16 %v810
      %v849 = vunpack.c.l.b16 %v811
      %v850 = vunpack.c.l.b16 %v812
      %v851 = vunpack.c.l.b16 %v813
      %v852 = vunpack.c.l.b16 %v814
      %v853 = vunpack.c.l.b16 %v815
      %v854 = vunpack.c.l.b16 %v816
      %v855 = vunpack.c.l.b16 %v817
      %v856 = vunpack.c.l.b16 %v818
      %v857 = vunpack.c.l.b16 %v819
      %v858 = vunpack.c.l.b16 %v820
      %v859 = vpack.c.b16 %v844, %v843
      %v860 = vpack.c.b16 %v846, %v845
      %v861 = vpack.c.b16 %v848, %v847
      %v862 = vpack.c.b16 %v850, %v849
      %v863 = vpack.c.b16 %v852, %v851
      %v864 = vpack.c.b16 %v854, %v853
      %v865 = vpack.c.b16 %v856, %v855
      %v866 = vpack.c.b16 %v858, %v857
      %875 = vmatprep.subr.bf16.mxu0 0
      %876 = vmatpush1.bf16.msra.mxu0 %v859
      %877 = vmatprep.subr.bf16.mxu0 0
      %878 = vmatpush1.bf16.msra.mxu0 %v860
      %879 = vmatprep.subr.bf16.mxu0 0
      %880 = vmatpush1.bf16.msra.mxu0 %v861
      %881 = vmatprep.subr.bf16.mxu0 0
      %882 = vmatpush1.bf16.msra.mxu0 %v862
      %883 = vmatprep.subr.bf16.mxu0 0
      %884 = vmatpush1.bf16.msra.mxu0 %v863
      %885 = vmatprep.subr.bf16.mxu0 0
      %886 = vmatpush1.bf16.msra.mxu0 %v864
      %887 = vmatprep.subr.bf16.mxu0 0
      %888 = vmatpush1.bf16.msra.mxu0 %v865
      %889 = vmatprep.subr.bf16.mxu0 0
      %890 = vmatpush1.bf16.msra.mxu0 %v866
      %891 = vmatprep.subr.bf16.mxu0 0
      %892 = vmatpush1.bf16.msra.mxu0 0
      %893 = vmatprep.subr.bf16.mxu0 0
      %894 = vmatpush1.bf16.msra.mxu0 0
      %895 = vmatprep.subr.bf16.mxu0 0
      %896 = vmatpush1.bf16.msra.mxu0 0
      %897 = vmatprep.subr.bf16.mxu0 0
      %898 = vmatpush1.bf16.msra.mxu0 0
      %899 = vmatprep.subr.bf16.mxu0 0
      %900 = vmatpush1.bf16.msra.mxu0 0
      %901 = vmatprep.subr.bf16.mxu0 0
      %902 = vmatpush1.bf16.msra.mxu0 0
      %903 = vmatprep.subr.bf16.mxu0 0
      %904 = vmatpush1.bf16.msra.mxu0 0
      %905 = vmatprep.subr.bf16.mxu0 0
      %906 = vmatpush1.bf16.msra.mxu0 0
      %907 = vmatprep.mubr.bf16.mxu0 0
      %908 = vmatmul.mubr.bf16.gmra.mrb[0].mxu0 %v825
      %v909 = vpop.f32.mrb[0].mxu0
      %v910 = vadd.f32 0.0, %v909
      %v911 = vpop.f32.mrb[0].mxu0
      %v912 = vpop.f32.mrb[0].mxu0
      %v913 = vadd.f32 0.0, %v912
      %v914 = vpop.f32.mrb[0].mxu0
      %915 = vdwg.mxu0
      %v916 = vadd.f32 %v800, %v910
      %v917 = vadd.f32 %v801, %v913
      %v918 = vld [vmem:[%s416] sm:$0xf]
      %v919 = vld [vmem:[%s416 + $0x4] sm:$0xf]
      %v920 = vld [vmem:[%s416 + $0x8] sm:$0x1]
      %s921 = scalar_lea.vmem %s3, 256
      %v922 = vld [vmem:[%s921] sm:$0xf]
      %v923 = vld [vmem:[%s921 + $0x4] sm:$0xf]
      %v924 = vld [vmem:[%s921 + $0x8] sm:$0xf]
      %v925 = vld [vmem:[%s921 + $0xc] sm:$0xf]
      %v926 = vld [vmem:[%s921 + $0x10] sm:$0xf]
      %v927 = vld [vmem:[%s921 + $0x14] sm:$0xf]
      %v928 = vld [vmem:[%s921 + $0x18] sm:$0xf]
      %v929 = vld [vmem:[%s921 + $0x1c] sm:$0xf]
      %v930 = vld [vmem:[%s921 + $0x20] sm:$0xf]
      %v931 = vld [vmem:[%s921 + $0x24] sm:$0xf]
      %v932 = vld [vmem:[%s921 + $0x28] sm:$0xf]
      %v933 = vld [vmem:[%s921 + $0x2c] sm:$0xf]
      %v934 = vld [vmem:[%s921 + $0x30] sm:$0xf]
      %v935 = vld [vmem:[%s921 + $0x34] sm:$0xf]
      %v936 = vld [vmem:[%s921 + $0x38] sm:$0xf]
      %v937 = vld [vmem:[%s921 + $0x3c] sm:$0xf]
      %v941 = vunpack.c.l.b16 %v918
      %v942 = vunpack.c.l.b16 %v919
      %v943 = vunpack.c.l.b16 %v920
      %v944 = vpack.c.b16 %v942, %v941
      %v945 = vpack.c.b16 %v943, %v943
      %v947 = vshrl.u32 %v944, 16
      %v949 = vshll.u32 %v944, 16
      %v951 = vrot.slane %v949, 1
      %v952 = vor.u32 %v947, %v951
      %v954 = vshll.u32 %v945, 16
      %v956 = vrot.slane %v954, 1
      %v957 = vsel %vm492, %v952, %v956
      %v975 = vunpack.c.l.b16 %v922
      %v976 = vunpack.c.l.b16 %v923
      %v977 = vunpack.c.l.b16 %v924
      %v978 = vunpack.c.l.b16 %v925
      %v979 = vunpack.c.l.b16 %v926
      %v980 = vunpack.c.l.b16 %v927
      %v981 = vunpack.c.l.b16 %v928
      %v982 = vunpack.c.l.b16 %v929
      %v983 = vunpack.c.l.b16 %v930
      %v984 = vunpack.c.l.b16 %v931
      %v985 = vunpack.c.l.b16 %v932
      %v986 = vunpack.c.l.b16 %v933
      %v987 = vunpack.c.l.b16 %v934
      %v988 = vunpack.c.l.b16 %v935
      %v989 = vunpack.c.l.b16 %v936
      %v990 = vunpack.c.l.b16 %v937
      %v991 = vpack.c.b16 %v976, %v975
      %v992 = vpack.c.b16 %v978, %v977
      %v993 = vpack.c.b16 %v980, %v979
      %v994 = vpack.c.b16 %v982, %v981
      %v995 = vpack.c.b16 %v984, %v983
      %v996 = vpack.c.b16 %v986, %v985
      %v997 = vpack.c.b16 %v988, %v987
      %v998 = vpack.c.b16 %v990, %v989
      %1007 = vmatprep.subr.bf16.mxu0 0
      %1008 = vmatpush1.bf16.msra.mxu0 %v991
      %1009 = vmatprep.subr.bf16.mxu0 0
      %1010 = vmatpush1.bf16.msra.mxu0 %v992
      %1011 = vmatprep.subr.bf16.mxu0 0
      %1012 = vmatpush1.bf16.msra.mxu0 %v993
      %1013 = vmatprep.subr.bf16.mxu0 0
      %1014 = vmatpush1.bf16.msra.mxu0 %v994
      %1015 = vmatprep.subr.bf16.mxu0 0
      %1016 = vmatpush1.bf16.msra.mxu0 %v995
      %1017 = vmatprep.subr.bf16.mxu0 0
      %1018 = vmatpush1.bf16.msra.mxu0 %v996
      %1019 = vmatprep.subr.bf16.mxu0 0
      %1020 = vmatpush1.bf16.msra.mxu0 %v997
      %1021 = vmatprep.subr.bf16.mxu0 0
      %1022 = vmatpush1.bf16.msra.mxu0 %v998
      %1023 = vmatprep.subr.bf16.mxu0 0
      %1024 = vmatpush1.bf16.msra.mxu0 0
      %1025 = vmatprep.subr.bf16.mxu0 0
      %1026 = vmatpush1.bf16.msra.mxu0 0
      %1027 = vmatprep.subr.bf16.mxu0 0
      %1028 = vmatpush1.bf16.msra.mxu0 0
      %1029 = vmatprep.subr.bf16.mxu0 0
      %1030 = vmatpush1.bf16.msra.mxu0 0
      %1031 = vmatprep.subr.bf16.mxu0 0
      %1032 = vmatpush1.bf16.msra.mxu0 0
      %1033 = vmatprep.subr.bf16.mxu0 0
      %1034 = vmatpush1.bf16.msra.mxu0 0
      %1035 = vmatprep.subr.bf16.mxu0 0
      %1036 = vmatpush1.bf16.msra.mxu0 0
      %1037 = vmatprep.subr.bf16.mxu0 0
      %1038 = vmatpush1.bf16.msra.mxu0 0
      %1039 = vmatprep.mubr.bf16.mxu0 0
      %1040 = vmatmul.mubr.bf16.gmra.mrb[0].mxu0 %v957
      %v1041 = vpop.f32.mrb[0].mxu0
      %v1042 = vadd.f32 0.0, %v1041
      %v1043 = vpop.f32.mrb[0].mxu0
      %v1044 = vpop.f32.mrb[0].mxu0
      %v1045 = vadd.f32 0.0, %v1044
      %v1046 = vpop.f32.mrb[0].mxu0
      %1047 = vdwg.mxu0
      %v1048 = vadd.f32 %v916, %v1042
      %v1049 = vadd.f32 %v917, %v1045
      %v1050 = vld [vmem:[%s416] sm:$0xe]
      %s1051 = scalar_lea.vmem %s3, 320
      %v1052 = vld [vmem:[%s1051] sm:$0xf]
      %v1053 = vld [vmem:[%s1051 + $0x4] sm:$0xf]
      %v1054 = vld [vmem:[%s1051 + $0x8] sm:$0xf]
      %v1055 = vld [vmem:[%s1051 + $0xc] sm:$0xf]
      %v1056 = vld [vmem:[%s1051 + $0x10] sm:$0xf]
      %v1057 = vld [vmem:[%s1051 + $0x14] sm:$0xf]
      %v1058 = vld [vmem:[%s1051 + $0x18] sm:$0xf]
      %v1059 = vld [vmem:[%s1051 + $0x1c] sm:$0xf]
      %v1060 = vld [vmem:[%s1051 + $0x20] sm:$0xf]
      %v1061 = vld [vmem:[%s1051 + $0x24] sm:$0xf]
      %v1062 = vld [vmem:[%s1051 + $0x28] sm:$0xf]
      %v1063 = vld [vmem:[%s1051 + $0x2c] sm:$0xf]
      %v1064 = vld [vmem:[%s1051 + $0x30] sm:$0xf]
      %v1065 = vld [vmem:[%s1051 + $0x34] sm:$0xf]
      %v1066 = vld [vmem:[%s1051 + $0x38] sm:$0xf]
      %v1067 = vld [vmem:[%s1051 + $0x3c] sm:$0xf]
      %v1069 = vunpack.c.l.b16 %v1050
      %v1070 = vpack.c.b16 %v942, %v1069
      %v1071 = vrot.slane %v1070, 1
      %v1072 = vrot.slane %v945, 1
      %v1073 = vsel %vm706, %v1071, %v1072
      %v1091 = vunpack.c.l.b16 %v1052
      %v1092 = vunpack.c.l.b16 %v1053
      %v1093 = vunpack.c.l.b16 %v1054
      %v1094 = vunpack.c.l.b16 %v1055
      %v1095 = vunpack.c.l.b16 %v1056
      %v1096 = vunpack.c.l.b16 %v1057
      %v1097 = vunpack.c.l.b16 %v1058
      %v1098 = vunpack.c.l.b16 %v1059
      %v1099 = vunpack.c.l.b16 %v1060
      %v1100 = vunpack.c.l.b16 %v1061
      %v1101 = vunpack.c.l.b16 %v1062
      %v1102 = vunpack.c.l.b16 %v1063
      %v1103 = vunpack.c.l.b16 %v1064
      %v1104 = vunpack.c.l.b16 %v1065
      %v1105 = vunpack.c.l.b16 %v1066
      %v1106 = vunpack.c.l.b16 %v1067
      %v1107 = vpack.c.b16 %v1092, %v1091
      %v1108 = vpack.c.b16 %v1094, %v1093
      %v1109 = vpack.c.b16 %v1096, %v1095
      %v1110 = vpack.c.b16 %v1098, %v1097
      %v1111 = vpack.c.b16 %v1100, %v1099
      %v1112 = vpack.c.b16 %v1102, %v1101
      %v1113 = vpack.c.b16 %v1104, %v1103
      %v1114 = vpack.c.b16 %v1106, %v1105
      %1123 = vmatprep.subr.bf16.mxu0 0
      %1124 = vmatpush1.bf16.msra.mxu0 %v1107
      %1125 = vmatprep.subr.bf16.mxu0 0
      %1126 = vmatpush1.bf16.msra.mxu0 %v1108
      %1127 = vmatprep.subr.bf16.mxu0 0
      %1128 = vmatpush1.bf16.msra.mxu0 %v1109
      %1129 = vmatprep.subr.bf16.mxu0 0
      %1130 = vmatpush1.bf16.msra.mxu0 %v1110
      %1131 = vmatprep.subr.bf16.mxu0 0
      %1132 = vmatpush1.bf16.msra.mxu0 %v1111
      %1133 = vmatprep.subr.bf16.mxu0 0
      %1134 = vmatpush1.bf16.msra.mxu0 %v1112
      %1135 = vmatprep.subr.bf16.mxu0 0
      %1136 = vmatpush1.bf16.msra.mxu0 %v1113
      %1137 = vmatprep.subr.bf16.mxu0 0
      %1138 = vmatpush1.bf16.msra.mxu0 %v1114
      %1139 = vmatprep.subr.bf16.mxu0 0
      %1140 = vmatpush1.bf16.msra.mxu0 0
      %1141 = vmatprep.subr.bf16.mxu0 0
      %1142 = vmatpush1.bf16.msra.mxu0 0
      %1143 = vmatprep.subr.bf16.mxu0 0
      %1144 = vmatpush1.bf16.msra.mxu0 0
      %1145 = vmatprep.subr.bf16.mxu0 0
      %1146 = vmatpush1.bf16.msra.mxu0 0
      %1147 = vmatprep.subr.bf16.mxu0 0
      %1148 = vmatpush1.bf16.msra.mxu0 0
      %1149 = vmatprep.subr.bf16.mxu0 0
      %1150 = vmatpush1.bf16.msra.mxu0 0
      %1151 = vmatprep.subr.bf16.mxu0 0
      %1152 = vmatpush1.bf16.msra.mxu0 0
      %1153 = vmatprep.subr.bf16.mxu0 0
      %1154 = vmatpush1.bf16.msra.mxu0 0
      %1155 = vmatprep.mubr.bf16.mxu0 0
      %1156 = vmatmul.mubr.bf16.gmra.mrb[0].mxu0 %v1073
      %v1157 = vpop.f32.mrb[0].mxu0
      %v1158 = vadd.f32 0.0, %v1157
      %v1159 = vpop.f32.mrb[0].mxu0
      %v1160 = vpop.f32.mrb[0].mxu0
      %v1161 = vadd.f32 0.0, %v1160
      %v1162 = vpop.f32.mrb[0].mxu0
      %1163 = vdwg.mxu0
      %v1164 = vadd.f32 %v1048, %v1158
      %v1165 = vadd.f32 %v1049, %v1161
      %v1166 = vld [vmem:[%s427] sm:$0xf]
      %v1167 = vld [vmem:[%s427 + $0x4] sm:$0xf]
      %s1168 = scalar_lea.vmem %s3, 384
      %v1169 = vld [vmem:[%s1168] sm:$0xf]
      %v1170 = vld [vmem:[%s1168 + $0x4] sm:$0xf]
      %v1171 = vld [vmem:[%s1168 + $0x8] sm:$0xf]
      %v1172 = vld [vmem:[%s1168 + $0xc] sm:$0xf]
      %v1173 = vld [vmem:[%s1168 + $0x10] sm:$0xf]
      %v1174 = vld [vmem:[%s1168 + $0x14] sm:$0xf]
      %v1175 = vld [vmem:[%s1168 + $0x18] sm:$0xf]
      %v1176 = vld [vmem:[%s1168 + $0x1c] sm:$0xf]
      %v1177 = vld [vmem:[%s1168 + $0x20] sm:$0xf]
      %v1178 = vld [vmem:[%s1168 + $0x24] sm:$0xf]
      %v1179 = vld [vmem:[%s1168 + $0x28] sm:$0xf]
      %v1180 = vld [vmem:[%s1168 + $0x2c] sm:$0xf]
      %v1181 = vld [vmem:[%s1168 + $0x30] sm:$0xf]
      %v1182 = vld [vmem:[%s1168 + $0x34] sm:$0xf]
      %v1183 = vld [vmem:[%s1168 + $0x38] sm:$0xf]
      %v1184 = vld [vmem:[%s1168 + $0x3c] sm:$0xf]
      %v1187 = vunpack.c.l.b16 %v1166
      %v1188 = vunpack.c.l.b16 %v1167
      %v1189 = vpack.c.b16 %v1188, %v1187
      %v1207 = vunpack.c.l.b16 %v1169
      %v1208 = vunpack.c.l.b16 %v1170
      %v1209 = vunpack.c.l.b16 %v1171
      %v1210 = vunpack.c.l.b16 %v1172
      %v1211 = vunpack.c.l.b16 %v1173
      %v1212 = vunpack.c.l.b16 %v1174
      %v1213 = vunpack.c.l.b16 %v1175
      %v1214 = vunpack.c.l.b16 %v1176
      %v1215 = vunpack.c.l.b16 %v1177
      %v1216 = vunpack.c.l.b16 %v1178
      %v1217 = vunpack.c.l.b16 %v1179
      %v1218 = vunpack.c.l.b16 %v1180
      %v1219 = vunpack.c.l.b16 %v1181
      %v1220 = vunpack.c.l.b16 %v1182
      %v1221 = vunpack.c.l.b16 %v1183
      %v1222 = vunpack.c.l.b16 %v1184
      %v1223 = vpack.c.b16 %v1208, %v1207
      %v1224 = vpack.c.b16 %v1210, %v1209
      %v1225 = vpack.c.b16 %v1212, %v1211
      %v1226 = vpack.c.b16 %v1214, %v1213
      %v1227 = vpack.c.b16 %v1216, %v1215
      %v1228 = vpack.c.b16 %v1218, %v1217
      %v1229 = vpack.c.b16 %v1220, %v1219
      %v1230 = vpack.c.b16 %v1222, %v1221
      %1239 = vmatprep.subr.bf16.mxu0 0
      %1240 = vmatpush1.bf16.msra.mxu0 %v1223
      %1241 = vmatprep.subr.bf16.mxu0 0
      %1242 = vmatpush1.bf16.msra.mxu0 %v1224
      %1243 = vmatprep.subr.bf16.mxu0 0
      %1244 = vmatpush1.bf16.msra.mxu0 %v1225
      %1245 = vmatprep.subr.bf16.mxu0 0
      %1246 = vmatpush1.bf16.msra.mxu0 %v1226
      %1247 = vmatprep.subr.bf16.mxu0 0
      %1248 = vmatpush1.bf16.msra.mxu0 %v1227
      %1249 = vmatprep.subr.bf16.mxu0 0
      %1250 = vmatpush1.bf16.msra.mxu0 %v1228
      %1251 = vmatprep.subr.bf16.mxu0 0
      %1252 = vmatpush1.bf16.msra.mxu0 %v1229
      %1253 = vmatprep.subr.bf16.mxu0 0
      %1254 = vmatpush1.bf16.msra.mxu0 %v1230
      %1255 = vmatprep.subr.bf16.mxu0 0
      %1256 = vmatpush1.bf16.msra.mxu0 0
      %1257 = vmatprep.subr.bf16.mxu0 0
      %1258 = vmatpush1.bf16.msra.mxu0 0
      %1259 = vmatprep.subr.bf16.mxu0 0
      %1260 = vmatpush1.bf16.msra.mxu0 0
      %1261 = vmatprep.subr.bf16.mxu0 0
      %1262 = vmatpush1.bf16.msra.mxu0 0
      %1263 = vmatprep.subr.bf16.mxu0 0
      %1264 = vmatpush1.bf16.msra.mxu0 0
      %1265 = vmatprep.subr.bf16.mxu0 0
      %1266 = vmatpush1.bf16.msra.mxu0 0
      %1267 = vmatprep.subr.bf16.mxu0 0
      %1268 = vmatpush1.bf16.msra.mxu0 0
      %1269 = vmatprep.subr.bf16.mxu0 0
      %1270 = vmatpush1.bf16.msra.mxu0 0
      %1271 = vmatprep.mubr.bf16.mxu0 0
      %1272 = vmatmul.mubr.bf16.gmra.mrb[0].mxu0 %v1189
      %v1273 = vpop.f32.mrb[0].mxu0
      %v1274 = vadd.f32 0.0, %v1273
      %v1275 = vpop.f32.mrb[0].mxu0
      %v1276 = vpop.f32.mrb[0].mxu0
      %v1277 = vadd.f32 0.0, %v1276
      %v1278 = vpop.f32.mrb[0].mxu0
      %1279 = vdwg.mxu0
      %v1280 = vadd.f32 %v1164, %v1274
      %v1281 = vadd.f32 %v1165, %v1277
      %v1282 = vld [vmem:[%s427] sm:$0xf]
      %v1283 = vld [vmem:[%s427 + $0x4] sm:$0xf]
      %v1284 = vld [vmem:[%s427 + $0x8] sm:$0x1]
      %s1285 = scalar_lea.vmem %s3, 448
      %v1286 = vld [vmem:[%s1285] sm:$0xf]
      %v1287 = vld [vmem:[%s1285 + $0x4] sm:$0xf]
      %v1288 = vld [vmem:[%s1285 + $0x8] sm:$0xf]
      %v1289 = vld [vmem:[%s1285 + $0xc] sm:$0xf]
      %v1290 = vld [vmem:[%s1285 + $0x10] sm:$0xf]
      %v1291 = vld [vmem:[%s1285 + $0x14] sm:$0xf]
      %v1292 = vld [vmem:[%s1285 + $0x18] sm:$0xf]
      %v1293 = vld [vmem:[%s1285 + $0x1c] sm:$0xf]
      %v1294 = vld [vmem:[%s1285 + $0x20] sm:$0xf]
      %v1295 = vld [vmem:[%s1285 + $0x24] sm:$0xf]
      %v1296 = vld [vmem:[%s1285 + $0x28] sm:$0xf]
      %v1297 = vld [vmem:[%s1285 + $0x2c] sm:$0xf]
      %v1298 = vld [vmem:[%s1285 + $0x30] sm:$0xf]
      %v1299 = vld [vmem:[%s1285 + $0x34] sm:$0xf]
      %v1300 = vld [vmem:[%s1285 + $0x38] sm:$0xf]
      %v1301 = vld [vmem:[%s1285 + $0x3c] sm:$0xf]
      %v1305 = vunpack.c.l.b16 %v1282
      %v1306 = vunpack.c.l.b16 %v1283
      %v1307 = vunpack.c.l.b16 %v1284
      %v1308 = vpack.c.b16 %v1306, %v1305
      %v1309 = vpack.c.b16 %v1307, %v1307
      %v1311 = vshrl.u32 %v1308, 16
      %v1313 = vshll.u32 %v1308, 16
      %v1315 = vrot.slane %v1313, 1
      %v1316 = vor.u32 %v1311, %v1315
      %v1318 = vshll.u32 %v1309, 16
      %v1320 = vrot.slane %v1318, 1
      %v1321 = vsel %vm492, %v1316, %v1320
      %v1339 = vunpack.c.l.b16 %v1286
      %v1340 = vunpack.c.l.b16 %v1287
      %v1341 = vunpack.c.l.b16 %v1288
      %v1342 = vunpack.c.l.b16 %v1289
      %v1343 = vunpack.c.l.b16 %v1290
      %v1344 = vunpack.c.l.b16 %v1291
      %v1345 = vunpack.c.l.b16 %v1292
      %v1346 = vunpack.c.l.b16 %v1293
      %v1347 = vunpack.c.l.b16 %v1294
      %v1348 = vunpack.c.l.b16 %v1295
      %v1349 = vunpack.c.l.b16 %v1296
      %v1350 = vunpack.c.l.b16 %v1297
      %v1351 = vunpack.c.l.b16 %v1298
      %v1352 = vunpack.c.l.b16 %v1299
      %v1353 = vunpack.c.l.b16 %v1300
      %v1354 = vunpack.c.l.b16 %v1301
      %v1355 = vpack.c.b16 %v1340, %v1339
      %v1356 = vpack.c.b16 %v1342, %v1341
      %v1357 = vpack.c.b16 %v1344, %v1343
      %v1358 = vpack.c.b16 %v1346, %v1345
      %v1359 = vpack.c.b16 %v1348, %v1347
      %v1360 = vpack.c.b16 %v1350, %v1349
      %v1361 = vpack.c.b16 %v1352, %v1351
      %v1362 = vpack.c.b16 %v1354, %v1353
      %1371 = vmatprep.subr.bf16.mxu0 0
      %1372 = vmatpush1.bf16.msra.mxu0 %v1355
      %1373 = vmatprep.subr.bf16.mxu0 0
      %1374 = vmatpush1.bf16.msra.mxu0 %v1356
      %1375 = vmatprep.subr.bf16.mxu0 0
      %1376 = vmatpush1.bf16.msra.mxu0 %v1357
      %1377 = vmatprep.subr.bf16.mxu0 0
      %1378 = vmatpush1.bf16.msra.mxu0 %v1358
      %1379 = vmatprep.subr.bf16.mxu0 0
      %1380 = vmatpush1.bf16.msra.mxu0 %v1359
      %1381 = vmatprep.subr.bf16.mxu0 0
      %1382 = vmatpush1.bf16.msra.mxu0 %v1360
      %1383 = vmatprep.subr.bf16.mxu0 0
      %1384 = vmatpush1.bf16.msra.mxu0 %v1361
      %1385 = vmatprep.subr.bf16.mxu0 0
      %1386 = vmatpush1.bf16.msra.mxu0 %v1362
      %1387 = vmatprep.subr.bf16.mxu0 0
      %1388 = vmatpush1.bf16.msra.mxu0 0
      %1389 = vmatprep.subr.bf16.mxu0 0
      %1390 = vmatpush1.bf16.msra.mxu0 0
      %1391 = vmatprep.subr.bf16.mxu0 0
      %1392 = vmatpush1.bf16.msra.mxu0 0
      %1393 = vmatprep.subr.bf16.mxu0 0
      %1394 = vmatpush1.bf16.msra.mxu0 0
      %1395 = vmatprep.subr.bf16.mxu0 0
      %1396 = vmatpush1.bf16.msra.mxu0 0
      %1397 = vmatprep.subr.bf16.mxu0 0
      %1398 = vmatpush1.bf16.msra.mxu0 0
      %1399 = vmatprep.subr.bf16.mxu0 0
      %1400 = vmatpush1.bf16.msra.mxu0 0
      %1401 = vmatprep.subr.bf16.mxu0 0
      %1402 = vmatpush1.bf16.msra.mxu0 0
      %1403 = vmatprep.mubr.bf16.mxu0 0
      %1404 = vmatmul.mubr.bf16.gmra.mrb[0].mxu0 %v1321
      %v1405 = vpop.f32.mrb[0].mxu0
      %v1406 = vadd.f32 0.0, %v1405
      %v1407 = vpop.f32.mrb[0].mxu0
      %v1408 = vpop.f32.mrb[0].mxu0
      %v1409 = vadd.f32 0.0, %v1408
      %v1410 = vpop.f32.mrb[0].mxu0
      %1411 = vdwg.mxu0
      %v1412 = vadd.f32 %v1280, %v1406
      %v1413 = vadd.f32 %v1281, %v1409
      %v1414 = vld [vmem:[%s427] sm:$0xe]
      %s1415 = scalar_lea.vmem %s3, 512
      %v1416 = vld [vmem:[%s1415] sm:$0xf]
      %v1417 = vld [vmem:[%s1415 + $0x4] sm:$0xf]
      %v1418 = vld [vmem:[%s1415 + $0x8] sm:$0xf]
      %v1419 = vld [vmem:[%s1415 + $0xc] sm:$0xf]
      %v1420 = vld [vmem:[%s1415 + $0x10] sm:$0xf]
      %v1421 = vld [vmem:[%s1415 + $0x14] sm:$0xf]
      %v1422 = vld [vmem:[%s1415 + $0x18] sm:$0xf]
      %v1423 = vld [vmem:[%s1415 + $0x1c] sm:$0xf]
      %v1424 = vld [vmem:[%s1415 + $0x20] sm:$0xf]
      %v1425 = vld [vmem:[%s1415 + $0x24] sm:$0xf]
      %v1426 = vld [vmem:[%s1415 + $0x28] sm:$0xf]
      %v1427 = vld [vmem:[%s1415 + $0x2c] sm:$0xf]
      %v1428 = vld [vmem:[%s1415 + $0x30] sm:$0xf]
      %v1429 = vld [vmem:[%s1415 + $0x34] sm:$0xf]
      %v1430 = vld [vmem:[%s1415 + $0x38] sm:$0xf]
      %v1431 = vld [vmem:[%s1415 + $0x3c] sm:$0xf]
      %v1433 = vunpack.c.l.b16 %v1414
      %v1434 = vpack.c.b16 %v1306, %v1433
      %v1435 = vrot.slane %v1434, 1
      %v1436 = vrot.slane %v1309, 1
      %v1437 = vsel %vm706, %v1435, %v1436
      %v1455 = vunpack.c.l.b16 %v1416
      %v1456 = vunpack.c.l.b16 %v1417
      %v1457 = vunpack.c.l.b16 %v1418
      %v1458 = vunpack.c.l.b16 %v1419
      %v1459 = vunpack.c.l.b16 %v1420
      %v1460 = vunpack.c.l.b16 %v1421
      %v1461 = vunpack.c.l.b16 %v1422
      %v1462 = vunpack.c.l.b16 %v1423
      %v1463 = vunpack.c.l.b16 %v1424
      %v1464 = vunpack.c.l.b16 %v1425
      %v1465 = vunpack.c.l.b16 %v1426
      %v1466 = vunpack.c.l.b16 %v1427
      %v1467 = vunpack.c.l.b16 %v1428
      %v1468 = vunpack.c.l.b16 %v1429
      %v1469 = vunpack.c.l.b16 %v1430
      %v1470 = vunpack.c.l.b16 %v1431
      %v1471 = vpack.c.b16 %v1456, %v1455
      %v1472 = vpack.c.b16 %v1458, %v1457
      %v1473 = vpack.c.b16 %v1460, %v1459
      %v1474 = vpack.c.b16 %v1462, %v1461
      %v1475 = vpack.c.b16 %v1464, %v1463
      %v1476 = vpack.c.b16 %v1466, %v1465
      %v1477 = vpack.c.b16 %v1468, %v1467
      %v1478 = vpack.c.b16 %v1470, %v1469
      %1487 = vmatprep.subr.bf16.mxu0 0
      %1488 = vmatpush1.bf16.msra.mxu0 %v1471
      %1489 = vmatprep.subr.bf16.mxu0 0
      %1490 = vmatpush1.bf16.msra.mxu0 %v1472
      %1491 = vmatprep.subr.bf16.mxu0 0
      %1492 = vmatpush1.bf16.msra.mxu0 %v1473
      %1493 = vmatprep.subr.bf16.mxu0 0
      %1494 = vmatpush1.bf16.msra.mxu0 %v1474
      %1495 = vmatprep.subr.bf16.mxu0 0
      %1496 = vmatpush1.bf16.msra.mxu0 %v1475
      %1497 = vmatprep.subr.bf16.mxu0 0
      %1498 = vmatpush1.bf16.msra.mxu0 %v1476
      %1499 = vmatprep.subr.bf16.mxu0 0
      %1500 = vmatpush1.bf16.msra.mxu0 %v1477
      %1501 = vmatprep.subr.bf16.mxu0 0
      %1502 = vmatpush1.bf16.msra.mxu0 %v1478
      %1503 = vmatprep.subr.bf16.mxu0 0
      %1504 = vmatpush1.bf16.msra.mxu0 0
      %1505 = vmatprep.subr.bf16.mxu0 0
      %1506 = vmatpush1.bf16.msra.mxu0 0
      %1507 = vmatprep.subr.bf16.mxu0 0
      %1508 = vmatpush1.bf16.msra.mxu0 0
      %1509 = vmatprep.subr.bf16.mxu0 0
      %1510 = vmatpush1.bf16.msra.mxu0 0
      %1511 = vmatprep.subr.bf16.mxu0 0
      %1512 = vmatpush1.bf16.msra.mxu0 0
      %1513 = vmatprep.subr.bf16.mxu0 0
      %1514 = vmatpush1.bf16.msra.mxu0 0
      %1515 = vmatprep.subr.bf16.mxu0 0
      %1516 = vmatpush1.bf16.msra.mxu0 0
      %1517 = vmatprep.subr.bf16.mxu0 0
      %1518 = vmatpush1.bf16.msra.mxu0 0
      %1519 = vmatprep.mubr.bf16.mxu0 0
      %1520 = vmatmul.mubr.bf16.gmra.mrb[0].mxu0 %v1437
      %v1521 = vpop.f32.mrb[0].mxu0
      %v1522 = vadd.f32 0.0, %v1521
      %v1523 = vpop.f32.mrb[0].mxu0
      %v1524 = vpop.f32.mrb[0].mxu0
      %v1525 = vadd.f32 0.0, %v1524
      %v1526 = vpop.f32.mrb[0].mxu0
      %1527 = vdwg.mxu0
      %v1528 = vadd.f32 %v1412, %v1522
      %v1529 = vadd.f32 %v1413, %v1525
      %v1530 = vld [vmem:[%s5] sm:$0x1]
      %v1532 = vlaneseq
      %v1533 = vshrl.u32 %v1532, 7
      %v1534 = vsub.s32 0, %v1533
      %v1535 = vrot.slane %v1530, %v1534
      %v1537 = vadd.f32 %v1528, %v1535
      %v1538 = vadd.f32 %v1529, %v1535
      %vm1539 = vcmp.ge.f32.partialorder %v1537, 0.0
      %vm1540 = vcmp.ge.f32.partialorder %v1538, 0.0
      %v1541 = vmul.f32 %v1537, 0.1
      %v1542 = vmul.f32 %v1538, 0.1
      %v1543 = vsel %vm1539, %v1537, %v1541
      %v1544 = vsel %vm1540, %v1538, %v1542
      %v1545 = vpack.c.bf16 %v1544, %v1543
      %v1547 = vunpack.c.l.b16 %v1545
      %v1548 = vunpack.c.h.b16 %v1545
      %v1549 = vpack.c.b16 %v1547, %v1547
      %v1550 = vpack.c.b16 %v1548, %v1548
      %1553 = vst [vmem:[%s437] sm:$0xf] %v1549
      %1554 = vst [vmem:[%s437 + $0x4] sm:$0xf] %v1550
      %v1555 = vld [vmem:[%s416] sm:$0xf]
      %v1556 = vld [vmem:[%s416 + $0x4] sm:$0xf]
      %v1557 = vld [vmem:[%s416 + $0x8] sm:$0x1]
      %v1558 = vld [vmem:[%s4] sm:$0xf]
      %v1559 = vld [vmem:[%s4 + $0x4] sm:$0xf]
      %v1560 = vld [vmem:[%s4 + $0x8] sm:$0xf]
      %v1561 = vld [vmem:[%s4 + $0xc] sm:$0xf]
      %v1562 = vld [vmem:[%s4 + $0x10] sm:$0xf]
      %v1563 = vld [vmem:[%s4 + $0x14] sm:$0xf]
      %v1564 = vld [vmem:[%s4 + $0x18] sm:$0xf]
      %v1565 = vld [vmem:[%s4 + $0x1c] sm:$0xf]
      %v1566 = vld [vmem:[%s4 + $0x20] sm:$0xf]
      %v1567 = vld [vmem:[%s4 + $0x24] sm:$0xf]
      %v1568 = vld [vmem:[%s4 + $0x28] sm:$0xf]
      %v1569 = vld [vmem:[%s4 + $0x2c] sm:$0xf]
      %v1570 = vld [vmem:[%s4 + $0x30] sm:$0xf]
      %v1571 = vld [vmem:[%s4 + $0x34] sm:$0xf]
      %v1572 = vld [vmem:[%s4 + $0x38] sm:$0xf]
      %v1573 = vld [vmem:[%s4 + $0x3c] sm:$0xf]
      %v1574 = vld [vmem:[%s6] sm:$0x1]
      %v1576 = vlaneseq
      %v1577 = vshrl.u32 %v1576, 7
      %v1578 = vsub.s32 0, %v1577
      %v1579 = vrot.slane %v1574, %v1578
      %v1584 = vunpack.c.l.b16 %v1555
      %v1585 = vunpack.c.l.b16 %v1556
      %v1586 = vunpack.c.l.b16 %v1557
      %v1587 = vpack.c.b16 %v1585, %v1584
      %v1588 = vpack.c.b16 %v1586, %v1586
      %v1590 = vshrl.u32 %v1587, 16
      %v1592 = vshll.u32 %v1587, 16
      %v1594 = vrot.slane %v1592, 1
      %v1595 = vor.u32 %v1590, %v1594
      %v1597 = vshll.u32 %v1588, 16
      %v1599 = vrot.slane %v1597, 1
      %v1600 = vsel %vm492, %v1595, %v1599
      %v1618 = vunpack.c.l.b16 %v1558
      %v1619 = vunpack.c.l.b16 %v1559
      %v1620 = vunpack.c.l.b16 %v1560
      %v1621 = vunpack.c.l.b16 %v1561
      %v1622 = vunpack.c.l.b16 %v1562
      %v1623 = vunpack.c.l.b16 %v1563
      %v1624 = vunpack.c.l.b16 %v1564
      %v1625 = vunpack.c.l.b16 %v1565
      %v1626 = vunpack.c.l.b16 %v1566
      %v1627 = vunpack.c.l.b16 %v1567
      %v1628 = vunpack.c.l.b16 %v1568
      %v1629 = vunpack.c.l.b16 %v1569
      %v1630 = vunpack.c.l.b16 %v1570
      %v1631 = vunpack.c.l.b16 %v1571
      %v1632 = vunpack.c.l.b16 %v1572
      %v1633 = vunpack.c.l.b16 %v1573
      %v1634 = vpack.c.b16 %v1619, %v1618
      %v1635 = vpack.c.b16 %v1621, %v1620
      %v1636 = vpack.c.b16 %v1623, %v1622
      %v1637 = vpack.c.b16 %v1625, %v1624
      %v1638 = vpack.c.b16 %v1627, %v1626
      %v1639 = vpack.c.b16 %v1629, %v1628
      %v1640 = vpack.c.b16 %v1631, %v1630
      %v1641 = vpack.c.b16 %v1633, %v1632
      %1650 = vmatprep.subr.bf16.mxu0 0
      %1651 = vmatpush1.bf16.msra.mxu0 %v1634
      %1652 = vmatprep.subr.bf16.mxu0 0
      %1653 = vmatpush1.bf16.msra.mxu0 %v1635
      %1654 = vmatprep.subr.bf16.mxu0 0
      %1655 = vmatpush1.bf16.msra.mxu0 %v1636
      %1656 = vmatprep.subr.bf16.mxu0 0
      %1657 = vmatpush1.bf16.msra.mxu0 %v1637
      %1658 = vmatprep.subr.bf16.mxu0 0
      %1659 = vmatpush1.bf16.msra.mxu0 %v1638
      %1660 = vmatprep.subr.bf16.mxu0 0
      %1661 = vmatpush1.bf16.msra.mxu0 %v1639
      %1662 = vmatprep.subr.bf16.mxu0 0
      %1663 = vmatpush1.bf16.msra.mxu0 %v1640
      %1664 = vmatprep.subr.bf16.mxu0 0
      %1665 = vmatpush1.bf16.msra.mxu0 %v1641
      %1666 = vmatprep.subr.bf16.mxu0 0
      %1667 = vmatpush1.bf16.msra.mxu0 0
      %1668 = vmatprep.subr.bf16.mxu0 0
      %1669 = vmatpush1.bf16.msra.mxu0 0
      %1670 = vmatprep.subr.bf16.mxu0 0
      %1671 = vmatpush1.bf16.msra.mxu0 0
      %1672 = vmatprep.subr.bf16.mxu0 0
      %1673 = vmatpush1.bf16.msra.mxu0 0
      %1674 = vmatprep.subr.bf16.mxu0 0
      %1675 = vmatpush1.bf16.msra.mxu0 0
      %1676 = vmatprep.subr.bf16.mxu0 0
      %1677 = vmatpush1.bf16.msra.mxu0 0
      %1678 = vmatprep.subr.bf16.mxu0 0
      %1679 = vmatpush1.bf16.msra.mxu0 0
      %1680 = vmatprep.subr.bf16.mxu0 0
      %1681 = vmatpush1.bf16.msra.mxu0 0
      %1682 = vmatprep.mubr.bf16.mxu0 0
      %1683 = vmatmul.mubr.bf16.gmra.mrb[0].mxu0 %v1600
      %v1684 = vpop.f32.mrb[0].mxu0
      %v1685 = vadd.f32 %v1579, %v1684
      %v1686 = vpop.f32.mrb[0].mxu0
      %v1687 = vpop.f32.mrb[0].mxu0
      %v1688 = vadd.f32 %v1579, %v1687
      %v1689 = vpop.f32.mrb[0].mxu0
      %1690 = vdwg.mxu0
      %v1691 = vpack.c.bf16 %v1688, %v1685
      %v1693 = vunpack.c.l.b16 %v1691
      %v1694 = vunpack.c.h.b16 %v1691
      %v1695 = vpack.c.b16 %v1693, %v1693
      %v1696 = vpack.c.b16 %v1694, %v1694
      %1699 = vst [vmem:[%s446] sm:$0xf] %v1695
      %1700 = vst [vmem:[%s446 + $0x4] sm:$0xf] %v1696
      %p1701 = scmp.lt.s32.totalorder %s24, 1
      %s1702 = scalar_select %p1701, %s24, 1
      %p1703 = scmp.lt.s32.totalorder %s25, 3
      %s1704 = scalar_select %p1703, %s25, 3
      %s1705 = smul.addr %s1704, 2
      %s1706 = smul.addr %s1702, 8
      %s1707 = sadd.s32 %s1705, %s1706
      %s1708 = smul.addr %s1707, 4
      %s1709 = scalar_lea.vmem %s7, %s1708
      %p1710 = scmp.lt.s32.totalorder %s24, 1
      %s1711 = scalar_select %p1710, %s24, 1
      %p1712 = scmp.lt.s32.totalorder %s25, 3
      %s1713 = scalar_select %p1712, %s25, 3
      %s1714 = smul.addr %s1713, 2
      %s1715 = smul.addr %s1711, 8
      %s1716 = sadd.s32 %s1714, %s1715
      %s1717 = smul.addr %s1716, 4
      %s1718 = scalar_lea.vmem %s8, %s1717
      // Predicated region
      $region49: #{gated3d_block_forward.2} parent=47 // pred_check
        %p1719 = pneg %p224
      $region50: #{gated3d_block_forward.2} parent=47 // pred_check_branch
        %1721 = sbr.rel (%p1719) target = $region52
      $region51: #{gated3d_block_forward.2} parent=47 // pred_region
        _
      $region52: #{gated3d_block_forward.2} parent=47 // pred_fallthru
        _
      // Predicated region
      $region53: #{gated3d_block_forward.2} parent=47 // pred_check
        %p1722 = pneg %p252
      $region54: #{gated3d_block_forward.2} parent=47 // pred_check_branch
        %1724 = sbr.rel (%p1722) target = $region56
      $region55: #{gated3d_block_forward.2} parent=47 // pred_region
        _
      $region56: #{gated3d_block_forward.2} parent=47 // pred_fallthru
        _
    $region48: #{gated3d_block_forward.2} parent=5 // pred_fallthru
      _
    %p1725 = scmp.le.s32.totalorder 2, %s15
    // Predicated region
    $region57: #{gated3d_block_forward.2} parent=5 // pred_check
      %p1726 = pneg %p1725
    $region58: #{gated3d_block_forward.2} parent=5 // pred_check_branch
      %1728 = sbr.rel (%p1726) target = $region60
    $region59: #{gated3d_block_forward.2} parent=5 // pred_region
      %s1729 = ssub.s32 %s15, 2
      // Predicated region
      $region61: #{gated3d_block_forward.2} parent=59 // pred_check
        %p1730 = pneg %p230
      $region62: #{gated3d_block_forward.2} parent=59 // pred_check_branch
        %1732 = sbr.rel (%p1730) target = $region64
      $region63: #{gated3d_block_forward.2} parent=59 // pred_region
        %p1733 = scmp.lt.s32.totalorder %s26, 1
        %s1734 = scalar_select %p1733, %s26, 1
        %p1735 = scmp.lt.s32.totalorder %s27, 3
        %s1736 = scalar_select %p1735, %s27, 3
        %s1737 = smul.addr %s1736, 2
        %s1738 = smul.addr %s1734, 8
        %s1739 = sadd.s32 %s1737, %s1738
        %s1740 = smul.addr %s1739, 4
        %s1741 = scalar_lea.vmem %s7, %s1740
      $region64: #{gated3d_block_forward.2} parent=59 // pred_fallthru
        _
      // Predicated region
      $region65: #{gated3d_block_forward.2} parent=59 // pred_check
        %p1742 = pneg %p258
      $region66: #{gated3d_block_forward.2} parent=59 // pred_check_branch
        %1744 = sbr.rel (%p1742) target = $region68
      $region67: #{gated3d_block_forward.2} parent=59 // pred_region
        %p1745 = scmp.lt.s32.totalorder %s26, 1
        %s1746 = scalar_select %p1745, %s26, 1
        %p1747 = scmp.lt.s32.totalorder %s27, 3
        %s1748 = scalar_select %p1747, %s27, 3
        %s1749 = smul.addr %s1748, 2
        %s1750 = smul.addr %s1746, 8
        %s1751 = sadd.s32 %s1749, %s1750
        %s1752 = smul.addr %s1751, 4
        %s1753 = scalar_lea.vmem %s8, %s1752
      $region68: #{gated3d_block_forward.2} parent=59 // pred_fallthru
        _
    $region60: #{gated3d_block_forward.2} parent=5 // pred_fallthru
      _
  $region6: #{gated3d_block_forward.2} parent=0 // loop_footer
    %s19 = sadd.s32 1, %s15
  $region7: #{gated3d_block_forward.2} parent=0 // loop_footer_branch
    %14 = sbr.rel target = $region3
  $region8: #{gated3d_block_forward.2} parent=0 // loop_exit
    _

// kernel: gated3d_block_forward.3
$region0: #{gated3d_block_forward.3}
  #allocation0 [shape = 'u32[]', space=smem, size = 0x4, offset = 0x4, fixed_abs, tag = 'smem constant byte address 0x4 - core index']
  #allocation1 [shape = 'u32[144,128]{1,0:T(1,128)}', space=vmem, size = 0x12000, scoped, tag = 'internal scratch']
  %s0 = inlined_call_operand.vmem [shape: bf16[2,6,18,128], index: 0, kind: input, shape index: {}, may-alias: {0,1,2}]
  %s1 = inlined_call_operand.vmem [shape: bf16[2,6,18,128], index: 1, kind: input, shape index: {}, may-alias: {0,1,2}]
  %s2 = inlined_call_operand.vmem [shape: bf16[2,6,18,128], index: 2, kind: input, shape index: {}, may-alias: {0,1,2}]
  %s3 = inlined_call_operand.vmem [shape: bf16[9,128,128], index: 3, kind: input, shape index: {}]
  %s4 = inlined_call_operand.vmem [shape: f32[1,128], index: 4, kind: input, shape index: {}]
  %s5 = inlined_call_operand.vmem [shape: bf16[2,4,16,128], index: 5, kind: input, shape index: {}]
  %s6 = inlined_call_operand.vmem [shape: f32[2,4,16,128], index: 6, kind: input, shape index: {}]
  %s7 = inlined_call_operand.vmem [shape: f32[2,4,16,128], index: 7, kind: output, shape index: {}]
  %s8 = sld [smem:[#allocation0]]
  $region61: #{gated3d_block_forward.3} parent=0
    _
  %s10 = ssub.s32 1, %s8
  %s11 = scalar_select 0, %s10, %s8
  loop: start=0, step=1, limit=10
  $region2: #{gated3d_block_forward.3} parent=0 // loop_pre_header
    _
  $region3: #{gated3d_block_forward.3} parent=0 // loop_header
    %s13 = sphi 0, %s17
    %p14 = scmp.ge.s32.totalorder %s13, 10
    %s20 = sphi 0, %s32
    %s21 = sphi 0, %s28
    %s22 = sphi 0, %s20
    %s23 = sphi 0, %s21
    %s24 = sphi 0, %s22
    %s25 = sphi 0, %s23
    %s37 = sphi 0, %s39
    %s40 = sphi 0, %s37
    %s41 = sphi 0, %s40
    %s57 = sphi 0, %s41
    %s67 = sphi 0, %s69
    %s70 = sphi 0, %s67
    %s71 = sphi 0, %s70
    %s87 = sphi 0, %s71
    %s97 = sphi 0, %s99
    %s100 = sphi 0, %s97
    %s101 = sphi 0, %s100
    %s117 = sphi 0, %s101
    %s121 = sphi 0, %s121
    %s123 = sphi 0, %s121
    %s124 = sphi 0, %s123
    %s138 = sphi 0, %s124
    %s142 = sphi 0, %s142
    %s144 = sphi 0, %s142
    %s145 = sphi 0, %s144
    %s159 = sphi 0, %s145
    %s167 = sphi 0, %s169
    %s170 = sphi 0, %s167
    %s171 = sphi 0, %s170
    %s187 = sphi 0, %s171
    %s195 = sphi 0, %s197
    %s198 = sphi 0, %s195
    %s199 = sphi 0, %s198
    %s215 = sphi 0, %s199
    %s223 = sphi 0, %s225
    %s226 = sphi 0, %s223
    %s227 = sphi 0, %s226
    %s243 = sphi 0, %s227
  $region4: #{gated3d_block_forward.3} parent=0 // loop_header_branch
    %16 = sbr.rel (%p14) target = $region8
  $region5: #{gated3d_block_forward.3} parent=0 // loop_body
    %s18 = ssub.s32 %s13, 1
    %s19 = ssub.s32 %s13, 2
    %s26 = sadd.s32 1, %s21
    %p27 = scmp.ge.s32.totalorder %s26, 4
    %s28 = scalar_select %p27, 0, %s26
    %s29 = sadd.s32 1, %s20
    %s30 = scalar_select %p27, %s29, %s20
    %p31 = scmp.ge.s32.totalorder %s30, 2
    %s32 = scalar_select %p31, 0, %s30
    %s33 = ssub.s32 %s20, %s32
    %s34 = ssub.s32 %s21, %s28
    %s35 = sor.u32 %s33, %s34
    %p36 = scmp.eq.s32.totalorder %s35, 0
    %s38 = sadd.s32 %s37, 1
    %s39 = scalar_select %p36, %s37, %s38
    %p42 = pneg %p36
    %p43 = scmp.eq.s32.totalorder %s13, 7
    %p44 = por %p42, %p43
    %p45 = scmp.ne.s32.totalorder %s37, %s40
    %p46 = scmp.eq.s32.totalorder %s13, 0
    %p47 = por %p45, %p46
    %p48 = scmp.ne.s32.totalorder %s37, %s40
    %p49 = scmp.eq.s32.totalorder %s18, 7
    %p50 = por %p48, %p49
    %p51 = scmp.ne.s32.totalorder %s40, %s41
    %p52 = scmp.eq.s32.totalorder %s18, 0
    %p53 = por %p51, %p52
    %p54 = scmp.ne.s32.totalorder %s40, %s41
    %p55 = scmp.eq.s32.totalorder %s19, 7
    %p56 = por %p54, %p55
    %p58 = scmp.ne.s32.totalorder %s41, %s57
    %p59 = scmp.eq.s32.totalorder %s19, 0
    %p60 = por %p58, %p59
    %s61 = sadd.s32 %s21, 1
    %s62 = sadd.s32 %s28, 1
    %s63 = ssub.s32 %s20, %s32
    %s64 = ssub.s32 %s61, %s62
    %s65 = sor.u32 %s63, %s64
    %p66 = scmp.eq.s32.totalorder %s65, 0
    %s68 = sadd.s32 %s67, 1
    %s69 = scalar_select %p66, %s67, %s68
    %p72 = pneg %p66
    %p73 = scmp.eq.s32.totalorder %s13, 7
    %p74 = por %p72, %p73
    %p75 = scmp.ne.s32.totalorder %s67, %s70
    %p76 = scmp.eq.s32.totalorder %s13, 0
    %p77 = por %p75, %p76
    %p78 = scmp.ne.s32.totalorder %s67, %s70
    %p79 = scmp.eq.s32.totalorder %s18, 7
    %p80 = por %p78, %p79
    %p81 = scmp.ne.s32.totalorder %s70, %s71
    %p82 = scmp.eq.s32.totalorder %s18, 0
    %p83 = por %p81, %p82
    %p84 = scmp.ne.s32.totalorder %s70, %s71
    %p85 = scmp.eq.s32.totalorder %s19, 7
    %p86 = por %p84, %p85
    %p88 = scmp.ne.s32.totalorder %s71, %s87
    %p89 = scmp.eq.s32.totalorder %s19, 0
    %p90 = por %p88, %p89
    %s91 = sadd.s32 %s21, 2
    %s92 = sadd.s32 %s28, 2
    %s93 = ssub.s32 %s20, %s32
    %s94 = ssub.s32 %s91, %s92
    %s95 = sor.u32 %s93, %s94
    %p96 = scmp.eq.s32.totalorder %s95, 0
    %s98 = sadd.s32 %s97, 1
    %s99 = scalar_select %p96, %s97, %s98
    %p102 = pneg %p96
    %p103 = scmp.eq.s32.totalorder %s13, 7
    %p104 = por %p102, %p103
    %p105 = scmp.ne.s32.totalorder %s97, %s100
    %p106 = scmp.eq.s32.totalorder %s13, 0
    %p107 = por %p105, %p106
    %p108 = scmp.ne.s32.totalorder %s97, %s100
    %p109 = scmp.eq.s32.totalorder %s18, 7
    %p110 = por %p108, %p109
    %p111 = scmp.ne.s32.totalorder %s100, %s101
    %p112 = scmp.eq.s32.totalorder %s18, 0
    %p113 = por %p111, %p112
    %p114 = scmp.ne.s32.totalorder %s100, %s101
    %p115 = scmp.eq.s32.totalorder %s19, 7
    %p116 = por %p114, %p115
    %p118 = scmp.ne.s32.totalorder %s101, %s117
    %p119 = scmp.eq.s32.totalorder %s19, 0
    %p120 = por %p118, %p119
    %s122 = sadd.s32 %s121, 1
    %p125 = scmp.eq.s32.totalorder %s13, 7
    %p126 = scmp.ne.s32.totalorder %s121, %s123
    %p127 = scmp.eq.s32.totalorder %s13, 0
    %p128 = por %p126, %p127
    %p129 = scmp.ne.s32.totalorder %s121, %s123
    %p130 = scmp.eq.s32.totalorder %s18, 7
    %p131 = por %p129, %p130
    %p132 = scmp.ne.s32.totalorder %s123, %s124
    %p133 = scmp.eq.s32.totalorder %s18, 0
    %p134 = por %p132, %p133
    %p135 = scmp.ne.s32.totalorder %s123, %s124
    %p136 = scmp.eq.s32.totalorder %s19, 7
    %p137 = por %p135, %p136
    %p139 = scmp.ne.s32.totalorder %s124, %s138
    %p140 = scmp.eq.s32.totalorder %s19, 0
    %p141 = por %p139, %p140
    %s143 = sadd.s32 %s142, 1
    %p146 = scmp.eq.s32.totalorder %s13, 7
    %p147 = scmp.ne.s32.totalorder %s142, %s144
    %p148 = scmp.eq.s32.totalorder %s13, 0
    %p149 = por %p147, %p148
    %p150 = scmp.ne.s32.totalorder %s142, %s144
    %p151 = scmp.eq.s32.totalorder %s18, 7
    %p152 = por %p150, %p151
    %p153 = scmp.ne.s32.totalorder %s144, %s145
    %p154 = scmp.eq.s32.totalorder %s18, 0
    %p155 = por %p153, %p154
    %p156 = scmp.ne.s32.totalorder %s144, %s145
    %p157 = scmp.eq.s32.totalorder %s19, 7
    %p158 = por %p156, %p157
    %p160 = scmp.ne.s32.totalorder %s145, %s159
    %p161 = scmp.eq.s32.totalorder %s19, 0
    %p162 = por %p160, %p161
    %s163 = ssub.s32 %s20, %s32
    %s164 = ssub.s32 %s21, %s28
    %s165 = sor.u32 %s163, %s164
    %p166 = scmp.eq.s32.totalorder %s165, 0
    %s168 = sadd.s32 %s167, 1
    %s169 = scalar_select %p166, %s167, %s168
    %p172 = pneg %p166
    %p173 = scmp.eq.s32.totalorder %s13, 7
    %p174 = por %p172, %p173
    %p175 = scmp.ne.s32.totalorder %s167, %s170
    %p176 = scmp.eq.s32.totalorder %s13, 0
    %p177 = por %p175, %p176
    %p178 = scmp.ne.s32.totalorder %s167, %s170
    %p179 = scmp.eq.s32.totalorder %s18, 7
    %p180 = por %p178, %p179
    %p181 = scmp.ne.s32.totalorder %s170, %s171
    %p182 = scmp.eq.s32.totalorder %s18, 0
    %p183 = por %p181, %p182
    %p184 = scmp.ne.s32.totalorder %s170, %s171
    %p185 = scmp.eq.s32.totalorder %s19, 7
    %p186 = por %p184, %p185
    %p188 = scmp.ne.s32.totalorder %s171, %s187
    %p189 = scmp.eq.s32.totalorder %s19, 0
    %p190 = por %p188, %p189
    %s191 = ssub.s32 %s20, %s32
    %s192 = ssub.s32 %s21, %s28
    %s193 = sor.u32 %s191, %s192
    %p194 = scmp.eq.s32.totalorder %s193, 0
    %s196 = sadd.s32 %s195, 1
    %s197 = scalar_select %p194, %s195, %s196
    %p200 = pneg %p194
    %p201 = scmp.eq.s32.totalorder %s13, 7
    %p202 = por %p200, %p201
    %p203 = scmp.ne.s32.totalorder %s195, %s198
    %p204 = scmp.eq.s32.totalorder %s13, 0
    %p205 = por %p203, %p204
    %p206 = scmp.ne.s32.totalorder %s195, %s198
    %p207 = scmp.eq.s32.totalorder %s18, 7
    %p208 = por %p206, %p207
    %p209 = scmp.ne.s32.totalorder %s198, %s199
    %p210 = scmp.eq.s32.totalorder %s18, 0
    %p211 = por %p209, %p210
    %p212 = scmp.ne.s32.totalorder %s198, %s199
    %p213 = scmp.eq.s32.totalorder %s19, 7
    %p214 = por %p212, %p213
    %p216 = scmp.ne.s32.totalorder %s199, %s215
    %p217 = scmp.eq.s32.totalorder %s19, 0
    %p218 = por %p216, %p217
    %s219 = ssub.s32 %s20, %s32
    %s220 = ssub.s32 %s21, %s28
    %s221 = sor.u32 %s219, %s220
    %p222 = scmp.eq.s32.totalorder %s221, 0
    %s224 = sadd.s32 %s223, 1
    %s225 = scalar_select %p222, %s223, %s224
    %p228 = pneg %p222
    %p229 = scmp.eq.s32.totalorder %s13, 7
    %p230 = por %p228, %p229
    %p231 = scmp.ne.s32.totalorder %s223, %s226
    %p232 = scmp.eq.s32.totalorder %s13, 0
    %p233 = por %p231, %p232
    %p234 = scmp.ne.s32.totalorder %s223, %s226
    %p235 = scmp.eq.s32.totalorder %s18, 7
    %p236 = por %p234, %p235
    %p237 = scmp.ne.s32.totalorder %s226, %s227
    %p238 = scmp.eq.s32.totalorder %s18, 0
    %p239 = por %p237, %p238
    %p240 = scmp.ne.s32.totalorder %s226, %s227
    %p241 = scmp.eq.s32.totalorder %s19, 7
    %p242 = por %p240, %p241
    %p244 = scmp.ne.s32.totalorder %s227, %s243
    %p245 = scmp.eq.s32.totalorder %s19, 0
    %p246 = por %p244, %p245
    %p247 = scmp.le.s32.totalorder 1, %s13
    %p248 = scmp.lt.s32.totalorder %s13, 9
    %p249 = pnand %p247, %p248
    %p250 = pneg %p249
    // Predicated region
    $region9: #{gated3d_block_forward.3} parent=5 // pred_check
      _
    $region10: #{gated3d_block_forward.3} parent=5 // pred_check_branch
      %252 = sbr.rel (%p249) target = $region12
    $region11: #{gated3d_block_forward.3} parent=5 // pred_region
      %s253 = ssub.s32 %s13, 1
      // Predicated region
      $region13: #{gated3d_block_forward.3} parent=11 // pred_check
        %p254 = pneg %p134
      $region14: #{gated3d_block_forward.3} parent=11 // pred_check_branch
        %256 = sbr.rel (%p254) target = $region16
      $region15: #{gated3d_block_forward.3} parent=11 // pred_region
        _
      $region16: #{gated3d_block_forward.3} parent=11 // pred_fallthru
        _
      // Predicated region
      $region17: #{gated3d_block_forward.3} parent=11 // pred_check
        %p257 = pneg %p155
      $region18: #{gated3d_block_forward.3} parent=11 // pred_check_branch
        %259 = sbr.rel (%p257) target = $region20
      $region19: #{gated3d_block_forward.3} parent=11 // pred_region
        _
      $region20: #{gated3d_block_forward.3} parent=11 // pred_fallthru
        _
    $region12: #{gated3d_block_forward.3} parent=5 // pred_fallthru
      _
    %p260 = scmp.lt.s32.totalorder %s13, 8
    // Predicated region
    $region21: #{gated3d_block_forward.3} parent=5 // pred_check
      %p261 = pneg %p260
    $region22: #{gated3d_block_forward.3} parent=5 // pred_check_branch
      %263 = sbr.rel (%p261) target = $region24
    $region23: #{gated3d_block_forward.3} parent=5 // pred_region
      // Predicated region
      $region25: #{gated3d_block_forward.3} parent=23 // pred_check
        %p264 = pneg %p47
      $region26: #{gated3d_block_forward.3} parent=23 // pred_check_branch
        %266 = sbr.rel (%p264) target = $region28
      $region27: #{gated3d_block_forward.3} parent=23 // pred_region
        %p267 = scmp.lt.s32.totalorder %s20, 1
        %s268 = scalar_select %p267, %s20, 1
        %p269 = scmp.lt.s32.totalorder %s21, 5
        %s270 = scalar_select %p269, %s21, 5
        %s271 = smul.addr %s270, 3
        %s272 = smul.addr %s268, 18
        %s273 = sadd.s32 %s271, %s272
        %s274 = smul.addr %s273, 4
        %s275 = scalar_lea.vmem %s0, %s274
      $region28: #{gated3d_block_forward.3} parent=23 // pred_fallthru
        _
      // Predicated region
      $region29: #{gated3d_block_forward.3} parent=23 // pred_check
        %p276 = pneg %p77
      $region30: #{gated3d_block_forward.3} parent=23 // pred_check_branch
        %278 = sbr.rel (%p276) target = $region32
      $region31: #{gated3d_block_forward.3} parent=23 // pred_region
        %s279 = sadd.s32 %s21, 1
        %p280 = scmp.lt.s32.totalorder %s20, 1
        %s281 = scalar_select %p280, %s20, 1
        %p282 = scmp.lt.s32.totalorder %s279, 5
        %s283 = scalar_select %p282, %s279, 5
        %s284 = smul.addr %s283, 3
        %s285 = smul.addr %s281, 18
        %s286 = sadd.s32 %s284, %s285
        %s287 = smul.addr %s286, 4
        %s288 = scalar_lea.vmem %s1, %s287
        %s289 = sadd.s32 %s21, 1
      $region32: #{gated3d_block_forward.3} parent=23 // pred_fallthru
        _
      // Predicated region
      $region33: #{gated3d_block_forward.3} parent=23 // pred_check
        %p290 = pneg %p107
      $region34: #{gated3d_block_forward.3} parent=23 // pred_check_branch
        %292 = sbr.rel (%p290) target = $region36
      $region35: #{gated3d_block_forward.3} parent=23 // pred_region
        %s293 = sadd.s32 %s21, 2
        %p294 = scmp.lt.s32.totalorder %s20, 1
        %s295 = scalar_select %p294, %s20, 1
        %p296 = scmp.lt.s32.totalorder %s293, 5
        %s297 = scalar_select %p296, %s293, 5
        %s298 = smul.addr %s297, 3
        %s299 = smul.addr %s295, 18
        %s300 = sadd.s32 %s298, %s299
        %s301 = smul.addr %s300, 4
        %s302 = scalar_lea.vmem %s2, %s301
        %s303 = sadd.s32 %s21, 2
      $region36: #{gated3d_block_forward.3} parent=23 // pred_fallthru
        _
      // Predicated region
      $region37: #{gated3d_block_forward.3} parent=23 // pred_check
        %p304 = pneg %p177
      $region38: #{gated3d_block_forward.3} parent=23 // pred_check_branch
        %306 = sbr.rel (%p304) target = $region40
      $region39: #{gated3d_block_forward.3} parent=23 // pred_region
        %p307 = scmp.lt.s32.totalorder %s20, 1
        %s308 = scalar_select %p307, %s20, 1
        %p309 = scmp.lt.s32.totalorder %s21, 3
        %s310 = scalar_select %p309, %s21, 3
        %s311 = smul.addr %s310, 2
        %s312 = smul.addr %s308, 8
        %s313 = sadd.s32 %s311, %s312
        %s314 = smul.addr %s313, 4
        %s315 = scalar_lea.vmem %s5, %s314
      $region40: #{gated3d_block_forward.3} parent=23 // pred_fallthru
        _
      // Predicated region
      $region41: #{gated3d_block_forward.3} parent=23 // pred_check
        %p316 = pneg %p205
      $region42: #{gated3d_block_forward.3} parent=23 // pred_check_branch
        %318 = sbr.rel (%p316) target = $region44
      $region43: #{gated3d_block_forward.3} parent=23 // pred_region
        %p319 = scmp.lt.s32.totalorder %s20, 1
        %s320 = scalar_select %p319, %s20, 1
        %p321 = scmp.lt.s32.totalorder %s21, 3
        %s322 = scalar_select %p321, %s21, 3
        %s323 = smul.addr %s322, 2
        %s324 = smul.addr %s320, 8
        %s325 = sadd.s32 %s323, %s324
        %s326 = smul.addr %s325, 8
        %s327 = scalar_lea.vmem %s6, %s326
      $region44: #{gated3d_block_forward.3} parent=23 // pred_fallthru
        _
    $region24: #{gated3d_block_forward.3} parent=5 // pred_fallthru
      _
    %p328 = scmp.le.s32.totalorder 1, %s13
    %p329 = scmp.lt.s32.totalorder %s13, 9
    %p330 = pnand %p328, %p329
    %p331 = pneg %p330
    // Predicated region
    $region45: #{gated3d_block_forward.3} parent=5 // pred_check
      _
    $region46: #{gated3d_block_forward.3} parent=5 // pred_check_branch
      %333 = sbr.rel (%p330) target = $region48
    $region47: #{gated3d_block_forward.3} parent=5 // pred_region
      %s334 = ssub.s32 %s13, 1
      %p335 = scmp.lt.s32.totalorder %s22, 1
      %s336 = scalar_select %p335, %s22, 1
      %p337 = scmp.lt.s32.totalorder %s23, 5
      %s338 = scalar_select %p337, %s23, 5
      %s339 = smul.addr %s338, 3
      %s340 = smul.addr %s336, 18
      %s341 = sadd.s32 %s339, %s340
      %s342 = smul.addr %s341, 4
      %s343 = scalar_lea.vmem %s0, %s342
      %p344 = pneg %p53
      %p345 = pneg %p50
      %s346 = sadd.s32 %s23, 1
      %p347 = scmp.lt.s32.totalorder %s22, 1
      %s348 = scalar_select %p347, %s22, 1
      %p349 = scmp.lt.s32.totalorder %s346, 5
      %s350 = scalar_select %p349, %s346, 5
      %s351 = smul.addr %s350, 3
      %s352 = smul.addr %s348, 18
      %s353 = sadd.s32 %s351, %s352
      %s354 = smul.addr %s353, 4
      %s355 = scalar_lea.vmem %s1, %s354
      %p356 = pneg %p83
      %p357 = pneg %p80
      %s358 = sadd.s32 %s23, 2
      %p359 = scmp.lt.s32.totalorder %s22, 1
      %s360 = scalar_select %p359, %s22, 1
      %p361 = scmp.lt.s32.totalorder %s358, 5
      %s362 = scalar_select %p361, %s358, 5
      %s363 = smul.addr %s362, 3
      %s364 = smul.addr %s360, 18
      %s365 = sadd.s32 %s363, %s364
      %s366 = smul.addr %s365, 4
      %s367 = scalar_lea.vmem %s2, %s366
      %p368 = pneg %p113
      %p369 = pneg %p110
      %p370 = pneg %p134
      %p371 = pneg %p131
      %p372 = pneg %p155
      %p373 = pneg %p152
      %p374 = scmp.lt.s32.totalorder %s22, 1
      %s375 = scalar_select %p374, %s22, 1
      %p376 = scmp.lt.s32.totalorder %s23, 3
      %s377 = scalar_select %p376, %s23, 3
      %s378 = smul.addr %s377, 2
      %s379 = smul.addr %s375, 8
      %s380 = sadd.s32 %s378, %s379
      %s381 = smul.addr %s380, 4
      %s382 = scalar_lea.vmem %s5, %s381
      %p383 = pneg %p183
      %p384 = pneg %p180
      %p385 = scmp.lt.s32.totalorder %s22, 1
      %s386 = scalar_select %p385, %s22, 1
      %p387 = scmp.lt.s32.totalorder %s23, 3
      %s388 = scalar_select %p387, %s23, 3
      %s389 = smul.addr %s388, 2
      %s390 = smul.addr %s386, 8
      %s391 = sadd.s32 %s389, %s390
      %s392 = smul.addr %s391, 8
      %s393 = scalar_lea.vmem %s6, %s392
      %p394 = pneg %p211
      %p395 = pneg %p208
      %p396 = pneg %p239
      %p397 = pneg %p236
      %p398 = scmp.lt.s32.totalorder %s22, 1
      %s399 = scalar_select %p398, %s22, 1
      %p400 = scmp.lt.s32.totalorder %s23, 3
      %s401 = scalar_select %p400, %s23, 3
      %s402 = smul.addr %s401, 2
      %s403 = smul.addr %s399, 8
      %s404 = sadd.s32 %s402, %s403
      %s405 = smul.addr %s404, 8
      %s406 = scalar_lea.vmem %s7, %s405
      %p407 = scmp.lt.s32.totalorder %s22, 1
      %s408 = scalar_select %p407, %s22, 1
      %p409 = scmp.lt.s32.totalorder %s23, 5
      %s410 = scalar_select %p409, %s23, 5
      %s411 = smul.addr %s410, 3
      %s412 = smul.addr %s408, 18
      %s413 = sadd.s32 %s411, %s412
      %s414 = smul.addr %s413, 4
      %s415 = scalar_lea.vmem %s0, %s414
      %s416 = sadd.s32 %s23, 1
      %p417 = scmp.lt.s32.totalorder %s22, 1
      %s418 = scalar_select %p417, %s22, 1
      %p419 = scmp.lt.s32.totalorder %s416, 5
      %s420 = scalar_select %p419, %s416, 5
      %s421 = smul.addr %s420, 3
      %s422 = smul.addr %s418, 18
      %s423 = sadd.s32 %s421, %s422
      %s424 = smul.addr %s423, 4
      %s425 = scalar_lea.vmem %s1, %s424
      %s426 = sadd.s32 %s23, 1
      %s427 = sadd.s32 %s23, 2
      %p428 = scmp.lt.s32.totalorder %s22, 1
      %s429 = scalar_select %p428, %s22, 1
      %p430 = scmp.lt.s32.totalorder %s427, 5
      %s431 = scalar_select %p430, %s427, 5
      %s432 = smul.addr %s431, 3
      %s433 = smul.addr %s429, 18
      %s434 = sadd.s32 %s432, %s433
      %s435 = smul.addr %s434, 4
      %s436 = scalar_lea.vmem %s2, %s435
      %s437 = sadd.s32 %s23, 2
      %p438 = scmp.lt.s32.totalorder %s22, 1
      %s439 = scalar_select %p438, %s22, 1
      %p440 = scmp.lt.s32.totalorder %s23, 3
      %s441 = scalar_select %p440, %s23, 3
      %s442 = smul.addr %s441, 2
      %s443 = smul.addr %s439, 8
      %s444 = sadd.s32 %s442, %s443
      %s445 = smul.addr %s444, 4
      %s446 = scalar_lea.vmem %s5, %s445
      %p447 = scmp.lt.s32.totalorder %s22, 1
      %s448 = scalar_select %p447, %s22, 1
      %p449 = scmp.lt.s32.totalorder %s23, 3
      %s450 = scalar_select %p449, %s23, 3
      %s451 = smul.addr %s450, 2
      %s452 = smul.addr %s448, 8
      %s453 = sadd.s32 %s451, %s452
      %s454 = smul.addr %s453, 8
      %s455 = scalar_lea.vmem %s6, %s454
      %p456 = scmp.lt.s32.totalorder %s22, 1
      %s457 = scalar_select %p456, %s22, 1
      %p458 = scmp.lt.s32.totalorder %s23, 3
      %s459 = scalar_select %p458, %s23, 3
      %s460 = smul.addr %s459, 2
      %s461 = smul.addr %s457, 8
      %s462 = sadd.s32 %s460, %s461
      %s463 = smul.addr %s462, 8
      %s464 = scalar_lea.vmem %s7, %s463
      %v466 = vld [vmem:[%s415] sm:$0xf]
      %v467 = vld [vmem:[%s415 + $0x4] sm:$0xf]
      %v468 = vld [vmem:[%s3] sm:$0xf]
      %v469 = vld [vmem:[%s3 + $0x4] sm:$0xf]
      %v470 = vld [vmem:[%s3 + $0x8] sm:$0xf]
      %v471 = vld [vmem:[%s3 + $0xc] sm:$0xf]
      %v472 = vld [vmem:[%s3 + $0x10] sm:$0xf]
      %v473 = vld [vmem:[%s3 + $0x14] sm:$0xf]
      %v474 = vld [vmem:[%s3 + $0x18] sm:$0xf]
      %v475 = vld [vmem:[%s3 + $0x1c] sm:$0xf]
      %v476 = vld [vmem:[%s3 + $0x20] sm:$0xf]
      %v477 = vld [vmem:[%s3 + $0x24] sm:$0xf]
      %v478 = vld [vmem:[%s3 + $0x28] sm:$0xf]
      %v479 = vld [vmem:[%s3 + $0x2c] sm:$0xf]
      %v480 = vld [vmem:[%s3 + $0x30] sm:$0xf]
      %v481 = vld [vmem:[%s3 + $0x34] sm:$0xf]
      %v482 = vld [vmem:[%s3 + $0x38] sm:$0xf]
      %v483 = vld [vmem:[%s3 + $0x3c] sm:$0xf]
      %v484 = vld [vmem:[%s415 + $0x8] sm:$0x1]
      %s485 = scalar_lea.vmem %s3, 64
      %v486 = vld [vmem:[%s485] sm:$0xf]
      %v487 = vld [vmem:[%s485 + $0x4] sm:$0xf]
      %v488 = vld [vmem:[%s485 + $0x8] sm:$0xf]
      %v489 = vld [vmem:[%s485 + $0xc] sm:$0xf]
      %v490 = vld [vmem:[%s485 + $0x10] sm:$0xf]
      %v491 = vld [vmem:[%s485 + $0x14] sm:$0xf]
      %v492 = vld [vmem:[%s485 + $0x18] sm:$0xf]
      %v493 = vld [vmem:[%s485 + $0x1c] sm:$0xf]
      %v494 = vld [vmem:[%s485 + $0x20] sm:$0xf]
      %v495 = vld [vmem:[%s485 + $0x24] sm:$0xf]
      %v496 = vld [vmem:[%s485 + $0x28] sm:$0xf]
      %v497 = vld [vmem:[%s485 + $0x2c] sm:$0xf]
      %v498 = vld [vmem:[%s485 + $0x30] sm:$0xf]
      %v499 = vld [vmem:[%s485 + $0x34] sm:$0xf]
      %v500 = vld [vmem:[%s485 + $0x38] sm:$0xf]
      %v501 = vld [vmem:[%s485 + $0x3c] sm:$0xf]
      %v505 = vunpack.c.l.b16 %v466
      %v506 = vunpack.c.l.b16 %v467
      %v507 = vunpack.c.l.b16 %v484
      %v508 = vpack.c.b16 %v506, %v505
      %v509 = vpack.c.b16 %v507, %v507
      %vm510 = vsmask.f32 7424
      %v512 = vshrl.u32 %v508, 16
      %v514 = vshll.u32 %v508, 16
      %v516 = vrot.slane %v514, 1
      %v517 = vor.u32 %v512, %v516
      %v519 = vshll.u32 %v509, 16
      %v521 = vrot.slane %v519, 1
      %v522 = vsel %vm510, %v517, %v521
      %v540 = vunpack.c.l.b16 %v486
      %v541 = vunpack.c.l.b16 %v487
      %v542 = vunpack.c.l.b16 %v488
      %v543 = vunpack.c.l.b16 %v489
      %v544 = vunpack.c.l.b16 %v490
      %v545 = vunpack.c.l.b16 %v491
      %v546 = vunpack.c.l.b16 %v492
      %v547 = vunpack.c.l.b16 %v493
      %v548 = vunpack.c.l.b16 %v494
      %v549 = vunpack.c.l.b16 %v495
      %v550 = vunpack.c.l.b16 %v496
      %v551 = vunpack.c.l.b16 %v497
      %v552 = vunpack.c.l.b16 %v498
      %v553 = vunpack.c.l.b16 %v499
      %v554 = vunpack.c.l.b16 %v500
      %v555 = vunpack.c.l.b16 %v501
      %v556 = vpack.c.b16 %v541, %v540
      %v557 = vpack.c.b16 %v543, %v542
      %v558 = vpack.c.b16 %v545, %v544
      %v559 = vpack.c.b16 %v547, %v546
      %v560 = vpack.c.b16 %v549, %v548
      %v561 = vpack.c.b16 %v551, %v550
      %v562 = vpack.c.b16 %v553, %v552
      %v563 = vpack.c.b16 %v555, %v554
      %572 = vmatprep.subr.bf16.mxu0 0
      %573 = vmatpush1.bf16.msra.mxu0 %v556
      %574 = vmatprep.subr.bf16.mxu0 0
      %575 = vmatpush1.bf16.msra.mxu0 %v557
      %576 = vmatprep.subr.bf16.mxu0 0
      %577 = vmatpush1.bf16.msra.mxu0 %v558
      %578 = vmatprep.subr.bf16.mxu0 0
      %579 = vmatpush1.bf16.msra.mxu0 %v559
      %580 = vmatprep.subr.bf16.mxu0 0
      %581 = vmatpush1.bf16.msra.mxu0 %v560
      %582 = vmatprep.subr.bf16.mxu0 0
      %583 = vmatpush1.bf16.msra.mxu0 %v561
      %584 = vmatprep.subr.bf16.mxu0 0
      %585 = vmatpush1.bf16.msra.mxu0 %v562
      %586 = vmatprep.subr.bf16.mxu0 0
      %587 = vmatpush1.bf16.msra.mxu0 %v563
      %588 = vmatprep.subr.bf16.mxu0 0
      %589 = vmatpush1.bf16.msra.mxu0 0
      %590 = vmatprep.subr.bf16.mxu0 0
      %591 = vmatpush1.bf16.msra.mxu0 0
      %592 = vmatprep.subr.bf16.mxu0 0
      %593 = vmatpush1.bf16.msra.mxu0 0
      %594 = vmatprep.subr.bf16.mxu0 0
      %595 = vmatpush1.bf16.msra.mxu0 0
      %596 = vmatprep.subr.bf16.mxu0 0
      %597 = vmatpush1.bf16.msra.mxu0 0
      %598 = vmatprep.subr.bf16.mxu0 0
      %599 = vmatpush1.bf16.msra.mxu0 0
      %600 = vmatprep.subr.bf16.mxu0 0
      %601 = vmatpush1.bf16.msra.mxu0 0
      %602 = vmatprep.subr.bf16.mxu0 0
      %603 = vmatpush1.bf16.msra.mxu0 0
      %604 = vmatprep.mubr.bf16.mxu0 0
      %605 = vmatmul.mubr.bf16.gmra.mrb[0].mxu0 %v522
      %v606 = vpop.f32.mrb[0].mxu0
      %v607 = vadd.f32 0.0, %v606
      %v608 = vpop.f32.mrb[0].mxu0
      %v609 = vpop.f32.mrb[0].mxu0
      %v610 = vadd.f32 0.0, %v609
      %v611 = vpop.f32.mrb[0].mxu0
      %612 = vdwg.mxu0
      %v630 = vunpack.c.l.b16 %v468
      %v631 = vunpack.c.l.b16 %v469
      %v632 = vunpack.c.l.b16 %v470
      %v633 = vunpack.c.l.b16 %v471
      %v634 = vunpack.c.l.b16 %v472
      %v635 = vunpack.c.l.b16 %v473
      %v636 = vunpack.c.l.b16 %v474
      %v637 = vunpack.c.l.b16 %v475
      %v638 = vunpack.c.l.b16 %v476
      %v639 = vunpack.c.l.b16 %v477
      %v640 = vunpack.c.l.b16 %v478
      %v641 = vunpack.c.l.b16 %v479
      %v642 = vunpack.c.l.b16 %v480
      %v643 = vunpack.c.l.b16 %v481
      %v644 = vunpack.c.l.b16 %v482
      %v645 = vunpack.c.l.b16 %v483
      %v646 = vpack.c.b16 %v631, %v630
      %v647 = vpack.c.b16 %v633, %v632
      %v648 = vpack.c.b16 %v635, %v634
      %v649 = vpack.c.b16 %v637, %v636
      %v650 = vpack.c.b16 %v639, %v638
      %v651 = vpack.c.b16 %v641, %v640
      %v652 = vpack.c.b16 %v643, %v642
      %v653 = vpack.c.b16 %v645, %v644
      %662 = vmatprep.subr.bf16.mxu0 0
      %663 = vmatpush1.bf16.msra.mxu0 %v646
      %664 = vmatprep.subr.bf16.mxu0 0
      %665 = vmatpush1.bf16.msra.mxu0 %v647
      %666 = vmatprep.subr.bf16.mxu0 0
      %667 = vmatpush1.bf16.msra.mxu0 %v648
      %668 = vmatprep.subr.bf16.mxu0 0
      %669 = vmatpush1.bf16.msra.mxu0 %v649
      %670 = vmatprep.subr.bf16.mxu0 0
      %671 = vmatpush1.bf16.msra.mxu0 %v650
      %672 = vmatprep.subr.bf16.mxu0 0
      %673 = vmatpush1.bf16.msra.mxu0 %v651
      %674 = vmatprep.subr.bf16.mxu0 0
      %675 = vmatpush1.bf16.msra.mxu0 %v652
      %676 = vmatprep.subr.bf16.mxu0 0
      %677 = vmatpush1.bf16.msra.mxu0 %v653
      %678 = vmatprep.subr.bf16.mxu0 0
      %679 = vmatpush1.bf16.msra.mxu0 0
      %680 = vmatprep.subr.bf16.mxu0 0
      %681 = vmatpush1.bf16.msra.mxu0 0
      %682 = vmatprep.subr.bf16.mxu0 0
      %683 = vmatpush1.bf16.msra.mxu0 0
      %684 = vmatprep.subr.bf16.mxu0 0
      %685 = vmatpush1.bf16.msra.mxu0 0
      %686 = vmatprep.subr.bf16.mxu0 0
      %687 = vmatpush1.bf16.msra.mxu0 0
      %688 = vmatprep.subr.bf16.mxu0 0
      %689 = vmatpush1.bf16.msra.mxu0 0
      %690 = vmatprep.subr.bf16.mxu0 0
      %691 = vmatpush1.bf16.msra.mxu0 0
      %692 = vmatprep.subr.bf16.mxu0 0
      %693 = vmatpush1.bf16.msra.mxu0 0
      %694 = vmatprep.mubr.bf16.mxu0 0
      %695 = vmatmul.mubr.bf16.gmra.mrb[0].mxu0 %v508
      %v696 = vpop.f32.mrb[0].mxu0
      %v697 = vadd.f32 %v607, %v696
      %v698 = vpop.f32.mrb[0].mxu0
      %v699 = vpop.f32.mrb[0].mxu0
      %v700 = vadd.f32 %v610, %v699
      %v701 = vpop.f32.mrb[0].mxu0
      %702 = vdwg.mxu0
      %v703 = vld [vmem:[%s415] sm:$0xe]
      %s704 = scalar_lea.vmem %s3, 128
      %v705 = vld [vmem:[%s704] sm:$0xf]
      %v706 = vld [vmem:[%s704 + $0x4] sm:$0xf]
      %v707 = vld [vmem:[%s704 + $0x8] sm:$0xf]
      %v708 = vld [vmem:[%s704 + $0xc] sm:$0xf]
      %v709 = vld [vmem:[%s704 + $0x10] sm:$0xf]
      %v710 = vld [vmem:[%s704 + $0x14] sm:$0xf]
      %v711 = vld [vmem:[%s704 + $0x18] sm:$0xf]
      %v712 = vld [vmem:[%s704 + $0x1c] sm:$0xf]
      %v713 = vld [vmem:[%s704 + $0x20] sm:$0xf]
      %v714 = vld [vmem:[%s704 + $0x24] sm:$0xf]
      %v715 = vld [vmem:[%s704 + $0x28] sm:$0xf]
      %v716 = vld [vmem:[%s704 + $0x2c] sm:$0xf]
      %v717 = vld [vmem:[%s704 + $0x30] sm:$0xf]
      %v718 = vld [vmem:[%s704 + $0x34] sm:$0xf]
      %v719 = vld [vmem:[%s704 + $0x38] sm:$0xf]
      %v720 = vld [vmem:[%s704 + $0x3c] sm:$0xf]
      %v722 = vunpack.c.l.b16 %v703
      %v723 = vpack.c.b16 %v506, %v722
      %vm724 = vcmask 1046528
      %v725 = vrot.slane %v723, 1
      %v726 = vrot.slane %v509, 1
      %v727 = vsel %vm724, %v725, %v726
      %v745 = vunpack.c.l.b16 %v705
      %v746 = vunpack.c.l.b16 %v706
      %v747 = vunpack.c.l.b16 %v707
      %v748 = vunpack.c.l.b16 %v708
      %v749 = vunpack.c.l.b16 %v709
      %v750 = vunpack.c.l.b16 %v710
      %v751 = vunpack.c.l.b16 %v711
      %v752 = vunpack.c.l.b16 %v712
      %v753 = vunpack.c.l.b16 %v713
      %v754 = vunpack.c.l.b16 %v714
      %v755 = vunpack.c.l.b16 %v715
      %v756 = vunpack.c.l.b16 %v716
      %v757 = vunpack.c.l.b16 %v717
      %v758 = vunpack.c.l.b16 %v718
      %v759 = vunpack.c.l.b16 %v719
      %v760 = vunpack.c.l.b16 %v720
      %v761 = vpack.c.b16 %v746, %v745
      %v762 = vpack.c.b16 %v748, %v747
      %v763 = vpack.c.b16 %v750, %v749
      %v764 = vpack.c.b16 %v752, %v751
      %v765 = vpack.c.b16 %v754, %v753
      %v766 = vpack.c.b16 %v756, %v755
      %v767 = vpack.c.b16 %v758, %v757
      %v768 = vpack.c.b16 %v760, %v759
      %777 = vmatprep.subr.bf16.mxu0 0
      %778 = vmatpush1.bf16.msra.mxu0 %v761
      %779 = vmatprep.subr.bf16.mxu0 0
      %780 = vmatpush1.bf16.msra.mxu0 %v762
      %781 = vmatprep.subr.bf16.mxu0 0
      %782 = vmatpush1.bf16.msra.mxu0 %v763
      %783 = vmatprep.subr.bf16.mxu0 0
      %784 = vmatpush1.bf16.msra.mxu0 %v764
      %785 = vmatprep.subr.bf16.mxu0 0
      %786 = vmatpush1.bf16.msra.mxu0 %v765
      %787 = vmatprep.subr.bf16.mxu0 0
      %788 = vmatpush1.bf16.msra.mxu0 %v766
      %789 = vmatprep.subr.bf16.mxu0 0
      %790 = vmatpush1.bf16.msra.mxu0 %v767
      %791 = vmatprep.subr.bf16.mxu0 0
      %792 = vmatpush1.bf16.msra.mxu0 %v768
      %793 = vmatprep.subr.bf16.mxu0 0
      %794 = vmatpush1.bf16.msra.mxu0 0
      %795 = vmatprep.subr.bf16.mxu0 0
      %796 = vmatpush1.bf16.msra.mxu0 0
      %797 = vmatprep.subr.bf16.mxu0 0
      %798 = vmatpush1.bf16.msra.mxu0 0
      %799 = vmatprep.subr.bf16.mxu0 0
      %800 = vmatpush1.bf16.msra.mxu0 0
      %801 = vmatprep.subr.bf16.mxu0 0
      %802 = vmatpush1.bf16.msra.mxu0 0
      %803 = vmatprep.subr.bf16.mxu0 0
      %804 = vmatpush1.bf16.msra.mxu0 0
      %805 = vmatprep.subr.bf16.mxu0 0
      %806 = vmatpush1.bf16.msra.mxu0 0
      %807 = vmatprep.subr.bf16.mxu0 0
      %808 = vmatpush1.bf16.msra.mxu0 0
      %809 = vmatprep.mubr.bf16.mxu0 0
      %810 = vmatmul.mubr.bf16.gmra.mrb[0].mxu0 %v727
      %v811 = vpop.f32.mrb[0].mxu0
      %v812 = vadd.f32 0.0, %v811
      %v813 = vpop.f32.mrb[0].mxu0
      %v814 = vpop.f32.mrb[0].mxu0
      %v815 = vadd.f32 0.0, %v814
      %v816 = vpop.f32.mrb[0].mxu0
      %817 = vdwg.mxu0
      %v818 = vadd.f32 %v697, %v812
      %v819 = vadd.f32 %v700, %v815
      %v820 = vld [vmem:[%s425] sm:$0xf]
      %v821 = vld [vmem:[%s425 + $0x4] sm:$0xf]
      %s822 = scalar_lea.vmem %s3, 192
      %v823 = vld [vmem:[%s822] sm:$0xf]
      %v824 = vld [vmem:[%s822 + $0x4] sm:$0xf]
      %v825 = vld [vmem:[%s822 + $0x8] sm:$0xf]
      %v826 = vld [vmem:[%s822 + $0xc] sm:$0xf]
      %v827 = vld [vmem:[%s822 + $0x10] sm:$0xf]
      %v828 = vld [vmem:[%s822 + $0x14] sm:$0xf]
      %v829 = vld [vmem:[%s822 + $0x18] sm:$0xf]
      %v830 = vld [vmem:[%s822 + $0x1c] sm:$0xf]
      %v831 = vld [vmem:[%s822 + $0x20] sm:$0xf]
      %v832 = vld [vmem:[%s822 + $0x24] sm:$0xf]
      %v833 = vld [vmem:[%s822 + $0x28] sm:$0xf]
      %v834 = vld [vmem:[%s822 + $0x2c] sm:$0xf]
      %v835 = vld [vmem:[%s822 + $0x30] sm:$0xf]
      %v836 = vld [vmem:[%s822 + $0x34] sm:$0xf]
      %v837 = vld [vmem:[%s822 + $0x38] sm:$0xf]
      %v838 = vld [vmem:[%s822 + $0x3c] sm:$0xf]
      %v841 = vunpack.c.l.b16 %v820
      %v842 = vunpack.c.l.b16 %v821
      %v843 = vpack.c.b16 %v842, %v841
      %v861 = vunpack.c.l.b16 %v823
      %v862 = vunpack.c.l.b16 %v824
      %v863 = vunpack.c.l.b16 %v825
      %v864 = vunpack.c.l.b16 %v826
      %v865 = vunpack.c.l.b16 %v827
      %v866 = vunpack.c.l.b16 %v828
      %v867 = vunpack.c.l.b16 %v829
      %v868 = vunpack.c.l.b16 %v830
      %v869 = vunpack.c.l.b16 %v831
      %v870 = vunpack.c.l.b16 %v832
      %v871 = vunpack.c.l.b16 %v833
      %v872 = vunpack.c.l.b16 %v834
      %v873 = vunpack.c.l.b16 %v835
      %v874 = vunpack.c.l.b16 %v836
      %v875 = vunpack.c.l.b16 %v837
      %v876 = vunpack.c.l.b16 %v838
      %v877 = vpack.c.b16 %v862, %v861
      %v878 = vpack.c.b16 %v864, %v863
      %v879 = vpack.c.b16 %v866, %v865
      %v880 = vpack.c.b16 %v868, %v867
      %v881 = vpack.c.b16 %v870, %v869
      %v882 = vpack.c.b16 %v872, %v871
      %v883 = vpack.c.b16 %v874, %v873
      %v884 = vpack.c.b16 %v876, %v875
      %893 = vmatprep.subr.bf16.mxu0 0
      %894 = vmatpush1.bf16.msra.mxu0 %v877
      %895 = vmatprep.subr.bf16.mxu0 0
      %896 = vmatpush1.bf16.msra.mxu0 %v878
      %897 = vmatprep.subr.bf16.mxu0 0
      %898 = vmatpush1.bf16.msra.mxu0 %v879
      %899 = vmatprep.subr.bf16.mxu0 0
      %900 = vmatpush1.bf16.msra.mxu0 %v880
      %901 = vmatprep.subr.bf16.mxu0 0
      %902 = vmatpush1.bf16.msra.mxu0 %v881
      %903 = vmatprep.subr.bf16.mxu0 0
      %904 = vmatpush1.bf16.msra.mxu0 %v882
      %905 = vmatprep.subr.bf16.mxu0 0
      %906 = vmatpush1.bf16.msra.mxu0 %v883
      %907 = vmatprep.subr.bf16.mxu0 0
      %908 = vmatpush1.bf16.msra.mxu0 %v884
      %909 = vmatprep.subr.bf16.mxu0 0
      %910 = vmatpush1.bf16.msra.mxu0 0
      %911 = vmatprep.subr.bf16.mxu0 0
      %912 = vmatpush1.bf16.msra.mxu0 0
      %913 = vmatprep.subr.bf16.mxu0 0
      %914 = vmatpush1.bf16.msra.mxu0 0
      %915 = vmatprep.subr.bf16.mxu0 0
      %916 = vmatpush1.bf16.msra.mxu0 0
      %917 = vmatprep.subr.bf16.mxu0 0
      %918 = vmatpush1.bf16.msra.mxu0 0
      %919 = vmatprep.subr.bf16.mxu0 0
      %920 = vmatpush1.bf16.msra.mxu0 0
      %921 = vmatprep.subr.bf16.mxu0 0
      %922 = vmatpush1.bf16.msra.mxu0 0
      %923 = vmatprep.subr.bf16.mxu0 0
      %924 = vmatpush1.bf16.msra.mxu0 0
      %925 = vmatprep.mubr.bf16.mxu0 0
      %926 = vmatmul.mubr.bf16.gmra.mrb[0].mxu0 %v843
      %v927 = vpop.f32.mrb[0].mxu0
      %v928 = vadd.f32 0.0, %v927
      %v929 = vpop.f32.mrb[0].mxu0
      %v930 = vpop.f32.mrb[0].mxu0
      %v931 = vadd.f32 0.0, %v930
      %v932 = vpop.f32.mrb[0].mxu0
      %933 = vdwg.mxu0
      %v934 = vadd.f32 %v818, %v928
      %v935 = vadd.f32 %v819, %v931
      %v936 = vld [vmem:[%s425] sm:$0xf]
      %v937 = vld [vmem:[%s425 + $0x4] sm:$0xf]
      %v938 = vld [vmem:[%s425 + $0x8] sm:$0x1]
      %s939 = scalar_lea.vmem %s3, 256
      %v940 = vld [vmem:[%s939] sm:$0xf]
      %v941 = vld [vmem:[%s939 + $0x4] sm:$0xf]
      %v942 = vld [vmem:[%s939 + $0x8] sm:$0xf]
      %v943 = vld [vmem:[%s939 + $0xc] sm:$0xf]
      %v944 = vld [vmem:[%s939 + $0x10] sm:$0xf]
      %v945 = vld [vmem:[%s939 + $0x14] sm:$0xf]
      %v946 = vld [vmem:[%s939 + $0x18] sm:$0xf]
      %v947 = vld [vmem:[%s939 + $0x1c] sm:$0xf]
      %v948 = vld [vmem:[%s939 + $0x20] sm:$0xf]
      %v949 = vld [vmem:[%s939 + $0x24] sm:$0xf]
      %v950 = vld [vmem:[%s939 + $0x28] sm:$0xf]
      %v951 = vld [vmem:[%s939 + $0x2c] sm:$0xf]
      %v952 = vld [vmem:[%s939 + $0x30] sm:$0xf]
      %v953 = vld [vmem:[%s939 + $0x34] sm:$0xf]
      %v954 = vld [vmem:[%s939 + $0x38] sm:$0xf]
      %v955 = vld [vmem:[%s939 + $0x3c] sm:$0xf]
      %v959 = vunpack.c.l.b16 %v936
      %v960 = vunpack.c.l.b16 %v937
      %v961 = vunpack.c.l.b16 %v938
      %v962 = vpack.c.b16 %v960, %v959
      %v963 = vpack.c.b16 %v961, %v961
      %v965 = vshrl.u32 %v962, 16
      %v967 = vshll.u32 %v962, 16
      %v969 = vrot.slane %v967, 1
      %v970 = vor.u32 %v965, %v969
      %v972 = vshll.u32 %v963, 16
      %v974 = vrot.slane %v972, 1
      %v975 = vsel %vm510, %v970, %v974
      %v993 = vunpack.c.l.b16 %v940
      %v994 = vunpack.c.l.b16 %v941
      %v995 = vunpack.c.l.b16 %v942
      %v996 = vunpack.c.l.b16 %v943
      %v997 = vunpack.c.l.b16 %v944
      %v998 = vunpack.c.l.b16 %v945
      %v999 = vunpack.c.l.b16 %v946
      %v1000 = vunpack.c.l.b16 %v947
      %v1001 = vunpack.c.l.b16 %v948
      %v1002 = vunpack.c.l.b16 %v949
      %v1003 = vunpack.c.l.b16 %v950
      %v1004 = vunpack.c.l.b16 %v951
      %v1005 = vunpack.c.l.b16 %v952
      %v1006 = vunpack.c.l.b16 %v953
      %v1007 = vunpack.c.l.b16 %v954
      %v1008 = vunpack.c.l.b16 %v955
      %v1009 = vpack.c.b16 %v994, %v993
      %v1010 = vpack.c.b16 %v996, %v995
      %v1011 = vpack.c.b16 %v998, %v997
      %v1012 = vpack.c.b16 %v1000, %v999
      %v1013 = vpack.c.b16 %v1002, %v1001
      %v1014 = vpack.c.b16 %v1004, %v1003
      %v1015 = vpack.c.b16 %v1006, %v1005
      %v1016 = vpack.c.b16 %v1008, %v1007
      %1025 = vmatprep.subr.bf16.mxu0 0
      %1026 = vmatpush1.bf16.msra.mxu0 %v1009
      %1027 = vmatprep.subr.bf16.mxu0 0
      %1028 = vmatpush1.bf16.msra.mxu0 %v1010
      %1029 = vmatprep.subr.bf16.mxu0 0
      %1030 = vmatpush1.bf16.msra.mxu0 %v1011
      %1031 = vmatprep.subr.bf16.mxu0 0
      %1032 = vmatpush1.bf16.msra.mxu0 %v1012
      %1033 = vmatprep.subr.bf16.mxu0 0
      %1034 = vmatpush1.bf16.msra.mxu0 %v1013
      %1035 = vmatprep.subr.bf16.mxu0 0
      %1036 = vmatpush1.bf16.msra.mxu0 %v1014
      %1037 = vmatprep.subr.bf16.mxu0 0
      %1038 = vmatpush1.bf16.msra.mxu0 %v1015
      %1039 = vmatprep.subr.bf16.mxu0 0
      %1040 = vmatpush1.bf16.msra.mxu0 %v1016
      %1041 = vmatprep.subr.bf16.mxu0 0
      %1042 = vmatpush1.bf16.msra.mxu0 0
      %1043 = vmatprep.subr.bf16.mxu0 0
      %1044 = vmatpush1.bf16.msra.mxu0 0
      %1045 = vmatprep.subr.bf16.mxu0 0
      %1046 = vmatpush1.bf16.msra.mxu0 0
      %1047 = vmatprep.subr.bf16.mxu0 0
      %1048 = vmatpush1.bf16.msra.mxu0 0
      %1049 = vmatprep.subr.bf16.mxu0 0
      %1050 = vmatpush1.bf16.msra.mxu0 0
      %1051 = vmatprep.subr.bf16.mxu0 0
      %1052 = vmatpush1.bf16.msra.mxu0 0
      %1053 = vmatprep.subr.bf16.mxu0 0
      %1054 = vmatpush1.bf16.msra.mxu0 0
      %1055 = vmatprep.subr.bf16.mxu0 0
      %1056 = vmatpush1.bf16.msra.mxu0 0
      %1057 = vmatprep.mubr.bf16.mxu0 0
      %1058 = vmatmul.mubr.bf16.gmra.mrb[0].mxu0 %v975
      %v1059 = vpop.f32.mrb[0].mxu0
      %v1060 = vadd.f32 0.0, %v1059
      %v1061 = vpop.f32.mrb[0].mxu0
      %v1062 = vpop.f32.mrb[0].mxu0
      %v1063 = vadd.f32 0.0, %v1062
      %v1064 = vpop.f32.mrb[0].mxu0
      %1065 = vdwg.mxu0
      %v1066 = vadd.f32 %v934, %v1060
      %v1067 = vadd.f32 %v935, %v1063
      %v1068 = vld [vmem:[%s425] sm:$0xe]
      %s1069 = scalar_lea.vmem %s3, 320
      %v1070 = vld [vmem:[%s1069] sm:$0xf]
      %v1071 = vld [vmem:[%s1069 + $0x4] sm:$0xf]
      %v1072 = vld [vmem:[%s1069 + $0x8] sm:$0xf]
      %v1073 = vld [vmem:[%s1069 + $0xc] sm:$0xf]
      %v1074 = vld [vmem:[%s1069 + $0x10] sm:$0xf]
      %v1075 = vld [vmem:[%s1069 + $0x14] sm:$0xf]
      %v1076 = vld [vmem:[%s1069 + $0x18] sm:$0xf]
      %v1077 = vld [vmem:[%s1069 + $0x1c] sm:$0xf]
      %v1078 = vld [vmem:[%s1069 + $0x20] sm:$0xf]
      %v1079 = vld [vmem:[%s1069 + $0x24] sm:$0xf]
      %v1080 = vld [vmem:[%s1069 + $0x28] sm:$0xf]
      %v1081 = vld [vmem:[%s1069 + $0x2c] sm:$0xf]
      %v1082 = vld [vmem:[%s1069 + $0x30] sm:$0xf]
      %v1083 = vld [vmem:[%s1069 + $0x34] sm:$0xf]
      %v1084 = vld [vmem:[%s1069 + $0x38] sm:$0xf]
      %v1085 = vld [vmem:[%s1069 + $0x3c] sm:$0xf]
      %v1087 = vunpack.c.l.b16 %v1068
      %v1088 = vpack.c.b16 %v960, %v1087
      %v1089 = vrot.slane %v1088, 1
      %v1090 = vrot.slane %v963, 1
      %v1091 = vsel %vm724, %v1089, %v1090
      %v1109 = vunpack.c.l.b16 %v1070
      %v1110 = vunpack.c.l.b16 %v1071
      %v1111 = vunpack.c.l.b16 %v1072
      %v1112 = vunpack.c.l.b16 %v1073
      %v1113 = vunpack.c.l.b16 %v1074
      %v1114 = vunpack.c.l.b16 %v1075
      %v1115 = vunpack.c.l.b16 %v1076
      %v1116 = vunpack.c.l.b16 %v1077
      %v1117 = vunpack.c.l.b16 %v1078
      %v1118 = vunpack.c.l.b16 %v1079
      %v1119 = vunpack.c.l.b16 %v1080
      %v1120 = vunpack.c.l.b16 %v1081
      %v1121 = vunpack.c.l.b16 %v1082
      %v1122 = vunpack.c.l.b16 %v1083
      %v1123 = vunpack.c.l.b16 %v1084
      %v1124 = vunpack.c.l.b16 %v1085
      %v1125 = vpack.c.b16 %v1110, %v1109
      %v1126 = vpack.c.b16 %v1112, %v1111
      %v1127 = vpack.c.b16 %v1114, %v1113
      %v1128 = vpack.c.b16 %v1116, %v1115
      %v1129 = vpack.c.b16 %v1118, %v1117
      %v1130 = vpack.c.b16 %v1120, %v1119
      %v1131 = vpack.c.b16 %v1122, %v1121
      %v1132 = vpack.c.b16 %v1124, %v1123
      %1141 = vmatprep.subr.bf16.mxu0 0
      %1142 = vmatpush1.bf16.msra.mxu0 %v1125
      %1143 = vmatprep.subr.bf16.mxu0 0
      %1144 = vmatpush1.bf16.msra.mxu0 %v1126
      %1145 = vmatprep.subr.bf16.mxu0 0
      %1146 = vmatpush1.bf16.msra.mxu0 %v1127
      %1147 = vmatprep.subr.bf16.mxu0 0
      %1148 = vmatpush1.bf16.msra.mxu0 %v1128
      %1149 = vmatprep.subr.bf16.mxu0 0
      %1150 = vmatpush1.bf16.msra.mxu0 %v1129
      %1151 = vmatprep.subr.bf16.mxu0 0
      %1152 = vmatpush1.bf16.msra.mxu0 %v1130
      %1153 = vmatprep.subr.bf16.mxu0 0
      %1154 = vmatpush1.bf16.msra.mxu0 %v1131
      %1155 = vmatprep.subr.bf16.mxu0 0
      %1156 = vmatpush1.bf16.msra.mxu0 %v1132
      %1157 = vmatprep.subr.bf16.mxu0 0
      %1158 = vmatpush1.bf16.msra.mxu0 0
      %1159 = vmatprep.subr.bf16.mxu0 0
      %1160 = vmatpush1.bf16.msra.mxu0 0
      %1161 = vmatprep.subr.bf16.mxu0 0
      %1162 = vmatpush1.bf16.msra.mxu0 0
      %1163 = vmatprep.subr.bf16.mxu0 0
      %1164 = vmatpush1.bf16.msra.mxu0 0
      %1165 = vmatprep.subr.bf16.mxu0 0
      %1166 = vmatpush1.bf16.msra.mxu0 0
      %1167 = vmatprep.subr.bf16.mxu0 0
      %1168 = vmatpush1.bf16.msra.mxu0 0
      %1169 = vmatprep.subr.bf16.mxu0 0
      %1170 = vmatpush1.bf16.msra.mxu0 0
      %1171 = vmatprep.subr.bf16.mxu0 0
      %1172 = vmatpush1.bf16.msra.mxu0 0
      %1173 = vmatprep.mubr.bf16.mxu0 0
      %1174 = vmatmul.mubr.bf16.gmra.mrb[0].mxu0 %v1091
      %v1175 = vpop.f32.mrb[0].mxu0
      %v1176 = vadd.f32 0.0, %v1175
      %v1177 = vpop.f32.mrb[0].mxu0
      %v1178 = vpop.f32.mrb[0].mxu0
      %v1179 = vadd.f32 0.0, %v1178
      %v1180 = vpop.f32.mrb[0].mxu0
      %1181 = vdwg.mxu0
      %v1182 = vadd.f32 %v1066, %v1176
      %v1183 = vadd.f32 %v1067, %v1179
      %v1184 = vld [vmem:[%s436] sm:$0xf]
      %v1185 = vld [vmem:[%s436 + $0x4] sm:$0xf]
      %s1186 = scalar_lea.vmem %s3, 384
      %v1187 = vld [vmem:[%s1186] sm:$0xf]
      %v1188 = vld [vmem:[%s1186 + $0x4] sm:$0xf]
      %v1189 = vld [vmem:[%s1186 + $0x8] sm:$0xf]
      %v1190 = vld [vmem:[%s1186 + $0xc] sm:$0xf]
      %v1191 = vld [vmem:[%s1186 + $0x10] sm:$0xf]
      %v1192 = vld [vmem:[%s1186 + $0x14] sm:$0xf]
      %v1193 = vld [vmem:[%s1186 + $0x18] sm:$0xf]
      %v1194 = vld [vmem:[%s1186 + $0x1c] sm:$0xf]
      %v1195 = vld [vmem:[%s1186 + $0x20] sm:$0xf]
      %v1196 = vld [vmem:[%s1186 + $0x24] sm:$0xf]
      %v1197 = vld [vmem:[%s1186 + $0x28] sm:$0xf]
      %v1198 = vld [vmem:[%s1186 + $0x2c] sm:$0xf]
      %v1199 = vld [vmem:[%s1186 + $0x30] sm:$0xf]
      %v1200 = vld [vmem:[%s1186 + $0x34] sm:$0xf]
      %v1201 = vld [vmem:[%s1186 + $0x38] sm:$0xf]
      %v1202 = vld [vmem:[%s1186 + $0x3c] sm:$0xf]
      %v1205 = vunpack.c.l.b16 %v1184
      %v1206 = vunpack.c.l.b16 %v1185
      %v1207 = vpack.c.b16 %v1206, %v1205
      %v1225 = vunpack.c.l.b16 %v1187
      %v1226 = vunpack.c.l.b16 %v1188
      %v1227 = vunpack.c.l.b16 %v1189
      %v1228 = vunpack.c.l.b16 %v1190
      %v1229 = vunpack.c.l.b16 %v1191
      %v1230 = vunpack.c.l.b16 %v1192
      %v1231 = vunpack.c.l.b16 %v1193
      %v1232 = vunpack.c.l.b16 %v1194
      %v1233 = vunpack.c.l.b16 %v1195
      %v1234 = vunpack.c.l.b16 %v1196
      %v1235 = vunpack.c.l.b16 %v1197
      %v1236 = vunpack.c.l.b16 %v1198
      %v1237 = vunpack.c.l.b16 %v1199
      %v1238 = vunpack.c.l.b16 %v1200
      %v1239 = vunpack.c.l.b16 %v1201
      %v1240 = vunpack.c.l.b16 %v1202
      %v1241 = vpack.c.b16 %v1226, %v1225
      %v1242 = vpack.c.b16 %v1228, %v1227
      %v1243 = vpack.c.b16 %v1230, %v1229
      %v1244 = vpack.c.b16 %v1232, %v1231
      %v1245 = vpack.c.b16 %v1234, %v1233
      %v1246 = vpack.c.b16 %v1236, %v1235
      %v1247 = vpack.c.b16 %v1238, %v1237
      %v1248 = vpack.c.b16 %v1240, %v1239
      %1257 = vmatprep.subr.bf16.mxu0 0
      %1258 = vmatpush1.bf16.msra.mxu0 %v1241
      %1259 = vmatprep.subr.bf16.mxu0 0
      %1260 = vmatpush1.bf16.msra.mxu0 %v1242
      %1261 = vmatprep.subr.bf16.mxu0 0
      %1262 = vmatpush1.bf16.msra.mxu0 %v1243
      %1263 = vmatprep.subr.bf16.mxu0 0
      %1264 = vmatpush1.bf16.msra.mxu0 %v1244
      %1265 = vmatprep.subr.bf16.mxu0 0
      %1266 = vmatpush1.bf16.msra.mxu0 %v1245
      %1267 = vmatprep.subr.bf16.mxu0 0
      %1268 = vmatpush1.bf16.msra.mxu0 %v1246
      %1269 = vmatprep.subr.bf16.mxu0 0
      %1270 = vmatpush1.bf16.msra.mxu0 %v1247
      %1271 = vmatprep.subr.bf16.mxu0 0
      %1272 = vmatpush1.bf16.msra.mxu0 %v1248
      %1273 = vmatprep.subr.bf16.mxu0 0
      %1274 = vmatpush1.bf16.msra.mxu0 0
      %1275 = vmatprep.subr.bf16.mxu0 0
      %1276 = vmatpush1.bf16.msra.mxu0 0
      %1277 = vmatprep.subr.bf16.mxu0 0
      %1278 = vmatpush1.bf16.msra.mxu0 0
      %1279 = vmatprep.subr.bf16.mxu0 0
      %1280 = vmatpush1.bf16.msra.mxu0 0
      %1281 = vmatprep.subr.bf16.mxu0 0
      %1282 = vmatpush1.bf16.msra.mxu0 0
      %1283 = vmatprep.subr.bf16.mxu0 0
      %1284 = vmatpush1.bf16.msra.mxu0 0
      %1285 = vmatprep.subr.bf16.mxu0 0
      %1286 = vmatpush1.bf16.msra.mxu0 0
      %1287 = vmatprep.subr.bf16.mxu0 0
      %1288 = vmatpush1.bf16.msra.mxu0 0
      %1289 = vmatprep.mubr.bf16.mxu0 0
      %1290 = vmatmul.mubr.bf16.gmra.mrb[0].mxu0 %v1207
      %v1291 = vpop.f32.mrb[0].mxu0
      %v1292 = vadd.f32 0.0, %v1291
      %v1293 = vpop.f32.mrb[0].mxu0
      %v1294 = vpop.f32.mrb[0].mxu0
      %v1295 = vadd.f32 0.0, %v1294
      %v1296 = vpop.f32.mrb[0].mxu0
      %1297 = vdwg.mxu0
      %v1298 = vadd.f32 %v1182, %v1292
      %v1299 = vadd.f32 %v1183, %v1295
      %v1300 = vld [vmem:[%s436] sm:$0xf]
      %v1301 = vld [vmem:[%s436 + $0x4] sm:$0xf]
      %v1302 = vld [vmem:[%s436 + $0x8] sm:$0x1]
      %s1303 = scalar_lea.vmem %s3, 448
      %v1304 = vld [vmem:[%s1303] sm:$0xf]
      %v1305 = vld [vmem:[%s1303 + $0x4] sm:$0xf]
      %v1306 = vld [vmem:[%s1303 + $0x8] sm:$0xf]
      %v1307 = vld [vmem:[%s1303 + $0xc] sm:$0xf]
      %v1308 = vld [vmem:[%s1303 + $0x10] sm:$0xf]
      %v1309 = vld [vmem:[%s1303 + $0x14] sm:$0xf]
      %v1310 = vld [vmem:[%s1303 + $0x18] sm:$0xf]
      %v1311 = vld [vmem:[%s1303 + $0x1c] sm:$0xf]
      %v1312 = vld [vmem:[%s1303 + $0x20] sm:$0xf]
      %v1313 = vld [vmem:[%s1303 + $0x24] sm:$0xf]
      %v1314 = vld [vmem:[%s1303 + $0x28] sm:$0xf]
      %v1315 = vld [vmem:[%s1303 + $0x2c] sm:$0xf]
      %v1316 = vld [vmem:[%s1303 + $0x30] sm:$0xf]
      %v1317 = vld [vmem:[%s1303 + $0x34] sm:$0xf]
      %v1318 = vld [vmem:[%s1303 + $0x38] sm:$0xf]
      %v1319 = vld [vmem:[%s1303 + $0x3c] sm:$0xf]
      %v1323 = vunpack.c.l.b16 %v1300
      %v1324 = vunpack.c.l.b16 %v1301
      %v1325 = vunpack.c.l.b16 %v1302
      %v1326 = vpack.c.b16 %v1324, %v1323
      %v1327 = vpack.c.b16 %v1325, %v1325
      %v1329 = vshrl.u32 %v1326, 16
      %v1331 = vshll.u32 %v1326, 16
      %v1333 = vrot.slane %v1331, 1
      %v1334 = vor.u32 %v1329, %v1333
      %v1336 = vshll.u32 %v1327, 16
      %v1338 = vrot.slane %v1336, 1
      %v1339 = vsel %vm510, %v1334, %v1338
      %v1357 = vunpack.c.l.b16 %v1304
      %v1358 = vunpack.c.l.b16 %v1305
      %v1359 = vunpack.c.l.b16 %v1306
      %v1360 = vunpack.c.l.b16 %v1307
      %v1361 = vunpack.c.l.b16 %v1308
      %v1362 = vunpack.c.l.b16 %v1309
      %v1363 = vunpack.c.l.b16 %v1310
      %v1364 = vunpack.c.l.b16 %v1311
      %v1365 = vunpack.c.l.b16 %v1312
      %v1366 = vunpack.c.l.b16 %v1313
      %v1367 = vunpack.c.l.b16 %v1314
      %v1368 = vunpack.c.l.b16 %v1315
      %v1369 = vunpack.c.l.b16 %v1316
      %v1370 = vunpack.c.l.b16 %v1317
      %v1371 = vunpack.c.l.b16 %v1318
      %v1372 = vunpack.c.l.b16 %v1319
      %v1373 = vpack.c.b16 %v1358, %v1357
      %v1374 = vpack.c.b16 %v1360, %v1359
      %v1375 = vpack.c.b16 %v1362, %v1361
      %v1376 = vpack.c.b16 %v1364, %v1363
      %v1377 = vpack.c.b16 %v1366, %v1365
      %v1378 = vpack.c.b16 %v1368, %v1367
      %v1379 = vpack.c.b16 %v1370, %v1369
      %v1380 = vpack.c.b16 %v1372, %v1371
      %1389 = vmatprep.subr.bf16.mxu0 0
      %1390 = vmatpush1.bf16.msra.mxu0 %v1373
      %1391 = vmatprep.subr.bf16.mxu0 0
      %1392 = vmatpush1.bf16.msra.mxu0 %v1374
      %1393 = vmatprep.subr.bf16.mxu0 0
      %1394 = vmatpush1.bf16.msra.mxu0 %v1375
      %1395 = vmatprep.subr.bf16.mxu0 0
      %1396 = vmatpush1.bf16.msra.mxu0 %v1376
      %1397 = vmatprep.subr.bf16.mxu0 0
      %1398 = vmatpush1.bf16.msra.mxu0 %v1377
      %1399 = vmatprep.subr.bf16.mxu0 0
      %1400 = vmatpush1.bf16.msra.mxu0 %v1378
      %1401 = vmatprep.subr.bf16.mxu0 0
      %1402 = vmatpush1.bf16.msra.mxu0 %v1379
      %1403 = vmatprep.subr.bf16.mxu0 0
      %1404 = vmatpush1.bf16.msra.mxu0 %v1380
      %1405 = vmatprep.subr.bf16.mxu0 0
      %1406 = vmatpush1.bf16.msra.mxu0 0
      %1407 = vmatprep.subr.bf16.mxu0 0
      %1408 = vmatpush1.bf16.msra.mxu0 0
      %1409 = vmatprep.subr.bf16.mxu0 0
      %1410 = vmatpush1.bf16.msra.mxu0 0
      %1411 = vmatprep.subr.bf16.mxu0 0
      %1412 = vmatpush1.bf16.msra.mxu0 0
      %1413 = vmatprep.subr.bf16.mxu0 0
      %1414 = vmatpush1.bf16.msra.mxu0 0
      %1415 = vmatprep.subr.bf16.mxu0 0
      %1416 = vmatpush1.bf16.msra.mxu0 0
      %1417 = vmatprep.subr.bf16.mxu0 0
      %1418 = vmatpush1.bf16.msra.mxu0 0
      %1419 = vmatprep.subr.bf16.mxu0 0
      %1420 = vmatpush1.bf16.msra.mxu0 0
      %1421 = vmatprep.mubr.bf16.mxu0 0
      %1422 = vmatmul.mubr.bf16.gmra.mrb[0].mxu0 %v1339
      %v1423 = vpop.f32.mrb[0].mxu0
      %v1424 = vadd.f32 0.0, %v1423
      %v1425 = vpop.f32.mrb[0].mxu0
      %v1426 = vpop.f32.mrb[0].mxu0
      %v1427 = vadd.f32 0.0, %v1426
      %v1428 = vpop.f32.mrb[0].mxu0
      %1429 = vdwg.mxu0
      %v1430 = vadd.f32 %v1298, %v1424
      %v1431 = vadd.f32 %v1299, %v1427
      %v1432 = vld [vmem:[%s436] sm:$0xe]
      %s1433 = scalar_lea.vmem %s3, 512
      %v1434 = vld [vmem:[%s1433] sm:$0xf]
      %v1435 = vld [vmem:[%s1433 + $0x4] sm:$0xf]
      %v1436 = vld [vmem:[%s1433 + $0x8] sm:$0xf]
      %v1437 = vld [vmem:[%s1433 + $0xc] sm:$0xf]
      %v1438 = vld [vmem:[%s1433 + $0x10] sm:$0xf]
      %v1439 = vld [vmem:[%s1433 + $0x14] sm:$0xf]
      %v1440 = vld [vmem:[%s1433 + $0x18] sm:$0xf]
      %v1441 = vld [vmem:[%s1433 + $0x1c] sm:$0xf]
      %v1442 = vld [vmem:[%s1433 + $0x20] sm:$0xf]
      %v1443 = vld [vmem:[%s1433 + $0x24] sm:$0xf]
      %v1444 = vld [vmem:[%s1433 + $0x28] sm:$0xf]
      %v1445 = vld [vmem:[%s1433 + $0x2c] sm:$0xf]
      %v1446 = vld [vmem:[%s1433 + $0x30] sm:$0xf]
      %v1447 = vld [vmem:[%s1433 + $0x34] sm:$0xf]
      %v1448 = vld [vmem:[%s1433 + $0x38] sm:$0xf]
      %v1449 = vld [vmem:[%s1433 + $0x3c] sm:$0xf]
      %v1451 = vunpack.c.l.b16 %v1432
      %v1452 = vpack.c.b16 %v1324, %v1451
      %v1453 = vrot.slane %v1452, 1
      %v1454 = vrot.slane %v1327, 1
      %v1455 = vsel %vm724, %v1453, %v1454
      %v1473 = vunpack.c.l.b16 %v1434
      %v1474 = vunpack.c.l.b16 %v1435
      %v1475 = vunpack.c.l.b16 %v1436
      %v1476 = vunpack.c.l.b16 %v1437
      %v1477 = vunpack.c.l.b16 %v1438
      %v1478 = vunpack.c.l.b16 %v1439
      %v1479 = vunpack.c.l.b16 %v1440
      %v1480 = vunpack.c.l.b16 %v1441
      %v1481 = vunpack.c.l.b16 %v1442
      %v1482 = vunpack.c.l.b16 %v1443
      %v1483 = vunpack.c.l.b16 %v1444
      %v1484 = vunpack.c.l.b16 %v1445
      %v1485 = vunpack.c.l.b16 %v1446
      %v1486 = vunpack.c.l.b16 %v1447
      %v1487 = vunpack.c.l.b16 %v1448
      %v1488 = vunpack.c.l.b16 %v1449
      %v1489 = vpack.c.b16 %v1474, %v1473
      %v1490 = vpack.c.b16 %v1476, %v1475
      %v1491 = vpack.c.b16 %v1478, %v1477
      %v1492 = vpack.c.b16 %v1480, %v1479
      %v1493 = vpack.c.b16 %v1482, %v1481
      %v1494 = vpack.c.b16 %v1484, %v1483
      %v1495 = vpack.c.b16 %v1486, %v1485
      %v1496 = vpack.c.b16 %v1488, %v1487
      %1505 = vmatprep.subr.bf16.mxu0 0
      %1506 = vmatpush1.bf16.msra.mxu0 %v1489
      %1507 = vmatprep.subr.bf16.mxu0 0
      %1508 = vmatpush1.bf16.msra.mxu0 %v1490
      %1509 = vmatprep.subr.bf16.mxu0 0
      %1510 = vmatpush1.bf16.msra.mxu0 %v1491
      %1511 = vmatprep.subr.bf16.mxu0 0
      %1512 = vmatpush1.bf16.msra.mxu0 %v1492
      %1513 = vmatprep.subr.bf16.mxu0 0
      %1514 = vmatpush1.bf16.msra.mxu0 %v1493
      %1515 = vmatprep.subr.bf16.mxu0 0
      %1516 = vmatpush1.bf16.msra.mxu0 %v1494
      %1517 = vmatprep.subr.bf16.mxu0 0
      %1518 = vmatpush1.bf16.msra.mxu0 %v1495
      %1519 = vmatprep.subr.bf16.mxu0 0
      %1520 = vmatpush1.bf16.msra.mxu0 %v1496
      %1521 = vmatprep.subr.bf16.mxu0 0
      %1522 = vmatpush1.bf16.msra.mxu0 0
      %1523 = vmatprep.subr.bf16.mxu0 0
      %1524 = vmatpush1.bf16.msra.mxu0 0
      %1525 = vmatprep.subr.bf16.mxu0 0
      %1526 = vmatpush1.bf16.msra.mxu0 0
      %1527 = vmatprep.subr.bf16.mxu0 0
      %1528 = vmatpush1.bf16.msra.mxu0 0
      %1529 = vmatprep.subr.bf16.mxu0 0
      %1530 = vmatpush1.bf16.msra.mxu0 0
      %1531 = vmatprep.subr.bf16.mxu0 0
      %1532 = vmatpush1.bf16.msra.mxu0 0
      %1533 = vmatprep.subr.bf16.mxu0 0
      %1534 = vmatpush1.bf16.msra.mxu0 0
      %1535 = vmatprep.subr.bf16.mxu0 0
      %1536 = vmatpush1.bf16.msra.mxu0 0
      %1537 = vmatprep.mubr.bf16.mxu0 0
      %1538 = vmatmul.mubr.bf16.gmra.mrb[0].mxu0 %v1455
      %v1539 = vpop.f32.mrb[0].mxu0
      %v1540 = vadd.f32 0.0, %v1539
      %v1541 = vpop.f32.mrb[0].mxu0
      %v1542 = vpop.f32.mrb[0].mxu0
      %v1543 = vadd.f32 0.0, %v1542
      %v1544 = vpop.f32.mrb[0].mxu0
      %1545 = vdwg.mxu0
      %v1546 = vadd.f32 %v1430, %v1540
      %v1547 = vadd.f32 %v1431, %v1543
      %v1548 = vld [vmem:[%s4] sm:$0x1]
      %v1550 = vlaneseq
      %v1551 = vshrl.u32 %v1550, 7
      %v1552 = vsub.s32 0, %v1551
      %v1553 = vrot.slane %v1548, %v1552
      %v1555 = vadd.f32 %v1546, %v1553
      %v1556 = vadd.f32 %v1547, %v1553
      %v1557 = vld [vmem:[%s446] sm:$0xf]
      %v1558 = vld [vmem:[%s446 + $0x4] sm:$0xf]
      %v1559 = vunpack.c.l.bf16 %v1557
      %v1560 = vunpack.c.l.bf16 %v1558
      %v1561 = vmul.f32 %v1559, 0.5
      %v1562 = vmul.f32 %v1560, 0.5
      %v1563 = vtanh.pop %v1561
      %v1564 = vtanh.pop %v1562
      %v1565 = vadd.f32 %v1563, 1.0
      %v1566 = vadd.f32 %v1564, 1.0
      %v1567 = vmul.f32 %v1565, 0.5
      %v1568 = vmul.f32 %v1566, 0.5
      %v1569 = vmul.f32 %v1567, %v1555
      %v1570 = vmul.f32 %v1568, %v1556
      %v1571 = vld [vmem:[%s455] sm:$0xff]
      %v1572 = vld [vmem:[%s455 + $0x8] sm:$0xff]
      %v1573 = vadd.f32 %v1569, %v1571
      %v1574 = vadd.f32 %v1570, %v1572
      %1575 = vst [vmem:[%s464] sm:$0xff] %v1573
      %1576 = vst [vmem:[%s464 + $0x8] sm:$0xff] %v1574
      %p1577 = scmp.lt.s32.totalorder %s22, 1
      %s1578 = scalar_select %p1577, %s22, 1
      %p1579 = scmp.lt.s32.totalorder %s23, 3
      %s1580 = scalar_select %p1579, %s23, 3
      %s1581 = smul.addr %s1580, 2
      %s1582 = smul.addr %s1578, 8
      %s1583 = sadd.s32 %s1581, %s1582
      %s1584 = smul.addr %s1583, 8
      %s1585 = scalar_lea.vmem %s7, %s1584
      // Predicated region
      $region49: #{gated3d_block_forward.3} parent=47 // pred_check
        %p1586 = pneg %p236
      $region50: #{gated3d_block_forward.3} parent=47 // pred_check_branch
        %1588 = sbr.rel (%p1586) target = $region52
      $region51: #{gated3d_block_forward.3} parent=47 // pred_region
        _
      $region52: #{gated3d_block_forward.3} parent=47 // pred_fallthru
        _
    $region48: #{gated3d_block_forward.3} parent=5 // pred_fallthru
      _
    %p1589 = scmp.le.s32.totalorder 2, %s13
    // Predicated region
    $region53: #{gated3d_block_forward.3} parent=5 // pred_check
      %p1590 = pneg %p1589
    $region54: #{gated3d_block_forward.3} parent=5 // pred_check_branch
      %1592 = sbr.rel (%p1590) target = $region56
    $region55: #{gated3d_block_forward.3} parent=5 // pred_region
      %s1593 = ssub.s32 %s13, 2
      // Predicated region
      $region57: #{gated3d_block_forward.3} parent=55 // pred_check
        %p1594 = pneg %p242
      $region58: #{gated3d_block_forward.3} parent=55 // pred_check_branch
        %1596 = sbr.rel (%p1594) target = $region60
      $region59: #{gated3d_block_forward.3} parent=55 // pred_region
        %p1597 = scmp.lt.s32.totalorder %s24, 1
        %s1598 = scalar_select %p1597, %s24, 1
        %p1599 = scmp.lt.s32.totalorder %s25, 3
        %s1600 = scalar_select %p1599, %s25, 3
        %s1601 = smul.addr %s1600, 2
        %s1602 = smul.addr %s1598, 8
        %s1603 = sadd.s32 %s1601, %s1602
        %s1604 = smul.addr %s1603, 8
        %s1605 = scalar_lea.vmem %s7, %s1604
      $region60: #{gated3d_block_forward.3} parent=55 // pred_fallthru
        _
    $region56: #{gated3d_block_forward.3} parent=5 // pred_fallthru
      _
  $region6: #{gated3d_block_forward.3} parent=0 // loop_footer
    %s17 = sadd.s32 1, %s13
  $region7: #{gated3d_block_forward.3} parent=0 // loop_footer_branch
    %12 = sbr.rel target = $region3
  $region8: #{gated3d_block_forward.3} parent=0 // loop_exit
    _

</llo_original>
